<compile_context>
chip_gen: v5e
topology: v5e:2x2
jax: 0.10.0
libtpu: 0.0.40
codegen_flags: <defaults>
</compile_context>

<pallas_src>
import functools

import numpy as np

import jax
import jax.numpy as jnp
from jax.experimental import pallas as pl
from jax.experimental.pallas import tpu as pltpu

N_EMBEDDING = 384          # matches the PyTorch module's global
DROPOUT_P = 0.2

_CompilerParams = getattr(pltpu, "CompilerParams", None) or getattr(
    pltpu, "TPUCompilerParams")


def _round_up(x, m):
    return ((x + m - 1) // m) * m


def _uniform_u32(shape, seed_u32, base_offset_u32):
    """Counter-based hash (lowbias32) -> uint32 per element.

    Fallback path only (non-TPU / interpret mode); on TPU hardware the kernel
    uses the hardware PRNG instead (far fewer VALU ops per element)."""
    r = jax.lax.broadcasted_iota(jnp.uint32, shape, 0)
    c = jax.lax.broadcasted_iota(jnp.uint32, shape, 1)
    x = base_offset_u32 + r * jnp.uint32(shape[1]) + c
    x = x ^ (seed_u32 * jnp.uint32(0x9E3779B9))
    x = (x ^ (x >> 16)) * jnp.uint32(0x7FEB352D)
    x = (x ^ (x >> 15)) * jnp.uint32(0x846CA68B)
    x = x ^ (x >> 16)
    return x


def _ffn_kernel(seed_ref, x_ref, w1_ref, b1_ref, w2_ref, b2_ref, o_ref,
                *, dropout_p, training, use_hw_prng):
    # Two MXU matmuls (bf16/f32 operands, f32 accumulation) + f32 VPU epilogue.
    x = x_ref[...]                                            # (TM, C)
    h = jnp.dot(x, w1_ref[...], preferred_element_type=jnp.float32)
    h = jnp.maximum(h + b1_ref[...], 0.0)                     # (TM, 4C) f32
    h = h.astype(w2_ref.dtype)                                # single cast
    y = jnp.dot(h, w2_ref[...], preferred_element_type=jnp.float32)
    y = y + b2_ref[...]                                       # (TM, C) f32

    if training and dropout_p > 0.0:
        keep_prob = 1.0 - dropout_p
        # Clamp so a near-1.0 keep_prob can never wrap the threshold to 0.
        threshold = jnp.uint32(min(int(round(keep_prob * (2 ** 32))),
                                   2 ** 32 - 1))
        if use_hw_prng:
            # Hardware PRNG: ~1 op per vreg.  Re-seeded per grid step so the
            # mask is deterministic and independent of v7x megacore sharding.
            pltpu.prng_seed(seed_ref[0], pl.program_id(0))
            bits = pltpu.bitcast(pltpu.prng_random_bits(y.shape), jnp.uint32)
        else:
            seed_u32 = seed_ref[0].astype(jnp.uint32)
            tile_elems = y.shape[0] * y.shape[1]
            base = pl.program_id(0).astype(jnp.uint32) * jnp.uint32(tile_elems)
            bits = _uniform_u32(y.shape, seed_u32, base)
        # Inverted dropout: scale folded into the single select.
        y = jnp.where(bits < threshold, y * (1.0 / keep_prob), 0.0)
        # TODO(synk): matches torch.nn.Dropout keep-prob/scaling semantics only;
        # the exact torch RNG mask is not reproducible here.  Callers must
        # thread a fresh `seed` per training step.

    o_ref[...] = y.astype(o_ref.dtype)


def _choose_row_tile(m, compute_dtype):
    # bf16 packs 16 rows per sublane group; 8 suffices for f32.
    min_tile = 16 if compute_dtype == jnp.bfloat16 else 8
    if m <= 1024:
        # Single tile: the 1-D grid is a sequential loop on v5e/v6e, so
        # splitting a small input only multiplies the ~0.35us per-step cost.
        return _round_up(max(m, min_tile), min_tile)
    # Large M: biggest tile (<=1024, VMEM-safe) that divides M so the wrapper
    # never pads/slices; keeps >= 2 grid steps for v7x megacore sharding.
    for tm in (1024, 768, 512, 384, 256, 128):
        if m % tm == 0:
            return tm
    return 512  # rare fallback: last tile padded


def _resident_spec(shape, single_buffer):
    """BlockSpec for a weight/bias that stays VMEM-resident (constant index)."""
    index_map = lambda i, seed_ref: (0,) * len(shape)
    if single_buffer and hasattr(pl, "Buffered"):
        try:
            # Constant index_map: one buffer is enough; saves a ~2.3 MiB dead
            # second copy of the weights (useful headroom on v7x's 64 MiB VMEM).
            return pl.BlockSpec(shape, index_map, pipeline_mode=pl.Buffered(1))
        except TypeError:
            pass
    return pl.BlockSpec(shape, index_map)


def feed_forward(x, w1, b1, w2, b2, *, seed=0, training=True,
                 dropout_p=DROPOUT_P, compute_dtype=jnp.bfloat16,
                 use_hw_prng=None, single_buffer_weights=False):
    """x: (B, T, C) -> (B, T, C) in x.dtype.

    For best performance pass w1/w2 already cast to `compute_dtype` (cast once
    at parameter-setup time, not per call).  `seed` must be varied per training
    step by the caller.  `single_buffer_weights=True` can be enabled on v7x
    for extra VMEM headroom (left off by default for maximum compatibility)."""
    B, T, C = x.shape
    H = w1.shape[-1]
    assert w1.shape == (C, H) and w2.shape == (H, C)
    assert b1.shape == (H,) and b2.shape == (C,)
    assert C % 128 == 0 and H % 128 == 0, "keep feature axes lane-aligned"

    if use_hw_prng is None:
        use_hw_prng = jax.default_backend() == "tpu"

    M = B * T
    tm = _choose_row_tile(M, compute_dtype)
    M_pad = _round_up(M, tm)

    x2 = x.reshape(M, C)
    if x2.dtype != compute_dtype:
        x2 = x2.astype(compute_dtype)
    if M_pad != M:
        x2 = jnp.pad(x2, ((0, M_pad - M), (0, 0)))

    # Only cast weights if the caller did not already provide compute_dtype.
    w1c = w1 if w1.dtype == compute_dtype else w1.astype(compute_dtype)
    w2c = w2 if w2.dtype == compute_dtype else w2.astype(compute_dtype)
    b1_2d = b1.reshape(1, H).astype(jnp.float32)
    b2_2d = b2.reshape(1, C).astype(jnp.float32)
    seed_arr = jnp.asarray([seed], dtype=jnp.int32)

    kernel = functools.partial(_ffn_kernel, dropout_p=float(dropout_p),
                               training=bool(training),
                               use_hw_prng=bool(use_hw_prng))

    out = pl.pallas_call(
        kernel,
        out_shape=jax.ShapeDtypeStruct((M_pad, C), x.dtype),
        grid_spec=pltpu.PrefetchScalarGridSpec(
            num_scalar_prefetch=1,
            grid=(M_pad // tm,),
            in_specs=[
                pl.BlockSpec((tm, C), lambda i, seed_ref: (i, 0)),     # x rows
                _resident_spec((C, H), single_buffer_weights),         # W1
                _resident_spec((1, H), single_buffer_weights),         # b1
                _resident_spec((H, C), single_buffer_weights),         # W2
                _resident_spec((1, C), single_buffer_weights),         # b2
            ],
            out_specs=pl.BlockSpec((tm, C), lambda i, seed_ref: (i, 0)),
        ),
        compiler_params=_CompilerParams(
            dimension_semantics=("parallel",)),
    )(seed_arr, x2, w1c, b1_2d, w2c, b2_2d)

    if M_pad != M:
        out = out[:M]
    return out.reshape(B, T, C)


def _init_params(key, c):
    """Deterministic init mirroring nn.Linear's U(-1/sqrt(fan_in), +1/sqrt(fan_in))."""
    h = 4 * c
    k1, k2, k3, k4 = jax.random.split(key, 4)
    lim1 = 1.0 / np.sqrt(c)
    lim2 = 1.0 / np.sqrt(h)
    w1 = jax.random.uniform(k1, (c, h), jnp.float32, -lim1, lim1)
    b1 = jax.random.uniform(k2, (h,), jnp.float32, -lim1, lim1)
    w2 = jax.random.uniform(k3, (h, c), jnp.float32, -lim2, lim2)
    b2 = jax.random.uniform(k4, (c,), jnp.float32, -lim2, lim2)
    return w1, b1, w2, b2


def _reference(x, w1, b1, w2, b2, compute_dtype):
    """Pure-JAX reference using the same operand dtypes as the kernel."""
    B, T, C = x.shape
    x2 = x.reshape(-1, C).astype(compute_dtype)
    h = jnp.dot(x2, w1.astype(compute_dtype),
                preferred_element_type=jnp.float32) + b1.astype(jnp.float32)
    h = jnp.maximum(h, 0.0).astype(compute_dtype)
    y = jnp.dot(h, w2.astype(compute_dtype),
                preferred_element_type=jnp.float32) + b2.astype(jnp.float32)
    return y.astype(x.dtype).reshape(B, T, C)


if __name__ == "__main__":
    key = jax.random.PRNGKey(0)
    kx, kp, kx2 = jax.random.split(key, 3)

    B, T, C = 2, 8, N_EMBEDDING
    x = jax.random.normal(kx, (B, T, C), dtype=jnp.float32)
    w1, b1, w2, b2 = _init_params(kp, C)

    # 1) Eval-mode, f32 MXU path.  Tolerance is loose because XLA and Mosaic
    #    may use different f32-matmul pass counts at default precision.
    y_f32 = jax.block_until_ready(
        feed_forward(x, w1, b1, w2, b2, training=False,
                     compute_dtype=jnp.float32))
    ref_f32 = _reference(x, w1, b1, w2, b2, jnp.float32)
    np.testing.assert_allclose(np.asarray(y_f32), np.asarray(ref_f32),
                               rtol=2e-2, atol=2e-2)

    # 2) Eval-mode, default bf16 path with weights pre-cast once (as callers
    #    should do).  Identical bf16 operands -> tight tolerance.
    w1_bf, w2_bf = w1.astype(jnp.bfloat16), w2.astype(jnp.bfloat16)
    y_bf = jax.block_until_ready(
        feed_forward(x, w1_bf, b1, w2_bf, b2, training=False))
    ref_bf = _reference(x, w1, b1, w2, b2, jnp.bfloat16)
    np.testing.assert_allclose(np.asarray(y_bf), np.asarray(ref_bf),
                               rtol=1e-3, atol=1e-3)

    # 3) Multi-tile path: M = 2048 rows -> tm = 1024, 2 grid steps, no padding.
    xb = jax.random.normal(kx2, (4, 512, C), dtype=jnp.float32)
    y_big = jax.block_until_ready(
        feed_forward(xb, w1_bf, b1, w2_bf, b2, training=False))
    ref_big = _reference(xb, w1, b1, w2, b2, jnp.bfloat16)
    np.testing.assert_allclose(np.asarray(y_big), np.asarray(ref_big),
                               rtol=1e-3, atol=1e-3)

    # 4) Training mode (hardware-PRNG dropout): shape + drop fraction ~ 0.2.
    y_tr = jax.block_until_ready(
        feed_forward(x, w1_bf, b1, w2_bf, b2, seed=1234, training=True))
    assert y_tr.shape == (B, T, C)
    drop_frac = float(np.mean(np.asarray(y_tr) == 0.0))
    assert 0.10 < drop_frac < 0.30, f"unexpected dropout fraction {drop_frac}"

    print("KERNEL_OK")
</pallas_src>

<mosaic_0001>
module attributes {stable_mosaic.version = 11 : i64} {
  func.func @_ffn_kernel(%arg0: i32, %arg1: memref<1xi32, #tpu.memory_space<smem>>, %arg2: memref<16x384xf32, #tpu.memory_space<vmem>>, %arg3: memref<384x1536xf32, #tpu.memory_space<vmem>>, %arg4: memref<1x1536xf32, #tpu.memory_space<vmem>>, %arg5: memref<1536x384xf32, #tpu.memory_space<vmem>>, %arg6: memref<1x384xf32, #tpu.memory_space<vmem>>, %arg7: memref<16x384xf32, #tpu.memory_space<vmem>>) attributes {dimension_semantics = [#tpu.dimension_semantics<parallel>], iteration_bounds = array<i64: 1>, scalar_prefetch = 1 : i64, scratch_operands = 0 : i64, tpu.core_type = #tpu.core_type<tc>, window_params = [{transform_indices = @transform_0, window_bounds = array<i64: 16, 384>}, {pipeline_mode = #tpu.pipeline_mode<synchronous>, transform_indices = @transform_1, window_bounds = array<i64: 384, 1536>}, {pipeline_mode = #tpu.pipeline_mode<synchronous>, transform_indices = @transform_2, window_bounds = array<i64: 1, 1536>}, {pipeline_mode = #tpu.pipeline_mode<synchronous>, transform_indices = @transform_3, window_bounds = array<i64: 1536, 384>}, {pipeline_mode = #tpu.pipeline_mode<synchronous>, transform_indices = @transform_4, window_bounds = array<i64: 1, 384>}, {transform_indices = @transform_5, window_bounds = array<i64: 16, 384>}]} {
    %c0 = arith.constant 0 : index
    %c0_0 = arith.constant 0 : index
    %0 = vector.load %arg2[%c0, %c0_0] : memref<16x384xf32, #tpu.memory_space<vmem>>, vector<16x384xf32>
    %c0_1 = arith.constant 0 : index
    %c0_2 = arith.constant 0 : index
    %1 = vector.load %arg3[%c0_1, %c0_2] : memref<384x1536xf32, #tpu.memory_space<vmem>>, vector<384x1536xf32>
    %cst = arith.constant dense<0.000000e+00> : vector<16x1536xf32>
    %2 = tpu.matmul %0, %1, %cst {dimension_numbers = #tpu.dot_dimension_numbers<[1], [0], [0], [1], [0, 0, 1, 1], [], []>} : vector<16x384xf32>, vector<384x1536xf32>, vector<16x1536xf32> -> vector<16x1536xf32>
    %c0_3 = arith.constant 0 : index
    %c0_4 = arith.constant 0 : index
    %3 = vector.load %arg4[%c0_3, %c0_4] : memref<1x1536xf32, #tpu.memory_space<vmem>>, vector<1x1536xf32>
    %4 = vector.broadcast %3 : vector<1x1536xf32> to vector<16x1536xf32>
    %5 = arith.addf %2, %4 : vector<16x1536xf32>
    %cst_5 = arith.constant 0.000000e+00 : f32
    %6 = vector.broadcast %cst_5 : f32 to vector<16x1536xf32>
    %7 = arith.maximumf %5, %6 : vector<16x1536xf32>
    %c0_6 = arith.constant 0 : index
    %c0_7 = arith.constant 0 : index
    %8 = vector.load %arg5[%c0_6, %c0_7] : memref<1536x384xf32, #tpu.memory_space<vmem>>, vector<1536x384xf32>
    %cst_8 = arith.constant dense<0.000000e+00> : vector<16x384xf32>
    %9 = tpu.matmul %7, %8, %cst_8 {dimension_numbers = #tpu.dot_dimension_numbers<[1], [0], [0], [1], [0, 0, 1, 1], [], []>} : vector<16x1536xf32>, vector<1536x384xf32>, vector<16x384xf32> -> vector<16x384xf32>
    %c0_9 = arith.constant 0 : index
    %c0_10 = arith.constant 0 : index
    %10 = vector.load %arg6[%c0_9, %c0_10] : memref<1x384xf32, #tpu.memory_space<vmem>>, vector<1x384xf32>
    %11 = vector.broadcast %10 : vector<1x384xf32> to vector<16x384xf32>
    %12 = arith.addf %9, %11 : vector<16x384xf32>
    %c0_11 = arith.constant 0 : index
    %c0_12 = arith.constant 0 : index
    %13 = vector.load %arg7[%c0_11, %c0_12] : memref<16x384xf32, #tpu.memory_space<vmem>>, vector<16x384xf32>
    tpu.vector_store %arg7[%c0_11, %c0_12], %12 {strides = array<i32>} : memref<16x384xf32, #tpu.memory_space<vmem>>, vector<16x384xf32>,
    return
  }
  func.func @transform_0(%arg0: i32, %arg1: memref<1xi32, #tpu.memory_space<smem>>) -> (i32, i32) {
    %c0_i32 = arith.constant 0 : i32
    %c0_i32_0 = arith.constant 0 : i32
    return %arg0, %c0_i32 : i32, i32
  }
  func.func @transform_1(%arg0: i32, %arg1: memref<1xi32, #tpu.memory_space<smem>>) -> (i32, i32) {
    %c0_i32 = arith.constant 0 : i32
    %c0_i32_0 = arith.constant 0 : i32
    %c0_i32_1 = arith.constant 0 : i32
    return %c0_i32, %c0_i32_0 : i32, i32
  }
  func.func @transform_2(%arg0: i32, %arg1: memref<1xi32, #tpu.memory_space<smem>>) -> (i32, i32) {
    %c0_i32 = arith.constant 0 : i32
    %c0_i32_0 = arith.constant 0 : i32
    %c0_i32_1 = arith.constant 0 : i32
    return %c0_i32, %c0_i32_0 : i32, i32
  }
  func.func @transform_3(%arg0: i32, %arg1: memref<1xi32, #tpu.memory_space<smem>>) -> (i32, i32) {
    %c0_i32 = arith.constant 0 : i32
    %c0_i32_0 = arith.constant 0 : i32
    %c0_i32_1 = arith.constant 0 : i32
    return %c0_i32, %c0_i32_0 : i32, i32
  }
  func.func @transform_4(%arg0: i32, %arg1: memref<1xi32, #tpu.memory_space<smem>>) -> (i32, i32) {
    %c0_i32 = arith.constant 0 : i32
    %c0_i32_0 = arith.constant 0 : i32
    %c0_i32_1 = arith.constant 0 : i32
    return %c0_i32, %c0_i32_0 : i32, i32
  }
  func.func @transform_5(%arg0: i32, %arg1: memref<1xi32, #tpu.memory_space<smem>>) -> (i32, i32) {
    %c0_i32 = arith.constant 0 : i32
    %c0_i32_0 = arith.constant 0 : i32
    return %arg0, %c0_i32 : i32, i32
  }
}

</mosaic_0001>

<llo_original>
// kernel: tpu_custom_call.1
$region0: #{tpu_custom_call.1}
  #allocation0 [shape = 'u32[]', space=smem, size = 0x4, offset = 0x4, fixed_abs, tag = 'smem constant byte address 0x4 - core index']
  #allocation1 [shape = 'u32[72,128]{1,0:T(1,128)}', space=vmem, size = 0x9000, scoped, tag = 'internal scratch']
  #allocation2 [shape = 's32[1]{0}', space=sflag, size = 0x4, scoped, tag = 'scoped memory for tpu_custom_call.1']
  #allocation3 [shape = 's32[1]{0:T(128)S(6)}', space=smem, size = 0x200, scoped, tag = 'prefetched SMEM operand 0']
  %s0 = inlined_call_operand.<no memory space> [shape: s32[1], index: 0, kind: input, shape index: {}]
  %s1 = inlined_call_operand.hbm [shape: f32[16,384], index: 1, kind: input, shape index: {}]
  %s2 = inlined_call_operand.hbm [shape: f32[384,1536], index: 2, kind: input, shape index: {}]
  %s3 = inlined_call_operand.hbm [shape: f32[1,1536], index: 3, kind: input, shape index: {}]
  %s4 = inlined_call_operand.hbm [shape: f32[1536,384], index: 4, kind: input, shape index: {}]
  %s5 = inlined_call_operand.hbm [shape: f32[1,384], index: 5, kind: input, shape index: {}]
  %s6 = inlined_call_operand.hbm [shape: f32[16,384], index: 6, kind: output, shape index: {}]
  %s7 = sld [smem:[#allocation0]]
  $region50: #{tpu_custom_call.1} parent=0
    _
  %s9 = ssub.s32 1, %s7
  %s10 = scalar_select 0, %s9, %s7
  %11 = sst [smem:[#allocation3]] %s0
  $region1: #{tpu_custom_call.1} parent=0
    #allocation4 [shape = 'u8[24576]{0}', space=vmem, size = 0x6000, scoped, tag = 'input window, operand 1, single buffered']
    #allocation5 [shape = 's32[1]{0}', space=sflag, size = 0x4, scoped, tag = 'scoped memory for tpu_custom_call.1']
    #allocation6 [shape = 's32[1]{0}', space=sflag, size = 0x4, scoped, tag = 'scoped memory for tpu_custom_call.1']
    #allocation7 [shape = 'u8[2359296]{0}', space=vmem, size = 0x240000, scoped, tag = 'input window, operand 2, single buffered']
    #allocation8 [shape = 's32[1]{0}', space=sflag, size = 0x4, scoped, tag = 'scoped memory for tpu_custom_call.1']
    #allocation9 [shape = 'u8[6144]{0}', space=vmem, size = 0x1800, scoped, tag = 'input window, operand 3, single buffered']
    #allocation10 [shape = 'u8[2359296]{0}', space=vmem, size = 0x240000, scoped, tag = 'input window, operand 4, single buffered']
    #allocation11 [shape = 's32[1]{0}', space=sflag, size = 0x4, scoped, tag = 'scoped memory for tpu_custom_call.1']
    #allocation12 [shape = 'u8[1536]{0}', space=vmem, size = 0x800, scoped, tag = 'input window, operand 5, single buffered']
    #allocation13 [shape = 'u8[24576]{0}', space=vmem, size = 0x6000, scoped, tag = 'output window, operand 0, single buffered']
    %12 = vsyncpa [#allocation5], 0
    %13 = vsyncpa [#allocation8], 0
    %14 = vsyncpa [#allocation11], 0
    %15 = vsyncpa [#allocation6], 0
    // Predicated region
    $region2: #{tpu_custom_call.1} parent=1 // pred_check
      _
    $region3: #{tpu_custom_call.1} parent=1 // pred_check_branch
      %17 = sbr.rel (0) target = $region5
    $region4: #{tpu_custom_call.1} parent=1 // pred_region
      %19 = vsyncadd [#allocation5], 0
      %s20 = sshll.u32 %s1, 4
      %s21 = int_to_ptr.hbm [resolvable:$true] %s20
      %s22 = sshll.u32 [#allocation4], 4
      %s23 = int_to_ptr.vmem [resolvable:$true] %s22
      %28 = dma.hbm_to_vmem [thread:$0]  %s21, 768, %s23, [#allocation5], 384, 384, 24
    $region5: #{tpu_custom_call.1} parent=1 // pred_fallthru
      _
    // Predicated region
    $region6: #{tpu_custom_call.1} parent=1 // pred_check
      _
    $region7: #{tpu_custom_call.1} parent=1 // pred_check_branch
      %30 = sbr.rel (0) target = $region9
    $region8: #{tpu_custom_call.1} parent=1 // pred_region
      %32 = vsyncadd [#allocation8], 0
      %s33 = sshll.u32 %s2, 4
      %s34 = int_to_ptr.hbm [resolvable:$true] %s33
      %s35 = sshll.u32 [#allocation7], 4
      %s36 = int_to_ptr.vmem [resolvable:$true] %s35
      %41 = dma.hbm_to_vmem [thread:$0]  %s34, 73728, %s36, [#allocation8], 1536, 1536, 96
    $region9: #{tpu_custom_call.1} parent=1 // pred_fallthru
      _
    // Predicated region
    $region10: #{tpu_custom_call.1} parent=1 // pred_check
      _
    $region11: #{tpu_custom_call.1} parent=1 // pred_check_branch
      %43 = sbr.rel (0) target = $region13
    $region12: #{tpu_custom_call.1} parent=1 // pred_region
      %45 = vsyncadd [#allocation8], 0
      %s47 = sshll.u32 %s3, 4
      %s48 = int_to_ptr.hbm [resolvable:$true] %s47
      %s49 = sshll.u32 [#allocation9], 4
      %s50 = int_to_ptr.vmem [resolvable:$true] %s49
      %52 = dma.hbm_to_vmem [thread:$0]  %s48, 192, %s50, [#allocation8]
    $region13: #{tpu_custom_call.1} parent=1 // pred_fallthru
      _
    // Predicated region
    $region14: #{tpu_custom_call.1} parent=1 // pred_check
      _
    $region15: #{tpu_custom_call.1} parent=1 // pred_check_branch
      %54 = sbr.rel (0) target = $region17
    $region16: #{tpu_custom_call.1} parent=1 // pred_region
      %56 = vsyncadd [#allocation11], 0
      %s57 = sshll.u32 %s4, 4
      %s58 = int_to_ptr.hbm [resolvable:$true] %s57
      %s59 = sshll.u32 [#allocation10], 4
      %s60 = int_to_ptr.vmem [resolvable:$true] %s59
      %65 = dma.hbm_to_vmem [thread:$0]  %s58, 73728, %s60, [#allocation11], 384, 384, 24
    $region17: #{tpu_custom_call.1} parent=1 // pred_fallthru
      _
    // Predicated region
    $region18: #{tpu_custom_call.1} parent=1 // pred_check
      _
    $region19: #{tpu_custom_call.1} parent=1 // pred_check_branch
      %67 = sbr.rel (0) target = $region21
    $region20: #{tpu_custom_call.1} parent=1 // pred_region
      %69 = vsyncadd [#allocation11], 0
      %s71 = sshll.u32 %s5, 4
      %s72 = int_to_ptr.hbm [resolvable:$true] %s71
      %s73 = sshll.u32 [#allocation12], 4
      %s74 = int_to_ptr.vmem [resolvable:$true] %s73
      %76 = dma.hbm_to_vmem [thread:$0]  %s72, 48, %s74, [#allocation11]
    $region21: #{tpu_custom_call.1} parent=1 // pred_fallthru
      _
    // Predicated region
    $region22: #{tpu_custom_call.1} parent=1 // pred_check
      _
    $region23: #{tpu_custom_call.1} parent=1 // pred_check_branch
      %78 = sbr.rel (0) target = $region25
    $region24: #{tpu_custom_call.1} parent=1 // pred_region
      %80 = dma.done [#allocation5], 768
    $region25: #{tpu_custom_call.1} parent=1 // pred_fallthru
      _
    // Predicated region
    $region26: #{tpu_custom_call.1} parent=1 // pred_check
      _
    $region27: #{tpu_custom_call.1} parent=1 // pred_check_branch
      %82 = sbr.rel (0) target = $region29
    $region28: #{tpu_custom_call.1} parent=1 // pred_region
      %84 = dma.done [#allocation8], 73728
    $region29: #{tpu_custom_call.1} parent=1 // pred_fallthru
      _
    // Predicated region
    $region30: #{tpu_custom_call.1} parent=1 // pred_check
      _
    $region31: #{tpu_custom_call.1} parent=1 // pred_check_branch
      %86 = sbr.rel (0) target = $region33
    $region32: #{tpu_custom_call.1} parent=1 // pred_region
      %88 = dma.done [#allocation8], 192
    $region33: #{tpu_custom_call.1} parent=1 // pred_fallthru
      _
    // Predicated region
    $region34: #{tpu_custom_call.1} parent=1 // pred_check
      _
    $region35: #{tpu_custom_call.1} parent=1 // pred_check_branch
      %90 = sbr.rel (0) target = $region37
    $region36: #{tpu_custom_call.1} parent=1 // pred_region
      %92 = dma.done [#allocation11], 73728
    $region37: #{tpu_custom_call.1} parent=1 // pred_fallthru
      _
    // Predicated region
    $region38: #{tpu_custom_call.1} parent=1 // pred_check
      _
    $region39: #{tpu_custom_call.1} parent=1 // pred_check_branch
      %94 = sbr.rel (0) target = $region41
    $region40: #{tpu_custom_call.1} parent=1 // pred_region
      %96 = dma.done [#allocation11], 48
    $region41: #{tpu_custom_call.1} parent=1 // pred_fallthru
      _
    %v97 = vld [vmem:[#allocation4] sm:$0xff]
    %v98 = vld [vmem:[#allocation4 + $0x8] sm:$0xff]
    %v99 = vld [vmem:[#allocation4 + $0x10] sm:$0xff]
    %v100 = vld [vmem:[#allocation4 + $0x18] sm:$0xff]
    %v101 = vld [vmem:[#allocation4 + $0x20] sm:$0xff]
    %v102 = vld [vmem:[#allocation4 + $0x28] sm:$0xff]
    %v103 = vld [vmem:[#allocation7] sm:$0xff]
    %v104 = vld [vmem:[#allocation7 + $0x8] sm:$0xff]
    %v105 = vld [vmem:[#allocation7 + $0x10] sm:$0xff]
    %v106 = vld [vmem:[#allocation7 + $0x18] sm:$0xff]
    %v107 = vld [vmem:[#allocation7 + $0x20] sm:$0xff]
    %v108 = vld [vmem:[#allocation7 + $0x28] sm:$0xff]
    %v109 = vld [vmem:[#allocation7 + $0x30] sm:$0xff]
    %v110 = vld [vmem:[#allocation7 + $0x38] sm:$0xff]
    %v111 = vld [vmem:[#allocation7 + $0x40] sm:$0xff]
    %v112 = vld [vmem:[#allocation7 + $0x48] sm:$0xff]
    %v113 = vld [vmem:[#allocation7 + $0x50] sm:$0xff]
    %v114 = vld [vmem:[#allocation7 + $0x58] sm:$0xff]
    %v115 = vld [vmem:[#allocation7 + $0x60] sm:$0xff]
    %v116 = vld [vmem:[#allocation7 + $0x68] sm:$0xff]
    %v117 = vld [vmem:[#allocation7 + $0x70] sm:$0xff]
    %v118 = vld [vmem:[#allocation7 + $0x78] sm:$0xff]
    %v119 = vld [vmem:[#allocation7 + $0x80] sm:$0xff]
    %v120 = vld [vmem:[#allocation7 + $0x88] sm:$0xff]
    %v121 = vld [vmem:[#allocation7 + $0x90] sm:$0xff]
    %v122 = vld [vmem:[#allocation7 + $0x98] sm:$0xff]
    %v123 = vld [vmem:[#allocation7 + $0xa0] sm:$0xff]
    %v124 = vld [vmem:[#allocation7 + $0xa8] sm:$0xff]
    %v125 = vld [vmem:[#allocation7 + $0xb0] sm:$0xff]
    %v126 = vld [vmem:[#allocation7 + $0xb8] sm:$0xff]
    %v127 = vld [vmem:[#allocation7 + $0xc0] sm:$0xff]
    %v128 = vld [vmem:[#allocation7 + $0xc8] sm:$0xff]
    %v129 = vld [vmem:[#allocation7 + $0xd0] sm:$0xff]
    %v130 = vld [vmem:[#allocation7 + $0xd8] sm:$0xff]
    %v131 = vld [vmem:[#allocation7 + $0xe0] sm:$0xff]
    %v132 = vld [vmem:[#allocation7 + $0xe8] sm:$0xff]
    %v133 = vld [vmem:[#allocation7 + $0xf0] sm:$0xff]
    %v134 = vld [vmem:[#allocation7 + $0xf8] sm:$0xff]
    %v135 = vld [vmem:[#allocation7 + $0x100] sm:$0xff]
    %v136 = vld [vmem:[#allocation7 + $0x108] sm:$0xff]
    %v137 = vld [vmem:[#allocation7 + $0x110] sm:$0xff]
    %v138 = vld [vmem:[#allocation7 + $0x118] sm:$0xff]
    %v139 = vld [vmem:[#allocation7 + $0x120] sm:$0xff]
    %v140 = vld [vmem:[#allocation7 + $0x128] sm:$0xff]
    %v141 = vld [vmem:[#allocation7 + $0x130] sm:$0xff]
    %v142 = vld [vmem:[#allocation7 + $0x138] sm:$0xff]
    %v143 = vld [vmem:[#allocation7 + $0x140] sm:$0xff]
    %v144 = vld [vmem:[#allocation7 + $0x148] sm:$0xff]
    %v145 = vld [vmem:[#allocation7 + $0x150] sm:$0xff]
    %v146 = vld [vmem:[#allocation7 + $0x158] sm:$0xff]
    %v147 = vld [vmem:[#allocation7 + $0x160] sm:$0xff]
    %v148 = vld [vmem:[#allocation7 + $0x168] sm:$0xff]
    %v149 = vld [vmem:[#allocation7 + $0x170] sm:$0xff]
    %v150 = vld [vmem:[#allocation7 + $0x178] sm:$0xff]
    %v151 = vld [vmem:[#allocation7 + $0x180] sm:$0xff]
    %v152 = vld [vmem:[#allocation7 + $0x188] sm:$0xff]
    %v153 = vld [vmem:[#allocation7 + $0x190] sm:$0xff]
    %v154 = vld [vmem:[#allocation7 + $0x198] sm:$0xff]
    %v155 = vld [vmem:[#allocation7 + $0x1a0] sm:$0xff]
    %v156 = vld [vmem:[#allocation7 + $0x1a8] sm:$0xff]
    %v157 = vld [vmem:[#allocation7 + $0x1b0] sm:$0xff]
    %v158 = vld [vmem:[#allocation7 + $0x1b8] sm:$0xff]
    %v159 = vld [vmem:[#allocation7 + $0x1c0] sm:$0xff]
    %v160 = vld [vmem:[#allocation7 + $0x1c8] sm:$0xff]
    %v161 = vld [vmem:[#allocation7 + $0x1d0] sm:$0xff]
    %v162 = vld [vmem:[#allocation7 + $0x1d8] sm:$0xff]
    %v163 = vld [vmem:[#allocation7 + $0x1e0] sm:$0xff]
    %v164 = vld [vmem:[#allocation7 + $0x1e8] sm:$0xff]
    %v165 = vld [vmem:[#allocation7 + $0x1f0] sm:$0xff]
    %v166 = vld [vmem:[#allocation7 + $0x1f8] sm:$0xff]
    %v167 = vld [vmem:[#allocation7 + $0x200] sm:$0xff]
    %v168 = vld [vmem:[#allocation7 + $0x208] sm:$0xff]
    %v169 = vld [vmem:[#allocation7 + $0x210] sm:$0xff]
    %v170 = vld [vmem:[#allocation7 + $0x218] sm:$0xff]
    %v171 = vld [vmem:[#allocation7 + $0x220] sm:$0xff]
    %v172 = vld [vmem:[#allocation7 + $0x228] sm:$0xff]
    %v173 = vld [vmem:[#allocation7 + $0x230] sm:$0xff]
    %v174 = vld [vmem:[#allocation7 + $0x238] sm:$0xff]
    %v175 = vld [vmem:[#allocation7 + $0x240] sm:$0xff]
    %v176 = vld [vmem:[#allocation7 + $0x248] sm:$0xff]
    %v177 = vld [vmem:[#allocation7 + $0x250] sm:$0xff]
    %v178 = vld [vmem:[#allocation7 + $0x258] sm:$0xff]
    %v179 = vld [vmem:[#allocation7 + $0x260] sm:$0xff]
    %v180 = vld [vmem:[#allocation7 + $0x268] sm:$0xff]
    %v181 = vld [vmem:[#allocation7 + $0x270] sm:$0xff]
    %v182 = vld [vmem:[#allocation7 + $0x278] sm:$0xff]
    %v183 = vld [vmem:[#allocation7 + $0x280] sm:$0xff]
    %v184 = vld [vmem:[#allocation7 + $0x288] sm:$0xff]
    %v185 = vld [vmem:[#allocation7 + $0x290] sm:$0xff]
    %v186 = vld [vmem:[#allocation7 + $0x298] sm:$0xff]
    %v187 = vld [vmem:[#allocation7 + $0x2a0] sm:$0xff]
    %v188 = vld [vmem:[#allocation7 + $0x2a8] sm:$0xff]
    %v189 = vld [vmem:[#allocation7 + $0x2b0] sm:$0xff]
    %v190 = vld [vmem:[#allocation7 + $0x2b8] sm:$0xff]
    %v191 = vld [vmem:[#allocation7 + $0x2c0] sm:$0xff]
    %v192 = vld [vmem:[#allocation7 + $0x2c8] sm:$0xff]
    %v193 = vld [vmem:[#allocation7 + $0x2d0] sm:$0xff]
    %v194 = vld [vmem:[#allocation7 + $0x2d8] sm:$0xff]
    %v195 = vld [vmem:[#allocation7 + $0x2e0] sm:$0xff]
    %v196 = vld [vmem:[#allocation7 + $0x2e8] sm:$0xff]
    %v197 = vld [vmem:[#allocation7 + $0x2f0] sm:$0xff]
    %v198 = vld [vmem:[#allocation7 + $0x2f8] sm:$0xff]
    %v199 = vld [vmem:[#allocation7 + $0x300] sm:$0xff]
    %v200 = vld [vmem:[#allocation7 + $0x308] sm:$0xff]
    %v201 = vld [vmem:[#allocation7 + $0x310] sm:$0xff]
    %v202 = vld [vmem:[#allocation7 + $0x318] sm:$0xff]
    %v203 = vld [vmem:[#allocation7 + $0x320] sm:$0xff]
    %v204 = vld [vmem:[#allocation7 + $0x328] sm:$0xff]
    %v205 = vld [vmem:[#allocation7 + $0x330] sm:$0xff]
    %v206 = vld [vmem:[#allocation7 + $0x338] sm:$0xff]
    %v207 = vld [vmem:[#allocation7 + $0x340] sm:$0xff]
    %v208 = vld [vmem:[#allocation7 + $0x348] sm:$0xff]
    %v209 = vld [vmem:[#allocation7 + $0x350] sm:$0xff]
    %v210 = vld [vmem:[#allocation7 + $0x358] sm:$0xff]
    %v211 = vld [vmem:[#allocation7 + $0x360] sm:$0xff]
    %v212 = vld [vmem:[#allocation7 + $0x368] sm:$0xff]
    %v213 = vld [vmem:[#allocation7 + $0x370] sm:$0xff]
    %v214 = vld [vmem:[#allocation7 + $0x378] sm:$0xff]
    %v215 = vld [vmem:[#allocation7 + $0x380] sm:$0xff]
    %v216 = vld [vmem:[#allocation7 + $0x388] sm:$0xff]
    %v217 = vld [vmem:[#allocation7 + $0x390] sm:$0xff]
    %v218 = vld [vmem:[#allocation7 + $0x398] sm:$0xff]
    %v219 = vld [vmem:[#allocation7 + $0x3a0] sm:$0xff]
    %v220 = vld [vmem:[#allocation7 + $0x3a8] sm:$0xff]
    %v221 = vld [vmem:[#allocation7 + $0x3b0] sm:$0xff]
    %v222 = vld [vmem:[#allocation7 + $0x3b8] sm:$0xff]
    %v223 = vld [vmem:[#allocation7 + $0x3c0] sm:$0xff]
    %v224 = vld [vmem:[#allocation7 + $0x3c8] sm:$0xff]
    %v225 = vld [vmem:[#allocation7 + $0x3d0] sm:$0xff]
    %v226 = vld [vmem:[#allocation7 + $0x3d8] sm:$0xff]
    %v227 = vld [vmem:[#allocation7 + $0x3e0] sm:$0xff]
    %v228 = vld [vmem:[#allocation7 + $0x3e8] sm:$0xff]
    %v229 = vld [vmem:[#allocation7 + $0x3f0] sm:$0xff]
    %v230 = vld [vmem:[#allocation7 + $0x3f8] sm:$0xff]
    %v231 = vld [vmem:[#allocation7 + $0x400] sm:$0xff]
    %v232 = vld [vmem:[#allocation7 + $0x408] sm:$0xff]
    %v233 = vld [vmem:[#allocation7 + $0x410] sm:$0xff]
    %v234 = vld [vmem:[#allocation7 + $0x418] sm:$0xff]
    %v235 = vld [vmem:[#allocation7 + $0x420] sm:$0xff]
    %v236 = vld [vmem:[#allocation7 + $0x428] sm:$0xff]
    %v237 = vld [vmem:[#allocation7 + $0x430] sm:$0xff]
    %v238 = vld [vmem:[#allocation7 + $0x438] sm:$0xff]
    %v239 = vld [vmem:[#allocation7 + $0x440] sm:$0xff]
    %v240 = vld [vmem:[#allocation7 + $0x448] sm:$0xff]
    %v241 = vld [vmem:[#allocation7 + $0x450] sm:$0xff]
    %v242 = vld [vmem:[#allocation7 + $0x458] sm:$0xff]
    %v243 = vld [vmem:[#allocation7 + $0x460] sm:$0xff]
    %v244 = vld [vmem:[#allocation7 + $0x468] sm:$0xff]
    %v245 = vld [vmem:[#allocation7 + $0x470] sm:$0xff]
    %v246 = vld [vmem:[#allocation7 + $0x478] sm:$0xff]
    %v247 = vld [vmem:[#allocation7 + $0x480] sm:$0xff]
    %v248 = vld [vmem:[#allocation7 + $0x488] sm:$0xff]
    %v249 = vld [vmem:[#allocation7 + $0x490] sm:$0xff]
    %v250 = vld [vmem:[#allocation7 + $0x498] sm:$0xff]
    %v251 = vld [vmem:[#allocation7 + $0x4a0] sm:$0xff]
    %v252 = vld [vmem:[#allocation7 + $0x4a8] sm:$0xff]
    %v253 = vld [vmem:[#allocation7 + $0x4b0] sm:$0xff]
    %v254 = vld [vmem:[#allocation7 + $0x4b8] sm:$0xff]
    %v255 = vld [vmem:[#allocation7 + $0x4c0] sm:$0xff]
    %v256 = vld [vmem:[#allocation7 + $0x4c8] sm:$0xff]
    %v257 = vld [vmem:[#allocation7 + $0x4d0] sm:$0xff]
    %v258 = vld [vmem:[#allocation7 + $0x4d8] sm:$0xff]
    %v259 = vld [vmem:[#allocation7 + $0x4e0] sm:$0xff]
    %v260 = vld [vmem:[#allocation7 + $0x4e8] sm:$0xff]
    %v261 = vld [vmem:[#allocation7 + $0x4f0] sm:$0xff]
    %v262 = vld [vmem:[#allocation7 + $0x4f8] sm:$0xff]
    %v263 = vld [vmem:[#allocation7 + $0x500] sm:$0xff]
    %v264 = vld [vmem:[#allocation7 + $0x508] sm:$0xff]
    %v265 = vld [vmem:[#allocation7 + $0x510] sm:$0xff]
    %v266 = vld [vmem:[#allocation7 + $0x518] sm:$0xff]
    %v267 = vld [vmem:[#allocation7 + $0x520] sm:$0xff]
    %v268 = vld [vmem:[#allocation7 + $0x528] sm:$0xff]
    %v269 = vld [vmem:[#allocation7 + $0x530] sm:$0xff]
    %v270 = vld [vmem:[#allocation7 + $0x538] sm:$0xff]
    %v271 = vld [vmem:[#allocation7 + $0x540] sm:$0xff]
    %v272 = vld [vmem:[#allocation7 + $0x548] sm:$0xff]
    %v273 = vld [vmem:[#allocation7 + $0x550] sm:$0xff]
    %v274 = vld [vmem:[#allocation7 + $0x558] sm:$0xff]
    %v275 = vld [vmem:[#allocation7 + $0x560] sm:$0xff]
    %v276 = vld [vmem:[#allocation7 + $0x568] sm:$0xff]
    %v277 = vld [vmem:[#allocation7 + $0x570] sm:$0xff]
    %v278 = vld [vmem:[#allocation7 + $0x578] sm:$0xff]
    %v279 = vld [vmem:[#allocation7 + $0x580] sm:$0xff]
    %v280 = vld [vmem:[#allocation7 + $0x588] sm:$0xff]
    %v281 = vld [vmem:[#allocation7 + $0x590] sm:$0xff]
    %v282 = vld [vmem:[#allocation7 + $0x598] sm:$0xff]
    %v283 = vld [vmem:[#allocation7 + $0x5a0] sm:$0xff]
    %v284 = vld [vmem:[#allocation7 + $0x5a8] sm:$0xff]
    %v285 = vld [vmem:[#allocation7 + $0x5b0] sm:$0xff]
    %v286 = vld [vmem:[#allocation7 + $0x5b8] sm:$0xff]
    %v287 = vld [vmem:[#allocation7 + $0x5c0] sm:$0xff]
    %v288 = vld [vmem:[#allocation7 + $0x5c8] sm:$0xff]
    %v289 = vld [vmem:[#allocation7 + $0x5d0] sm:$0xff]
    %v290 = vld [vmem:[#allocation7 + $0x5d8] sm:$0xff]
    %v291 = vld [vmem:[#allocation7 + $0x5e0] sm:$0xff]
    %v292 = vld [vmem:[#allocation7 + $0x5e8] sm:$0xff]
    %v293 = vld [vmem:[#allocation7 + $0x5f0] sm:$0xff]
    %v294 = vld [vmem:[#allocation7 + $0x5f8] sm:$0xff]
    %v295 = vld [vmem:[#allocation7 + $0x600] sm:$0xff]
    %v296 = vld [vmem:[#allocation7 + $0x608] sm:$0xff]
    %v297 = vld [vmem:[#allocation7 + $0x610] sm:$0xff]
    %v298 = vld [vmem:[#allocation7 + $0x618] sm:$0xff]
    %v299 = vld [vmem:[#allocation7 + $0x620] sm:$0xff]
    %v300 = vld [vmem:[#allocation7 + $0x628] sm:$0xff]
    %v301 = vld [vmem:[#allocation7 + $0x630] sm:$0xff]
    %v302 = vld [vmem:[#allocation7 + $0x638] sm:$0xff]
    %v303 = vld [vmem:[#allocation7 + $0x640] sm:$0xff]
    %v304 = vld [vmem:[#allocation7 + $0x648] sm:$0xff]
    %v305 = vld [vmem:[#allocation7 + $0x650] sm:$0xff]
    %v306 = vld [vmem:[#allocation7 + $0x658] sm:$0xff]
    %v307 = vld [vmem:[#allocation7 + $0x660] sm:$0xff]
    %v308 = vld [vmem:[#allocation7 + $0x668] sm:$0xff]
    %v309 = vld [vmem:[#allocation7 + $0x670] sm:$0xff]
    %v310 = vld [vmem:[#allocation7 + $0x678] sm:$0xff]
    %v311 = vld [vmem:[#allocation7 + $0x680] sm:$0xff]
    %v312 = vld [vmem:[#allocation7 + $0x688] sm:$0xff]
    %v313 = vld [vmem:[#allocation7 + $0x690] sm:$0xff]
    %v314 = vld [vmem:[#allocation7 + $0x698] sm:$0xff]
    %v315 = vld [vmem:[#allocation7 + $0x6a0] sm:$0xff]
    %v316 = vld [vmem:[#allocation7 + $0x6a8] sm:$0xff]
    %v317 = vld [vmem:[#allocation7 + $0x6b0] sm:$0xff]
    %v318 = vld [vmem:[#allocation7 + $0x6b8] sm:$0xff]
    %v319 = vld [vmem:[#allocation7 + $0x6c0] sm:$0xff]
    %v320 = vld [vmem:[#allocation7 + $0x6c8] sm:$0xff]
    %v321 = vld [vmem:[#allocation7 + $0x6d0] sm:$0xff]
    %v322 = vld [vmem:[#allocation7 + $0x6d8] sm:$0xff]
    %v323 = vld [vmem:[#allocation7 + $0x6e0] sm:$0xff]
    %v324 = vld [vmem:[#allocation7 + $0x6e8] sm:$0xff]
    %v325 = vld [vmem:[#allocation7 + $0x6f0] sm:$0xff]
    %v326 = vld [vmem:[#allocation7 + $0x6f8] sm:$0xff]
    %v327 = vld [vmem:[#allocation7 + $0x700] sm:$0xff]
    %v328 = vld [vmem:[#allocation7 + $0x708] sm:$0xff]
    %v329 = vld [vmem:[#allocation7 + $0x710] sm:$0xff]
    %v330 = vld [vmem:[#allocation7 + $0x718] sm:$0xff]
    %v331 = vld [vmem:[#allocation7 + $0x720] sm:$0xff]
    %v332 = vld [vmem:[#allocation7 + $0x728] sm:$0xff]
    %v333 = vld [vmem:[#allocation7 + $0x730] sm:$0xff]
    %v334 = vld [vmem:[#allocation7 + $0x738] sm:$0xff]
    %v335 = vld [vmem:[#allocation7 + $0x740] sm:$0xff]
    %v336 = vld [vmem:[#allocation7 + $0x748] sm:$0xff]
    %v337 = vld [vmem:[#allocation7 + $0x750] sm:$0xff]
    %v338 = vld [vmem:[#allocation7 + $0x758] sm:$0xff]
    %v339 = vld [vmem:[#allocation7 + $0x760] sm:$0xff]
    %v340 = vld [vmem:[#allocation7 + $0x768] sm:$0xff]
    %v341 = vld [vmem:[#allocation7 + $0x770] sm:$0xff]
    %v342 = vld [vmem:[#allocation7 + $0x778] sm:$0xff]
    %v343 = vld [vmem:[#allocation7 + $0x780] sm:$0xff]
    %v344 = vld [vmem:[#allocation7 + $0x788] sm:$0xff]
    %v345 = vld [vmem:[#allocation7 + $0x790] sm:$0xff]
    %v346 = vld [vmem:[#allocation7 + $0x798] sm:$0xff]
    %v347 = vld [vmem:[#allocation7 + $0x7a0] sm:$0xff]
    %v348 = vld [vmem:[#allocation7 + $0x7a8] sm:$0xff]
    %v349 = vld [vmem:[#allocation7 + $0x7b0] sm:$0xff]
    %v350 = vld [vmem:[#allocation7 + $0x7b8] sm:$0xff]
    %v351 = vld [vmem:[#allocation7 + $0x7c0] sm:$0xff]
    %v352 = vld [vmem:[#allocation7 + $0x7c8] sm:$0xff]
    %v353 = vld [vmem:[#allocation7 + $0x7d0] sm:$0xff]
    %v354 = vld [vmem:[#allocation7 + $0x7d8] sm:$0xff]
    %v355 = vld [vmem:[#allocation7 + $0x7e0] sm:$0xff]
    %v356 = vld [vmem:[#allocation7 + $0x7e8] sm:$0xff]
    %v357 = vld [vmem:[#allocation7 + $0x7f0] sm:$0xff]
    %v358 = vld [vmem:[#allocation7 + $0x7f8] sm:$0xff]
    %v359 = vld [vmem:[#allocation7 + $0x800] sm:$0xff]
    %v360 = vld [vmem:[#allocation7 + $0x808] sm:$0xff]
    %v361 = vld [vmem:[#allocation7 + $0x810] sm:$0xff]
    %v362 = vld [vmem:[#allocation7 + $0x818] sm:$0xff]
    %v363 = vld [vmem:[#allocation7 + $0x820] sm:$0xff]
    %v364 = vld [vmem:[#allocation7 + $0x828] sm:$0xff]
    %v365 = vld [vmem:[#allocation7 + $0x830] sm:$0xff]
    %v366 = vld [vmem:[#allocation7 + $0x838] sm:$0xff]
    %v367 = vld [vmem:[#allocation7 + $0x840] sm:$0xff]
    %v368 = vld [vmem:[#allocation7 + $0x848] sm:$0xff]
    %v369 = vld [vmem:[#allocation7 + $0x850] sm:$0xff]
    %v370 = vld [vmem:[#allocation7 + $0x858] sm:$0xff]
    %v371 = vld [vmem:[#allocation7 + $0x860] sm:$0xff]
    %v372 = vld [vmem:[#allocation7 + $0x868] sm:$0xff]
    %v373 = vld [vmem:[#allocation7 + $0x870] sm:$0xff]
    %v374 = vld [vmem:[#allocation7 + $0x878] sm:$0xff]
    %v375 = vld [vmem:[#allocation7 + $0x880] sm:$0xff]
    %v376 = vld [vmem:[#allocation7 + $0x888] sm:$0xff]
    %v377 = vld [vmem:[#allocation7 + $0x890] sm:$0xff]
    %v378 = vld [vmem:[#allocation7 + $0x898] sm:$0xff]
    %v379 = vld [vmem:[#allocation7 + $0x8a0] sm:$0xff]
    %v380 = vld [vmem:[#allocation7 + $0x8a8] sm:$0xff]
    %v381 = vld [vmem:[#allocation7 + $0x8b0] sm:$0xff]
    %v382 = vld [vmem:[#allocation7 + $0x8b8] sm:$0xff]
    %v383 = vld [vmem:[#allocation7 + $0x8c0] sm:$0xff]
    %v384 = vld [vmem:[#allocation7 + $0x8c8] sm:$0xff]
    %v385 = vld [vmem:[#allocation7 + $0x8d0] sm:$0xff]
    %v386 = vld [vmem:[#allocation7 + $0x8d8] sm:$0xff]
    %v387 = vld [vmem:[#allocation7 + $0x8e0] sm:$0xff]
    %v388 = vld [vmem:[#allocation7 + $0x8e8] sm:$0xff]
    %v389 = vld [vmem:[#allocation7 + $0x8f0] sm:$0xff]
    %v390 = vld [vmem:[#allocation7 + $0x8f8] sm:$0xff]
    %v391 = vld [vmem:[#allocation7 + $0x900] sm:$0xff]
    %v392 = vld [vmem:[#allocation7 + $0x908] sm:$0xff]
    %v393 = vld [vmem:[#allocation7 + $0x910] sm:$0xff]
    %v394 = vld [vmem:[#allocation7 + $0x918] sm:$0xff]
    %v395 = vld [vmem:[#allocation7 + $0x920] sm:$0xff]
    %v396 = vld [vmem:[#allocation7 + $0x928] sm:$0xff]
    %v397 = vld [vmem:[#allocation7 + $0x930] sm:$0xff]
    %v398 = vld [vmem:[#allocation7 + $0x938] sm:$0xff]
    %v399 = vld [vmem:[#allocation7 + $0x940] sm:$0xff]
    %v400 = vld [vmem:[#allocation7 + $0x948] sm:$0xff]
    %v401 = vld [vmem:[#allocation7 + $0x950] sm:$0xff]
    %v402 = vld [vmem:[#allocation7 + $0x958] sm:$0xff]
    %v403 = vld [vmem:[#allocation7 + $0x960] sm:$0xff]
    %v404 = vld [vmem:[#allocation7 + $0x968] sm:$0xff]
    %v405 = vld [vmem:[#allocation7 + $0x970] sm:$0xff]
    %v406 = vld [vmem:[#allocation7 + $0x978] sm:$0xff]
    %v407 = vld [vmem:[#allocation7 + $0x980] sm:$0xff]
    %v408 = vld [vmem:[#allocation7 + $0x988] sm:$0xff]
    %v409 = vld [vmem:[#allocation7 + $0x990] sm:$0xff]
    %v410 = vld [vmem:[#allocation7 + $0x998] sm:$0xff]
    %v411 = vld [vmem:[#allocation7 + $0x9a0] sm:$0xff]
    %v412 = vld [vmem:[#allocation7 + $0x9a8] sm:$0xff]
    %v413 = vld [vmem:[#allocation7 + $0x9b0] sm:$0xff]
    %v414 = vld [vmem:[#allocation7 + $0x9b8] sm:$0xff]
    %v415 = vld [vmem:[#allocation7 + $0x9c0] sm:$0xff]
    %v416 = vld [vmem:[#allocation7 + $0x9c8] sm:$0xff]
    %v417 = vld [vmem:[#allocation7 + $0x9d0] sm:$0xff]
    %v418 = vld [vmem:[#allocation7 + $0x9d8] sm:$0xff]
    %v419 = vld [vmem:[#allocation7 + $0x9e0] sm:$0xff]
    %v420 = vld [vmem:[#allocation7 + $0x9e8] sm:$0xff]
    %v421 = vld [vmem:[#allocation7 + $0x9f0] sm:$0xff]
    %v422 = vld [vmem:[#allocation7 + $0x9f8] sm:$0xff]
    %v423 = vld [vmem:[#allocation7 + $0xa00] sm:$0xff]
    %v424 = vld [vmem:[#allocation7 + $0xa08] sm:$0xff]
    %v425 = vld [vmem:[#allocation7 + $0xa10] sm:$0xff]
    %v426 = vld [vmem:[#allocation7 + $0xa18] sm:$0xff]
    %v427 = vld [vmem:[#allocation7 + $0xa20] sm:$0xff]
    %v428 = vld [vmem:[#allocation7 + $0xa28] sm:$0xff]
    %v429 = vld [vmem:[#allocation7 + $0xa30] sm:$0xff]
    %v430 = vld [vmem:[#allocation7 + $0xa38] sm:$0xff]
    %v431 = vld [vmem:[#allocation7 + $0xa40] sm:$0xff]
    %v432 = vld [vmem:[#allocation7 + $0xa48] sm:$0xff]
    %v433 = vld [vmem:[#allocation7 + $0xa50] sm:$0xff]
    %v434 = vld [vmem:[#allocation7 + $0xa58] sm:$0xff]
    %v435 = vld [vmem:[#allocation7 + $0xa60] sm:$0xff]
    %v436 = vld [vmem:[#allocation7 + $0xa68] sm:$0xff]
    %v437 = vld [vmem:[#allocation7 + $0xa70] sm:$0xff]
    %v438 = vld [vmem:[#allocation7 + $0xa78] sm:$0xff]
    %v439 = vld [vmem:[#allocation7 + $0xa80] sm:$0xff]
    %v440 = vld [vmem:[#allocation7 + $0xa88] sm:$0xff]
    %v441 = vld [vmem:[#allocation7 + $0xa90] sm:$0xff]
    %v442 = vld [vmem:[#allocation7 + $0xa98] sm:$0xff]
    %v443 = vld [vmem:[#allocation7 + $0xaa0] sm:$0xff]
    %v444 = vld [vmem:[#allocation7 + $0xaa8] sm:$0xff]
    %v445 = vld [vmem:[#allocation7 + $0xab0] sm:$0xff]
    %v446 = vld [vmem:[#allocation7 + $0xab8] sm:$0xff]
    %v447 = vld [vmem:[#allocation7 + $0xac0] sm:$0xff]
    %v448 = vld [vmem:[#allocation7 + $0xac8] sm:$0xff]
    %v449 = vld [vmem:[#allocation7 + $0xad0] sm:$0xff]
    %v450 = vld [vmem:[#allocation7 + $0xad8] sm:$0xff]
    %v451 = vld [vmem:[#allocation7 + $0xae0] sm:$0xff]
    %v452 = vld [vmem:[#allocation7 + $0xae8] sm:$0xff]
    %v453 = vld [vmem:[#allocation7 + $0xaf0] sm:$0xff]
    %v454 = vld [vmem:[#allocation7 + $0xaf8] sm:$0xff]
    %v455 = vld [vmem:[#allocation7 + $0xb00] sm:$0xff]
    %v456 = vld [vmem:[#allocation7 + $0xb08] sm:$0xff]
    %v457 = vld [vmem:[#allocation7 + $0xb10] sm:$0xff]
    %v458 = vld [vmem:[#allocation7 + $0xb18] sm:$0xff]
    %v459 = vld [vmem:[#allocation7 + $0xb20] sm:$0xff]
    %v460 = vld [vmem:[#allocation7 + $0xb28] sm:$0xff]
    %v461 = vld [vmem:[#allocation7 + $0xb30] sm:$0xff]
    %v462 = vld [vmem:[#allocation7 + $0xb38] sm:$0xff]
    %v463 = vld [vmem:[#allocation7 + $0xb40] sm:$0xff]
    %v464 = vld [vmem:[#allocation7 + $0xb48] sm:$0xff]
    %v465 = vld [vmem:[#allocation7 + $0xb50] sm:$0xff]
    %v466 = vld [vmem:[#allocation7 + $0xb58] sm:$0xff]
    %v467 = vld [vmem:[#allocation7 + $0xb60] sm:$0xff]
    %v468 = vld [vmem:[#allocation7 + $0xb68] sm:$0xff]
    %v469 = vld [vmem:[#allocation7 + $0xb70] sm:$0xff]
    %v470 = vld [vmem:[#allocation7 + $0xb78] sm:$0xff]
    %v471 = vld [vmem:[#allocation7 + $0xb80] sm:$0xff]
    %v472 = vld [vmem:[#allocation7 + $0xb88] sm:$0xff]
    %v473 = vld [vmem:[#allocation7 + $0xb90] sm:$0xff]
    %v474 = vld [vmem:[#allocation7 + $0xb98] sm:$0xff]
    %v475 = vld [vmem:[#allocation7 + $0xba0] sm:$0xff]
    %v476 = vld [vmem:[#allocation7 + $0xba8] sm:$0xff]
    %v477 = vld [vmem:[#allocation7 + $0xbb0] sm:$0xff]
    %v478 = vld [vmem:[#allocation7 + $0xbb8] sm:$0xff]
    %v479 = vld [vmem:[#allocation7 + $0xbc0] sm:$0xff]
    %v480 = vld [vmem:[#allocation7 + $0xbc8] sm:$0xff]
    %v481 = vld [vmem:[#allocation7 + $0xbd0] sm:$0xff]
    %v482 = vld [vmem:[#allocation7 + $0xbd8] sm:$0xff]
    %v483 = vld [vmem:[#allocation7 + $0xbe0] sm:$0xff]
    %v484 = vld [vmem:[#allocation7 + $0xbe8] sm:$0xff]
    %v485 = vld [vmem:[#allocation7 + $0xbf0] sm:$0xff]
    %v486 = vld [vmem:[#allocation7 + $0xbf8] sm:$0xff]
    %v487 = vld [vmem:[#allocation7 + $0xc00] sm:$0xff]
    %v488 = vld [vmem:[#allocation7 + $0xc08] sm:$0xff]
    %v489 = vld [vmem:[#allocation7 + $0xc10] sm:$0xff]
    %v490 = vld [vmem:[#allocation7 + $0xc18] sm:$0xff]
    %v491 = vld [vmem:[#allocation7 + $0xc20] sm:$0xff]
    %v492 = vld [vmem:[#allocation7 + $0xc28] sm:$0xff]
    %v493 = vld [vmem:[#allocation7 + $0xc30] sm:$0xff]
    %v494 = vld [vmem:[#allocation7 + $0xc38] sm:$0xff]
    %v495 = vld [vmem:[#allocation7 + $0xc40] sm:$0xff]
    %v496 = vld [vmem:[#allocation7 + $0xc48] sm:$0xff]
    %v497 = vld [vmem:[#allocation7 + $0xc50] sm:$0xff]
    %v498 = vld [vmem:[#allocation7 + $0xc58] sm:$0xff]
    %v499 = vld [vmem:[#allocation7 + $0xc60] sm:$0xff]
    %v500 = vld [vmem:[#allocation7 + $0xc68] sm:$0xff]
    %v501 = vld [vmem:[#allocation7 + $0xc70] sm:$0xff]
    %v502 = vld [vmem:[#allocation7 + $0xc78] sm:$0xff]
    %v503 = vld [vmem:[#allocation7 + $0xc80] sm:$0xff]
    %v504 = vld [vmem:[#allocation7 + $0xc88] sm:$0xff]
    %v505 = vld [vmem:[#allocation7 + $0xc90] sm:$0xff]
    %v506 = vld [vmem:[#allocation7 + $0xc98] sm:$0xff]
    %v507 = vld [vmem:[#allocation7 + $0xca0] sm:$0xff]
    %v508 = vld [vmem:[#allocation7 + $0xca8] sm:$0xff]
    %v509 = vld [vmem:[#allocation7 + $0xcb0] sm:$0xff]
    %v510 = vld [vmem:[#allocation7 + $0xcb8] sm:$0xff]
    %v511 = vld [vmem:[#allocation7 + $0xcc0] sm:$0xff]
    %v512 = vld [vmem:[#allocation7 + $0xcc8] sm:$0xff]
    %v513 = vld [vmem:[#allocation7 + $0xcd0] sm:$0xff]
    %v514 = vld [vmem:[#allocation7 + $0xcd8] sm:$0xff]
    %v515 = vld [vmem:[#allocation7 + $0xce0] sm:$0xff]
    %v516 = vld [vmem:[#allocation7 + $0xce8] sm:$0xff]
    %v517 = vld [vmem:[#allocation7 + $0xcf0] sm:$0xff]
    %v518 = vld [vmem:[#allocation7 + $0xcf8] sm:$0xff]
    %v519 = vld [vmem:[#allocation7 + $0xd00] sm:$0xff]
    %v520 = vld [vmem:[#allocation7 + $0xd08] sm:$0xff]
    %v521 = vld [vmem:[#allocation7 + $0xd10] sm:$0xff]
    %v522 = vld [vmem:[#allocation7 + $0xd18] sm:$0xff]
    %v523 = vld [vmem:[#allocation7 + $0xd20] sm:$0xff]
    %v524 = vld [vmem:[#allocation7 + $0xd28] sm:$0xff]
    %v525 = vld [vmem:[#allocation7 + $0xd30] sm:$0xff]
    %v526 = vld [vmem:[#allocation7 + $0xd38] sm:$0xff]
    %v527 = vld [vmem:[#allocation7 + $0xd40] sm:$0xff]
    %v528 = vld [vmem:[#allocation7 + $0xd48] sm:$0xff]
    %v529 = vld [vmem:[#allocation7 + $0xd50] sm:$0xff]
    %v530 = vld [vmem:[#allocation7 + $0xd58] sm:$0xff]
    %v531 = vld [vmem:[#allocation7 + $0xd60] sm:$0xff]
    %v532 = vld [vmem:[#allocation7 + $0xd68] sm:$0xff]
    %v533 = vld [vmem:[#allocation7 + $0xd70] sm:$0xff]
    %v534 = vld [vmem:[#allocation7 + $0xd78] sm:$0xff]
    %v535 = vld [vmem:[#allocation7 + $0xd80] sm:$0xff]
    %v536 = vld [vmem:[#allocation7 + $0xd88] sm:$0xff]
    %v537 = vld [vmem:[#allocation7 + $0xd90] sm:$0xff]
    %v538 = vld [vmem:[#allocation7 + $0xd98] sm:$0xff]
    %v539 = vld [vmem:[#allocation7 + $0xda0] sm:$0xff]
    %v540 = vld [vmem:[#allocation7 + $0xda8] sm:$0xff]
    %v541 = vld [vmem:[#allocation7 + $0xdb0] sm:$0xff]
    %v542 = vld [vmem:[#allocation7 + $0xdb8] sm:$0xff]
    %v543 = vld [vmem:[#allocation7 + $0xdc0] sm:$0xff]
    %v544 = vld [vmem:[#allocation7 + $0xdc8] sm:$0xff]
    %v545 = vld [vmem:[#allocation7 + $0xdd0] sm:$0xff]
    %v546 = vld [vmem:[#allocation7 + $0xdd8] sm:$0xff]
    %v547 = vld [vmem:[#allocation7 + $0xde0] sm:$0xff]
    %v548 = vld [vmem:[#allocation7 + $0xde8] sm:$0xff]
    %v549 = vld [vmem:[#allocation7 + $0xdf0] sm:$0xff]
    %v550 = vld [vmem:[#allocation7 + $0xdf8] sm:$0xff]
    %v551 = vld [vmem:[#allocation7 + $0xe00] sm:$0xff]
    %v552 = vld [vmem:[#allocation7 + $0xe08] sm:$0xff]
    %v553 = vld [vmem:[#allocation7 + $0xe10] sm:$0xff]
    %v554 = vld [vmem:[#allocation7 + $0xe18] sm:$0xff]
    %v555 = vld [vmem:[#allocation7 + $0xe20] sm:$0xff]
    %v556 = vld [vmem:[#allocation7 + $0xe28] sm:$0xff]
    %v557 = vld [vmem:[#allocation7 + $0xe30] sm:$0xff]
    %v558 = vld [vmem:[#allocation7 + $0xe38] sm:$0xff]
    %v559 = vld [vmem:[#allocation7 + $0xe40] sm:$0xff]
    %v560 = vld [vmem:[#allocation7 + $0xe48] sm:$0xff]
    %v561 = vld [vmem:[#allocation7 + $0xe50] sm:$0xff]
    %v562 = vld [vmem:[#allocation7 + $0xe58] sm:$0xff]
    %v563 = vld [vmem:[#allocation7 + $0xe60] sm:$0xff]
    %v564 = vld [vmem:[#allocation7 + $0xe68] sm:$0xff]
    %v565 = vld [vmem:[#allocation7 + $0xe70] sm:$0xff]
    %v566 = vld [vmem:[#allocation7 + $0xe78] sm:$0xff]
    %v567 = vld [vmem:[#allocation7 + $0xe80] sm:$0xff]
    %v568 = vld [vmem:[#allocation7 + $0xe88] sm:$0xff]
    %v569 = vld [vmem:[#allocation7 + $0xe90] sm:$0xff]
    %v570 = vld [vmem:[#allocation7 + $0xe98] sm:$0xff]
    %v571 = vld [vmem:[#allocation7 + $0xea0] sm:$0xff]
    %v572 = vld [vmem:[#allocation7 + $0xea8] sm:$0xff]
    %v573 = vld [vmem:[#allocation7 + $0xeb0] sm:$0xff]
    %v574 = vld [vmem:[#allocation7 + $0xeb8] sm:$0xff]
    %v575 = vld [vmem:[#allocation7 + $0xec0] sm:$0xff]
    %v576 = vld [vmem:[#allocation7 + $0xec8] sm:$0xff]
    %v577 = vld [vmem:[#allocation7 + $0xed0] sm:$0xff]
    %v578 = vld [vmem:[#allocation7 + $0xed8] sm:$0xff]
    %v579 = vld [vmem:[#allocation7 + $0xee0] sm:$0xff]
    %v580 = vld [vmem:[#allocation7 + $0xee8] sm:$0xff]
    %v581 = vld [vmem:[#allocation7 + $0xef0] sm:$0xff]
    %v582 = vld [vmem:[#allocation7 + $0xef8] sm:$0xff]
    %v583 = vld [vmem:[#allocation7 + $0xf00] sm:$0xff]
    %v584 = vld [vmem:[#allocation7 + $0xf08] sm:$0xff]
    %v585 = vld [vmem:[#allocation7 + $0xf10] sm:$0xff]
    %v586 = vld [vmem:[#allocation7 + $0xf18] sm:$0xff]
    %v587 = vld [vmem:[#allocation7 + $0xf20] sm:$0xff]
    %v588 = vld [vmem:[#allocation7 + $0xf28] sm:$0xff]
    %v589 = vld [vmem:[#allocation7 + $0xf30] sm:$0xff]
    %v590 = vld [vmem:[#allocation7 + $0xf38] sm:$0xff]
    %v591 = vld [vmem:[#allocation7 + $0xf40] sm:$0xff]
    %v592 = vld [vmem:[#allocation7 + $0xf48] sm:$0xff]
    %v593 = vld [vmem:[#allocation7 + $0xf50] sm:$0xff]
    %v594 = vld [vmem:[#allocation7 + $0xf58] sm:$0xff]
    %v595 = vld [vmem:[#allocation7 + $0xf60] sm:$0xff]
    %v596 = vld [vmem:[#allocation7 + $0xf68] sm:$0xff]
    %v597 = vld [vmem:[#allocation7 + $0xf70] sm:$0xff]
    %v598 = vld [vmem:[#allocation7 + $0xf78] sm:$0xff]
    %v599 = vld [vmem:[#allocation7 + $0xf80] sm:$0xff]
    %v600 = vld [vmem:[#allocation7 + $0xf88] sm:$0xff]
    %v601 = vld [vmem:[#allocation7 + $0xf90] sm:$0xff]
    %v602 = vld [vmem:[#allocation7 + $0xf98] sm:$0xff]
    %v603 = vld [vmem:[#allocation7 + $0xfa0] sm:$0xff]
    %v604 = vld [vmem:[#allocation7 + $0xfa8] sm:$0xff]
    %v605 = vld [vmem:[#allocation7 + $0xfb0] sm:$0xff]
    %v606 = vld [vmem:[#allocation7 + $0xfb8] sm:$0xff]
    %v607 = vld [vmem:[#allocation7 + $0xfc0] sm:$0xff]
    %v608 = vld [vmem:[#allocation7 + $0xfc8] sm:$0xff]
    %v609 = vld [vmem:[#allocation7 + $0xfd0] sm:$0xff]
    %v610 = vld [vmem:[#allocation7 + $0xfd8] sm:$0xff]
    %v611 = vld [vmem:[#allocation7 + $0xfe0] sm:$0xff]
    %v612 = vld [vmem:[#allocation7 + $0xfe8] sm:$0xff]
    %v613 = vld [vmem:[#allocation7 + $0xff0] sm:$0xff]
    %v614 = vld [vmem:[#allocation7 + $0xff8] sm:$0xff]
    %v615 = vld [vmem:[#allocation7 + $0x1000] sm:$0xff]
    %v616 = vld [vmem:[#allocation7 + $0x1008] sm:$0xff]
    %v617 = vld [vmem:[#allocation7 + $0x1010] sm:$0xff]
    %v618 = vld [vmem:[#allocation7 + $0x1018] sm:$0xff]
    %v619 = vld [vmem:[#allocation7 + $0x1020] sm:$0xff]
    %v620 = vld [vmem:[#allocation7 + $0x1028] sm:$0xff]
    %v621 = vld [vmem:[#allocation7 + $0x1030] sm:$0xff]
    %v622 = vld [vmem:[#allocation7 + $0x1038] sm:$0xff]
    %v623 = vld [vmem:[#allocation7 + $0x1040] sm:$0xff]
    %v624 = vld [vmem:[#allocation7 + $0x1048] sm:$0xff]
    %v625 = vld [vmem:[#allocation7 + $0x1050] sm:$0xff]
    %v626 = vld [vmem:[#allocation7 + $0x1058] sm:$0xff]
    %v627 = vld [vmem:[#allocation7 + $0x1060] sm:$0xff]
    %v628 = vld [vmem:[#allocation7 + $0x1068] sm:$0xff]
    %v629 = vld [vmem:[#allocation7 + $0x1070] sm:$0xff]
    %v630 = vld [vmem:[#allocation7 + $0x1078] sm:$0xff]
    %v631 = vld [vmem:[#allocation7 + $0x1080] sm:$0xff]
    %v632 = vld [vmem:[#allocation7 + $0x1088] sm:$0xff]
    %v633 = vld [vmem:[#allocation7 + $0x1090] sm:$0xff]
    %v634 = vld [vmem:[#allocation7 + $0x1098] sm:$0xff]
    %v635 = vld [vmem:[#allocation7 + $0x10a0] sm:$0xff]
    %v636 = vld [vmem:[#allocation7 + $0x10a8] sm:$0xff]
    %v637 = vld [vmem:[#allocation7 + $0x10b0] sm:$0xff]
    %v638 = vld [vmem:[#allocation7 + $0x10b8] sm:$0xff]
    %v639 = vld [vmem:[#allocation7 + $0x10c0] sm:$0xff]
    %v640 = vld [vmem:[#allocation7 + $0x10c8] sm:$0xff]
    %v641 = vld [vmem:[#allocation7 + $0x10d0] sm:$0xff]
    %v642 = vld [vmem:[#allocation7 + $0x10d8] sm:$0xff]
    %v643 = vld [vmem:[#allocation7 + $0x10e0] sm:$0xff]
    %v644 = vld [vmem:[#allocation7 + $0x10e8] sm:$0xff]
    %v645 = vld [vmem:[#allocation7 + $0x10f0] sm:$0xff]
    %v646 = vld [vmem:[#allocation7 + $0x10f8] sm:$0xff]
    %v647 = vld [vmem:[#allocation7 + $0x1100] sm:$0xff]
    %v648 = vld [vmem:[#allocation7 + $0x1108] sm:$0xff]
    %v649 = vld [vmem:[#allocation7 + $0x1110] sm:$0xff]
    %v650 = vld [vmem:[#allocation7 + $0x1118] sm:$0xff]
    %v651 = vld [vmem:[#allocation7 + $0x1120] sm:$0xff]
    %v652 = vld [vmem:[#allocation7 + $0x1128] sm:$0xff]
    %v653 = vld [vmem:[#allocation7 + $0x1130] sm:$0xff]
    %v654 = vld [vmem:[#allocation7 + $0x1138] sm:$0xff]
    %v655 = vld [vmem:[#allocation7 + $0x1140] sm:$0xff]
    %v656 = vld [vmem:[#allocation7 + $0x1148] sm:$0xff]
    %v657 = vld [vmem:[#allocation7 + $0x1150] sm:$0xff]
    %v658 = vld [vmem:[#allocation7 + $0x1158] sm:$0xff]
    %v659 = vld [vmem:[#allocation7 + $0x1160] sm:$0xff]
    %v660 = vld [vmem:[#allocation7 + $0x1168] sm:$0xff]
    %v661 = vld [vmem:[#allocation7 + $0x1170] sm:$0xff]
    %v662 = vld [vmem:[#allocation7 + $0x1178] sm:$0xff]
    %v663 = vld [vmem:[#allocation7 + $0x1180] sm:$0xff]
    %v664 = vld [vmem:[#allocation7 + $0x1188] sm:$0xff]
    %v665 = vld [vmem:[#allocation7 + $0x1190] sm:$0xff]
    %v666 = vld [vmem:[#allocation7 + $0x1198] sm:$0xff]
    %v667 = vld [vmem:[#allocation7 + $0x11a0] sm:$0xff]
    %v668 = vld [vmem:[#allocation7 + $0x11a8] sm:$0xff]
    %v669 = vld [vmem:[#allocation7 + $0x11b0] sm:$0xff]
    %v670 = vld [vmem:[#allocation7 + $0x11b8] sm:$0xff]
    %v671 = vld [vmem:[#allocation7 + $0x11c0] sm:$0xff]
    %v672 = vld [vmem:[#allocation7 + $0x11c8] sm:$0xff]
    %v673 = vld [vmem:[#allocation7 + $0x11d0] sm:$0xff]
    %v674 = vld [vmem:[#allocation7 + $0x11d8] sm:$0xff]
    %v675 = vld [vmem:[#allocation7 + $0x11e0] sm:$0xff]
    %v676 = vld [vmem:[#allocation7 + $0x11e8] sm:$0xff]
    %v677 = vld [vmem:[#allocation7 + $0x11f0] sm:$0xff]
    %v678 = vld [vmem:[#allocation7 + $0x11f8] sm:$0xff]
    %v679 = vld [vmem:[#allocation9] sm:$0xff]
    %v680 = vld [vmem:[#allocation9 + $0x8] sm:$0xf]
    %v683 = vperm.slane %v679, 0
    %v684 = vperm.slane %v679, 1
    %v685 = vperm.slane %v679, 2
    %v686 = vperm.slane %v679, 3
    %v687 = vperm.slane %v679, 4
    %v688 = vperm.slane %v679, 5
    %v689 = vperm.slane %v679, 6
    %v690 = vperm.slane %v679, 7
    %v691 = vperm.slane %v680, 0
    %v692 = vperm.slane %v680, 1
    %v693 = vperm.slane %v680, 2
    %v694 = vperm.slane %v680, 3
    %707 = vmatpush.msra.mxu0 %v283
    %708 = vmatpush.msra.mxu0 %v271
    %709 = vmatpush.msra.mxu0 %v259
    %710 = vmatpush.msra.mxu0 %v247
    %711 = vmatpush.msra.mxu0 %v235
    %712 = vmatpush.msra.mxu0 %v223
    %713 = vmatpush.msra.mxu0 %v211
    %714 = vmatpush.msra.mxu0 %v199
    %715 = vmatpush.msra.mxu0 %v187
    %716 = vmatpush.msra.mxu0 %v175
    %717 = vmatpush.msra.mxu0 %v163
    %718 = vmatpush.msra.mxu0 %v151
    %719 = vmatpush.msra.mxu0 %v139
    %720 = vmatpush.msra.mxu0 %v127
    %721 = vmatpush.msra.mxu0 %v115
    %722 = vmatpush.msra.mxu0 %v103
    %723 = vmatmul.f32.gmra.mxu0 %v97
    %v724 = vpop.f32.mrf.mxu0
    %v725 = vadd.f32 %v683, %v724
    %726 = vmatmul.f32.gmra.mxu0 %v100
    %v727 = vpop.f32.mrf.mxu0
    %v728 = vadd.f32 %v683, %v727
    %729 = vdwg.mxu0
    %730 = vmatpush.msra.mxu0 %v475
    %731 = vmatpush.msra.mxu0 %v463
    %732 = vmatpush.msra.mxu0 %v451
    %733 = vmatpush.msra.mxu0 %v439
    %734 = vmatpush.msra.mxu0 %v427
    %735 = vmatpush.msra.mxu0 %v415
    %736 = vmatpush.msra.mxu0 %v403
    %737 = vmatpush.msra.mxu0 %v391
    %738 = vmatpush.msra.mxu0 %v379
    %739 = vmatpush.msra.mxu0 %v367
    %740 = vmatpush.msra.mxu0 %v355
    %741 = vmatpush.msra.mxu0 %v343
    %742 = vmatpush.msra.mxu0 %v331
    %743 = vmatpush.msra.mxu0 %v319
    %744 = vmatpush.msra.mxu0 %v307
    %745 = vmatpush.msra.mxu0 %v295
    %746 = vmatmul.f32.gmra.mxu0 %v98
    %v747 = vpop.f32.mrf.mxu0
    %v748 = vadd.f32 %v725, %v747
    %749 = vmatmul.f32.gmra.mxu0 %v101
    %v750 = vpop.f32.mrf.mxu0
    %v751 = vadd.f32 %v728, %v750
    %752 = vdwg.mxu0
    %753 = vmatpush.msra.mxu0 %v667
    %754 = vmatpush.msra.mxu0 %v655
    %755 = vmatpush.msra.mxu0 %v643
    %756 = vmatpush.msra.mxu0 %v631
    %757 = vmatpush.msra.mxu0 %v619
    %758 = vmatpush.msra.mxu0 %v607
    %759 = vmatpush.msra.mxu0 %v595
    %760 = vmatpush.msra.mxu0 %v583
    %761 = vmatpush.msra.mxu0 %v571
    %762 = vmatpush.msra.mxu0 %v559
    %763 = vmatpush.msra.mxu0 %v547
    %764 = vmatpush.msra.mxu0 %v535
    %765 = vmatpush.msra.mxu0 %v523
    %766 = vmatpush.msra.mxu0 %v511
    %767 = vmatpush.msra.mxu0 %v499
    %768 = vmatpush.msra.mxu0 %v487
    %769 = vmatmul.f32.gmra.mxu0 %v99
    %v770 = vpop.f32.mrf.mxu0
    %v771 = vadd.f32 %v748, %v770
    %772 = vmatmul.f32.gmra.mxu0 %v102
    %v773 = vpop.f32.mrf.mxu0
    %v774 = vadd.f32 %v751, %v773
    %775 = vdwg.mxu0
    %776 = vmatpush.msra.mxu0 %v284
    %777 = vmatpush.msra.mxu0 %v272
    %778 = vmatpush.msra.mxu0 %v260
    %779 = vmatpush.msra.mxu0 %v248
    %780 = vmatpush.msra.mxu0 %v236
    %781 = vmatpush.msra.mxu0 %v224
    %782 = vmatpush.msra.mxu0 %v212
    %783 = vmatpush.msra.mxu0 %v200
    %784 = vmatpush.msra.mxu0 %v188
    %785 = vmatpush.msra.mxu0 %v176
    %786 = vmatpush.msra.mxu0 %v164
    %787 = vmatpush.msra.mxu0 %v152
    %788 = vmatpush.msra.mxu0 %v140
    %789 = vmatpush.msra.mxu0 %v128
    %790 = vmatpush.msra.mxu0 %v116
    %791 = vmatpush.msra.mxu0 %v104
    %792 = vmatmul.f32.gmra.mxu0 %v97
    %v793 = vpop.f32.mrf.mxu0
    %v794 = vadd.f32 %v684, %v793
    %795 = vmatmul.f32.gmra.mxu0 %v100
    %v796 = vpop.f32.mrf.mxu0
    %v797 = vadd.f32 %v684, %v796
    %798 = vdwg.mxu0
    %799 = vmatpush.msra.mxu0 %v476
    %800 = vmatpush.msra.mxu0 %v464
    %801 = vmatpush.msra.mxu0 %v452
    %802 = vmatpush.msra.mxu0 %v440
    %803 = vmatpush.msra.mxu0 %v428
    %804 = vmatpush.msra.mxu0 %v416
    %805 = vmatpush.msra.mxu0 %v404
    %806 = vmatpush.msra.mxu0 %v392
    %807 = vmatpush.msra.mxu0 %v380
    %808 = vmatpush.msra.mxu0 %v368
    %809 = vmatpush.msra.mxu0 %v356
    %810 = vmatpush.msra.mxu0 %v344
    %811 = vmatpush.msra.mxu0 %v332
    %812 = vmatpush.msra.mxu0 %v320
    %813 = vmatpush.msra.mxu0 %v308
    %814 = vmatpush.msra.mxu0 %v296
    %815 = vmatmul.f32.gmra.mxu0 %v98
    %v816 = vpop.f32.mrf.mxu0
    %v817 = vadd.f32 %v794, %v816
    %818 = vmatmul.f32.gmra.mxu0 %v101
    %v819 = vpop.f32.mrf.mxu0
    %v820 = vadd.f32 %v797, %v819
    %821 = vdwg.mxu0
    %822 = vmatpush.msra.mxu0 %v668
    %823 = vmatpush.msra.mxu0 %v656
    %824 = vmatpush.msra.mxu0 %v644
    %825 = vmatpush.msra.mxu0 %v632
    %826 = vmatpush.msra.mxu0 %v620
    %827 = vmatpush.msra.mxu0 %v608
    %828 = vmatpush.msra.mxu0 %v596
    %829 = vmatpush.msra.mxu0 %v584
    %830 = vmatpush.msra.mxu0 %v572
    %831 = vmatpush.msra.mxu0 %v560
    %832 = vmatpush.msra.mxu0 %v548
    %833 = vmatpush.msra.mxu0 %v536
    %834 = vmatpush.msra.mxu0 %v524
    %835 = vmatpush.msra.mxu0 %v512
    %836 = vmatpush.msra.mxu0 %v500
    %837 = vmatpush.msra.mxu0 %v488
    %838 = vmatmul.f32.gmra.mxu0 %v99
    %v839 = vpop.f32.mrf.mxu0
    %v840 = vadd.f32 %v817, %v839
    %841 = vmatmul.f32.gmra.mxu0 %v102
    %v842 = vpop.f32.mrf.mxu0
    %v843 = vadd.f32 %v820, %v842
    %844 = vdwg.mxu0
    %845 = vmatpush.msra.mxu0 %v285
    %846 = vmatpush.msra.mxu0 %v273
    %847 = vmatpush.msra.mxu0 %v261
    %848 = vmatpush.msra.mxu0 %v249
    %849 = vmatpush.msra.mxu0 %v237
    %850 = vmatpush.msra.mxu0 %v225
    %851 = vmatpush.msra.mxu0 %v213
    %852 = vmatpush.msra.mxu0 %v201
    %853 = vmatpush.msra.mxu0 %v189
    %854 = vmatpush.msra.mxu0 %v177
    %855 = vmatpush.msra.mxu0 %v165
    %856 = vmatpush.msra.mxu0 %v153
    %857 = vmatpush.msra.mxu0 %v141
    %858 = vmatpush.msra.mxu0 %v129
    %859 = vmatpush.msra.mxu0 %v117
    %860 = vmatpush.msra.mxu0 %v105
    %861 = vmatmul.f32.gmra.mxu0 %v97
    %v862 = vpop.f32.mrf.mxu0
    %v863 = vadd.f32 %v685, %v862
    %864 = vmatmul.f32.gmra.mxu0 %v100
    %v865 = vpop.f32.mrf.mxu0
    %v866 = vadd.f32 %v685, %v865
    %867 = vdwg.mxu0
    %868 = vmatpush.msra.mxu0 %v477
    %869 = vmatpush.msra.mxu0 %v465
    %870 = vmatpush.msra.mxu0 %v453
    %871 = vmatpush.msra.mxu0 %v441
    %872 = vmatpush.msra.mxu0 %v429
    %873 = vmatpush.msra.mxu0 %v417
    %874 = vmatpush.msra.mxu0 %v405
    %875 = vmatpush.msra.mxu0 %v393
    %876 = vmatpush.msra.mxu0 %v381
    %877 = vmatpush.msra.mxu0 %v369
    %878 = vmatpush.msra.mxu0 %v357
    %879 = vmatpush.msra.mxu0 %v345
    %880 = vmatpush.msra.mxu0 %v333
    %881 = vmatpush.msra.mxu0 %v321
    %882 = vmatpush.msra.mxu0 %v309
    %883 = vmatpush.msra.mxu0 %v297
    %884 = vmatmul.f32.gmra.mxu0 %v98
    %v885 = vpop.f32.mrf.mxu0
    %v886 = vadd.f32 %v863, %v885
    %887 = vmatmul.f32.gmra.mxu0 %v101
    %v888 = vpop.f32.mrf.mxu0
    %v889 = vadd.f32 %v866, %v888
    %890 = vdwg.mxu0
    %891 = vmatpush.msra.mxu0 %v669
    %892 = vmatpush.msra.mxu0 %v657
    %893 = vmatpush.msra.mxu0 %v645
    %894 = vmatpush.msra.mxu0 %v633
    %895 = vmatpush.msra.mxu0 %v621
    %896 = vmatpush.msra.mxu0 %v609
    %897 = vmatpush.msra.mxu0 %v597
    %898 = vmatpush.msra.mxu0 %v585
    %899 = vmatpush.msra.mxu0 %v573
    %900 = vmatpush.msra.mxu0 %v561
    %901 = vmatpush.msra.mxu0 %v549
    %902 = vmatpush.msra.mxu0 %v537
    %903 = vmatpush.msra.mxu0 %v525
    %904 = vmatpush.msra.mxu0 %v513
    %905 = vmatpush.msra.mxu0 %v501
    %906 = vmatpush.msra.mxu0 %v489
    %907 = vmatmul.f32.gmra.mxu0 %v99
    %v908 = vpop.f32.mrf.mxu0
    %v909 = vadd.f32 %v886, %v908
    %910 = vmatmul.f32.gmra.mxu0 %v102
    %v911 = vpop.f32.mrf.mxu0
    %v912 = vadd.f32 %v889, %v911
    %913 = vdwg.mxu0
    %914 = vmatpush.msra.mxu0 %v286
    %915 = vmatpush.msra.mxu0 %v274
    %916 = vmatpush.msra.mxu0 %v262
    %917 = vmatpush.msra.mxu0 %v250
    %918 = vmatpush.msra.mxu0 %v238
    %919 = vmatpush.msra.mxu0 %v226
    %920 = vmatpush.msra.mxu0 %v214
    %921 = vmatpush.msra.mxu0 %v202
    %922 = vmatpush.msra.mxu0 %v190
    %923 = vmatpush.msra.mxu0 %v178
    %924 = vmatpush.msra.mxu0 %v166
    %925 = vmatpush.msra.mxu0 %v154
    %926 = vmatpush.msra.mxu0 %v142
    %927 = vmatpush.msra.mxu0 %v130
    %928 = vmatpush.msra.mxu0 %v118
    %929 = vmatpush.msra.mxu0 %v106
    %930 = vmatmul.f32.gmra.mxu0 %v97
    %v931 = vpop.f32.mrf.mxu0
    %v932 = vadd.f32 %v686, %v931
    %933 = vmatmul.f32.gmra.mxu0 %v100
    %v934 = vpop.f32.mrf.mxu0
    %v935 = vadd.f32 %v686, %v934
    %936 = vdwg.mxu0
    %937 = vmatpush.msra.mxu0 %v478
    %938 = vmatpush.msra.mxu0 %v466
    %939 = vmatpush.msra.mxu0 %v454
    %940 = vmatpush.msra.mxu0 %v442
    %941 = vmatpush.msra.mxu0 %v430
    %942 = vmatpush.msra.mxu0 %v418
    %943 = vmatpush.msra.mxu0 %v406
    %944 = vmatpush.msra.mxu0 %v394
    %945 = vmatpush.msra.mxu0 %v382
    %946 = vmatpush.msra.mxu0 %v370
    %947 = vmatpush.msra.mxu0 %v358
    %948 = vmatpush.msra.mxu0 %v346
    %949 = vmatpush.msra.mxu0 %v334
    %950 = vmatpush.msra.mxu0 %v322
    %951 = vmatpush.msra.mxu0 %v310
    %952 = vmatpush.msra.mxu0 %v298
    %953 = vmatmul.f32.gmra.mxu0 %v98
    %v954 = vpop.f32.mrf.mxu0
    %v955 = vadd.f32 %v932, %v954
    %956 = vmatmul.f32.gmra.mxu0 %v101
    %v957 = vpop.f32.mrf.mxu0
    %v958 = vadd.f32 %v935, %v957
    %959 = vdwg.mxu0
    %960 = vmatpush.msra.mxu0 %v670
    %961 = vmatpush.msra.mxu0 %v658
    %962 = vmatpush.msra.mxu0 %v646
    %963 = vmatpush.msra.mxu0 %v634
    %964 = vmatpush.msra.mxu0 %v622
    %965 = vmatpush.msra.mxu0 %v610
    %966 = vmatpush.msra.mxu0 %v598
    %967 = vmatpush.msra.mxu0 %v586
    %968 = vmatpush.msra.mxu0 %v574
    %969 = vmatpush.msra.mxu0 %v562
    %970 = vmatpush.msra.mxu0 %v550
    %971 = vmatpush.msra.mxu0 %v538
    %972 = vmatpush.msra.mxu0 %v526
    %973 = vmatpush.msra.mxu0 %v514
    %974 = vmatpush.msra.mxu0 %v502
    %975 = vmatpush.msra.mxu0 %v490
    %976 = vmatmul.f32.gmra.mxu0 %v99
    %v977 = vpop.f32.mrf.mxu0
    %v978 = vadd.f32 %v955, %v977
    %979 = vmatmul.f32.gmra.mxu0 %v102
    %v980 = vpop.f32.mrf.mxu0
    %v981 = vadd.f32 %v958, %v980
    %982 = vdwg.mxu0
    %983 = vmatpush.msra.mxu0 %v287
    %984 = vmatpush.msra.mxu0 %v275
    %985 = vmatpush.msra.mxu0 %v263
    %986 = vmatpush.msra.mxu0 %v251
    %987 = vmatpush.msra.mxu0 %v239
    %988 = vmatpush.msra.mxu0 %v227
    %989 = vmatpush.msra.mxu0 %v215
    %990 = vmatpush.msra.mxu0 %v203
    %991 = vmatpush.msra.mxu0 %v191
    %992 = vmatpush.msra.mxu0 %v179
    %993 = vmatpush.msra.mxu0 %v167
    %994 = vmatpush.msra.mxu0 %v155
    %995 = vmatpush.msra.mxu0 %v143
    %996 = vmatpush.msra.mxu0 %v131
    %997 = vmatpush.msra.mxu0 %v119
    %998 = vmatpush.msra.mxu0 %v107
    %999 = vmatmul.f32.gmra.mxu0 %v97
    %v1000 = vpop.f32.mrf.mxu0
    %v1001 = vadd.f32 %v687, %v1000
    %1002 = vmatmul.f32.gmra.mxu0 %v100
    %v1003 = vpop.f32.mrf.mxu0
    %v1004 = vadd.f32 %v687, %v1003
    %1005 = vdwg.mxu0
    %1006 = vmatpush.msra.mxu0 %v479
    %1007 = vmatpush.msra.mxu0 %v467
    %1008 = vmatpush.msra.mxu0 %v455
    %1009 = vmatpush.msra.mxu0 %v443
    %1010 = vmatpush.msra.mxu0 %v431
    %1011 = vmatpush.msra.mxu0 %v419
    %1012 = vmatpush.msra.mxu0 %v407
    %1013 = vmatpush.msra.mxu0 %v395
    %1014 = vmatpush.msra.mxu0 %v383
    %1015 = vmatpush.msra.mxu0 %v371
    %1016 = vmatpush.msra.mxu0 %v359
    %1017 = vmatpush.msra.mxu0 %v347
    %1018 = vmatpush.msra.mxu0 %v335
    %1019 = vmatpush.msra.mxu0 %v323
    %1020 = vmatpush.msra.mxu0 %v311
    %1021 = vmatpush.msra.mxu0 %v299
    %1022 = vmatmul.f32.gmra.mxu0 %v98
    %v1023 = vpop.f32.mrf.mxu0
    %v1024 = vadd.f32 %v1001, %v1023
    %1025 = vmatmul.f32.gmra.mxu0 %v101
    %v1026 = vpop.f32.mrf.mxu0
    %v1027 = vadd.f32 %v1004, %v1026
    %1028 = vdwg.mxu0
    %1029 = vmatpush.msra.mxu0 %v671
    %1030 = vmatpush.msra.mxu0 %v659
    %1031 = vmatpush.msra.mxu0 %v647
    %1032 = vmatpush.msra.mxu0 %v635
    %1033 = vmatpush.msra.mxu0 %v623
    %1034 = vmatpush.msra.mxu0 %v611
    %1035 = vmatpush.msra.mxu0 %v599
    %1036 = vmatpush.msra.mxu0 %v587
    %1037 = vmatpush.msra.mxu0 %v575
    %1038 = vmatpush.msra.mxu0 %v563
    %1039 = vmatpush.msra.mxu0 %v551
    %1040 = vmatpush.msra.mxu0 %v539
    %1041 = vmatpush.msra.mxu0 %v527
    %1042 = vmatpush.msra.mxu0 %v515
    %1043 = vmatpush.msra.mxu0 %v503
    %1044 = vmatpush.msra.mxu0 %v491
    %1045 = vmatmul.f32.gmra.mxu0 %v99
    %v1046 = vpop.f32.mrf.mxu0
    %v1047 = vadd.f32 %v1024, %v1046
    %1048 = vmatmul.f32.gmra.mxu0 %v102
    %v1049 = vpop.f32.mrf.mxu0
    %v1050 = vadd.f32 %v1027, %v1049
    %1051 = vdwg.mxu0
    %1052 = vmatpush.msra.mxu0 %v288
    %1053 = vmatpush.msra.mxu0 %v276
    %1054 = vmatpush.msra.mxu0 %v264
    %1055 = vmatpush.msra.mxu0 %v252
    %1056 = vmatpush.msra.mxu0 %v240
    %1057 = vmatpush.msra.mxu0 %v228
    %1058 = vmatpush.msra.mxu0 %v216
    %1059 = vmatpush.msra.mxu0 %v204
    %1060 = vmatpush.msra.mxu0 %v192
    %1061 = vmatpush.msra.mxu0 %v180
    %1062 = vmatpush.msra.mxu0 %v168
    %1063 = vmatpush.msra.mxu0 %v156
    %1064 = vmatpush.msra.mxu0 %v144
    %1065 = vmatpush.msra.mxu0 %v132
    %1066 = vmatpush.msra.mxu0 %v120
    %1067 = vmatpush.msra.mxu0 %v108
    %1068 = vmatmul.f32.gmra.mxu0 %v97
    %v1069 = vpop.f32.mrf.mxu0
    %v1070 = vadd.f32 %v688, %v1069
    %1071 = vmatmul.f32.gmra.mxu0 %v100
    %v1072 = vpop.f32.mrf.mxu0
    %v1073 = vadd.f32 %v688, %v1072
    %1074 = vdwg.mxu0
    %1075 = vmatpush.msra.mxu0 %v480
    %1076 = vmatpush.msra.mxu0 %v468
    %1077 = vmatpush.msra.mxu0 %v456
    %1078 = vmatpush.msra.mxu0 %v444
    %1079 = vmatpush.msra.mxu0 %v432
    %1080 = vmatpush.msra.mxu0 %v420
    %1081 = vmatpush.msra.mxu0 %v408
    %1082 = vmatpush.msra.mxu0 %v396
    %1083 = vmatpush.msra.mxu0 %v384
    %1084 = vmatpush.msra.mxu0 %v372
    %1085 = vmatpush.msra.mxu0 %v360
    %1086 = vmatpush.msra.mxu0 %v348
    %1087 = vmatpush.msra.mxu0 %v336
    %1088 = vmatpush.msra.mxu0 %v324
    %1089 = vmatpush.msra.mxu0 %v312
    %1090 = vmatpush.msra.mxu0 %v300
    %1091 = vmatmul.f32.gmra.mxu0 %v98
    %v1092 = vpop.f32.mrf.mxu0
    %v1093 = vadd.f32 %v1070, %v1092
    %1094 = vmatmul.f32.gmra.mxu0 %v101
    %v1095 = vpop.f32.mrf.mxu0
    %v1096 = vadd.f32 %v1073, %v1095
    %1097 = vdwg.mxu0
    %1098 = vmatpush.msra.mxu0 %v672
    %1099 = vmatpush.msra.mxu0 %v660
    %1100 = vmatpush.msra.mxu0 %v648
    %1101 = vmatpush.msra.mxu0 %v636
    %1102 = vmatpush.msra.mxu0 %v624
    %1103 = vmatpush.msra.mxu0 %v612
    %1104 = vmatpush.msra.mxu0 %v600
    %1105 = vmatpush.msra.mxu0 %v588
    %1106 = vmatpush.msra.mxu0 %v576
    %1107 = vmatpush.msra.mxu0 %v564
    %1108 = vmatpush.msra.mxu0 %v552
    %1109 = vmatpush.msra.mxu0 %v540
    %1110 = vmatpush.msra.mxu0 %v528
    %1111 = vmatpush.msra.mxu0 %v516
    %1112 = vmatpush.msra.mxu0 %v504
    %1113 = vmatpush.msra.mxu0 %v492
    %1114 = vmatmul.f32.gmra.mxu0 %v99
    %v1115 = vpop.f32.mrf.mxu0
    %v1116 = vadd.f32 %v1093, %v1115
    %1117 = vmatmul.f32.gmra.mxu0 %v102
    %v1118 = vpop.f32.mrf.mxu0
    %v1119 = vadd.f32 %v1096, %v1118
    %1120 = vdwg.mxu0
    %1121 = vmatpush.msra.mxu0 %v289
    %1122 = vmatpush.msra.mxu0 %v277
    %1123 = vmatpush.msra.mxu0 %v265
    %1124 = vmatpush.msra.mxu0 %v253
    %1125 = vmatpush.msra.mxu0 %v241
    %1126 = vmatpush.msra.mxu0 %v229
    %1127 = vmatpush.msra.mxu0 %v217
    %1128 = vmatpush.msra.mxu0 %v205
    %1129 = vmatpush.msra.mxu0 %v193
    %1130 = vmatpush.msra.mxu0 %v181
    %1131 = vmatpush.msra.mxu0 %v169
    %1132 = vmatpush.msra.mxu0 %v157
    %1133 = vmatpush.msra.mxu0 %v145
    %1134 = vmatpush.msra.mxu0 %v133
    %1135 = vmatpush.msra.mxu0 %v121
    %1136 = vmatpush.msra.mxu0 %v109
    %1137 = vmatmul.f32.gmra.mxu0 %v97
    %v1138 = vpop.f32.mrf.mxu0
    %v1139 = vadd.f32 %v689, %v1138
    %1140 = vmatmul.f32.gmra.mxu0 %v100
    %v1141 = vpop.f32.mrf.mxu0
    %v1142 = vadd.f32 %v689, %v1141
    %1143 = vdwg.mxu0
    %1144 = vmatpush.msra.mxu0 %v481
    %1145 = vmatpush.msra.mxu0 %v469
    %1146 = vmatpush.msra.mxu0 %v457
    %1147 = vmatpush.msra.mxu0 %v445
    %1148 = vmatpush.msra.mxu0 %v433
    %1149 = vmatpush.msra.mxu0 %v421
    %1150 = vmatpush.msra.mxu0 %v409
    %1151 = vmatpush.msra.mxu0 %v397
    %1152 = vmatpush.msra.mxu0 %v385
    %1153 = vmatpush.msra.mxu0 %v373
    %1154 = vmatpush.msra.mxu0 %v361
    %1155 = vmatpush.msra.mxu0 %v349
    %1156 = vmatpush.msra.mxu0 %v337
    %1157 = vmatpush.msra.mxu0 %v325
    %1158 = vmatpush.msra.mxu0 %v313
    %1159 = vmatpush.msra.mxu0 %v301
    %1160 = vmatmul.f32.gmra.mxu0 %v98
    %v1161 = vpop.f32.mrf.mxu0
    %v1162 = vadd.f32 %v1139, %v1161
    %1163 = vmatmul.f32.gmra.mxu0 %v101
    %v1164 = vpop.f32.mrf.mxu0
    %v1165 = vadd.f32 %v1142, %v1164
    %1166 = vdwg.mxu0
    %1167 = vmatpush.msra.mxu0 %v673
    %1168 = vmatpush.msra.mxu0 %v661
    %1169 = vmatpush.msra.mxu0 %v649
    %1170 = vmatpush.msra.mxu0 %v637
    %1171 = vmatpush.msra.mxu0 %v625
    %1172 = vmatpush.msra.mxu0 %v613
    %1173 = vmatpush.msra.mxu0 %v601
    %1174 = vmatpush.msra.mxu0 %v589
    %1175 = vmatpush.msra.mxu0 %v577
    %1176 = vmatpush.msra.mxu0 %v565
    %1177 = vmatpush.msra.mxu0 %v553
    %1178 = vmatpush.msra.mxu0 %v541
    %1179 = vmatpush.msra.mxu0 %v529
    %1180 = vmatpush.msra.mxu0 %v517
    %1181 = vmatpush.msra.mxu0 %v505
    %1182 = vmatpush.msra.mxu0 %v493
    %1183 = vmatmul.f32.gmra.mxu0 %v99
    %v1184 = vpop.f32.mrf.mxu0
    %v1185 = vadd.f32 %v1162, %v1184
    %1186 = vmatmul.f32.gmra.mxu0 %v102
    %v1187 = vpop.f32.mrf.mxu0
    %v1188 = vadd.f32 %v1165, %v1187
    %1189 = vdwg.mxu0
    %1190 = vmatpush.msra.mxu0 %v290
    %1191 = vmatpush.msra.mxu0 %v278
    %1192 = vmatpush.msra.mxu0 %v266
    %1193 = vmatpush.msra.mxu0 %v254
    %1194 = vmatpush.msra.mxu0 %v242
    %1195 = vmatpush.msra.mxu0 %v230
    %1196 = vmatpush.msra.mxu0 %v218
    %1197 = vmatpush.msra.mxu0 %v206
    %1198 = vmatpush.msra.mxu0 %v194
    %1199 = vmatpush.msra.mxu0 %v182
    %1200 = vmatpush.msra.mxu0 %v170
    %1201 = vmatpush.msra.mxu0 %v158
    %1202 = vmatpush.msra.mxu0 %v146
    %1203 = vmatpush.msra.mxu0 %v134
    %1204 = vmatpush.msra.mxu0 %v122
    %1205 = vmatpush.msra.mxu0 %v110
    %1206 = vmatmul.f32.gmra.mxu0 %v97
    %v1207 = vpop.f32.mrf.mxu0
    %v1208 = vadd.f32 %v690, %v1207
    %1209 = vmatmul.f32.gmra.mxu0 %v100
    %v1210 = vpop.f32.mrf.mxu0
    %v1211 = vadd.f32 %v690, %v1210
    %1212 = vdwg.mxu0
    %1213 = vmatpush.msra.mxu0 %v482
    %1214 = vmatpush.msra.mxu0 %v470
    %1215 = vmatpush.msra.mxu0 %v458
    %1216 = vmatpush.msra.mxu0 %v446
    %1217 = vmatpush.msra.mxu0 %v434
    %1218 = vmatpush.msra.mxu0 %v422
    %1219 = vmatpush.msra.mxu0 %v410
    %1220 = vmatpush.msra.mxu0 %v398
    %1221 = vmatpush.msra.mxu0 %v386
    %1222 = vmatpush.msra.mxu0 %v374
    %1223 = vmatpush.msra.mxu0 %v362
    %1224 = vmatpush.msra.mxu0 %v350
    %1225 = vmatpush.msra.mxu0 %v338
    %1226 = vmatpush.msra.mxu0 %v326
    %1227 = vmatpush.msra.mxu0 %v314
    %1228 = vmatpush.msra.mxu0 %v302
    %1229 = vmatmul.f32.gmra.mxu0 %v98
    %v1230 = vpop.f32.mrf.mxu0
    %v1231 = vadd.f32 %v1208, %v1230
    %1232 = vmatmul.f32.gmra.mxu0 %v101
    %v1233 = vpop.f32.mrf.mxu0
    %v1234 = vadd.f32 %v1211, %v1233
    %1235 = vdwg.mxu0
    %1236 = vmatpush.msra.mxu0 %v674
    %1237 = vmatpush.msra.mxu0 %v662
    %1238 = vmatpush.msra.mxu0 %v650
    %1239 = vmatpush.msra.mxu0 %v638
    %1240 = vmatpush.msra.mxu0 %v626
    %1241 = vmatpush.msra.mxu0 %v614
    %1242 = vmatpush.msra.mxu0 %v602
    %1243 = vmatpush.msra.mxu0 %v590
    %1244 = vmatpush.msra.mxu0 %v578
    %1245 = vmatpush.msra.mxu0 %v566
    %1246 = vmatpush.msra.mxu0 %v554
    %1247 = vmatpush.msra.mxu0 %v542
    %1248 = vmatpush.msra.mxu0 %v530
    %1249 = vmatpush.msra.mxu0 %v518
    %1250 = vmatpush.msra.mxu0 %v506
    %1251 = vmatpush.msra.mxu0 %v494
    %1252 = vmatmul.f32.gmra.mxu0 %v99
    %v1253 = vpop.f32.mrf.mxu0
    %v1254 = vadd.f32 %v1231, %v1253
    %1255 = vmatmul.f32.gmra.mxu0 %v102
    %v1256 = vpop.f32.mrf.mxu0
    %v1257 = vadd.f32 %v1234, %v1256
    %1258 = vdwg.mxu0
    %1259 = vmatpush.msra.mxu0 %v291
    %1260 = vmatpush.msra.mxu0 %v279
    %1261 = vmatpush.msra.mxu0 %v267
    %1262 = vmatpush.msra.mxu0 %v255
    %1263 = vmatpush.msra.mxu0 %v243
    %1264 = vmatpush.msra.mxu0 %v231
    %1265 = vmatpush.msra.mxu0 %v219
    %1266 = vmatpush.msra.mxu0 %v207
    %1267 = vmatpush.msra.mxu0 %v195
    %1268 = vmatpush.msra.mxu0 %v183
    %1269 = vmatpush.msra.mxu0 %v171
    %1270 = vmatpush.msra.mxu0 %v159
    %1271 = vmatpush.msra.mxu0 %v147
    %1272 = vmatpush.msra.mxu0 %v135
    %1273 = vmatpush.msra.mxu0 %v123
    %1274 = vmatpush.msra.mxu0 %v111
    %1275 = vmatmul.f32.gmra.mxu0 %v97
    %v1276 = vpop.f32.mrf.mxu0
    %v1277 = vadd.f32 %v691, %v1276
    %1278 = vmatmul.f32.gmra.mxu0 %v100
    %v1279 = vpop.f32.mrf.mxu0
    %v1280 = vadd.f32 %v691, %v1279
    %1281 = vdwg.mxu0
    %1282 = vmatpush.msra.mxu0 %v483
    %1283 = vmatpush.msra.mxu0 %v471
    %1284 = vmatpush.msra.mxu0 %v459
    %1285 = vmatpush.msra.mxu0 %v447
    %1286 = vmatpush.msra.mxu0 %v435
    %1287 = vmatpush.msra.mxu0 %v423
    %1288 = vmatpush.msra.mxu0 %v411
    %1289 = vmatpush.msra.mxu0 %v399
    %1290 = vmatpush.msra.mxu0 %v387
    %1291 = vmatpush.msra.mxu0 %v375
    %1292 = vmatpush.msra.mxu0 %v363
    %1293 = vmatpush.msra.mxu0 %v351
    %1294 = vmatpush.msra.mxu0 %v339
    %1295 = vmatpush.msra.mxu0 %v327
    %1296 = vmatpush.msra.mxu0 %v315
    %1297 = vmatpush.msra.mxu0 %v303
    %1298 = vmatmul.f32.gmra.mxu0 %v98
    %v1299 = vpop.f32.mrf.mxu0
    %v1300 = vadd.f32 %v1277, %v1299
    %1301 = vmatmul.f32.gmra.mxu0 %v101
    %v1302 = vpop.f32.mrf.mxu0
    %v1303 = vadd.f32 %v1280, %v1302
    %1304 = vdwg.mxu0
    %1305 = vmatpush.msra.mxu0 %v675
    %1306 = vmatpush.msra.mxu0 %v663
    %1307 = vmatpush.msra.mxu0 %v651
    %1308 = vmatpush.msra.mxu0 %v639
    %1309 = vmatpush.msra.mxu0 %v627
    %1310 = vmatpush.msra.mxu0 %v615
    %1311 = vmatpush.msra.mxu0 %v603
    %1312 = vmatpush.msra.mxu0 %v591
    %1313 = vmatpush.msra.mxu0 %v579
    %1314 = vmatpush.msra.mxu0 %v567
    %1315 = vmatpush.msra.mxu0 %v555
    %1316 = vmatpush.msra.mxu0 %v543
    %1317 = vmatpush.msra.mxu0 %v531
    %1318 = vmatpush.msra.mxu0 %v519
    %1319 = vmatpush.msra.mxu0 %v507
    %1320 = vmatpush.msra.mxu0 %v495
    %1321 = vmatmul.f32.gmra.mxu0 %v99
    %v1322 = vpop.f32.mrf.mxu0
    %v1323 = vadd.f32 %v1300, %v1322
    %1324 = vmatmul.f32.gmra.mxu0 %v102
    %v1325 = vpop.f32.mrf.mxu0
    %v1326 = vadd.f32 %v1303, %v1325
    %1327 = vdwg.mxu0
    %1328 = vmatpush.msra.mxu0 %v292
    %1329 = vmatpush.msra.mxu0 %v280
    %1330 = vmatpush.msra.mxu0 %v268
    %1331 = vmatpush.msra.mxu0 %v256
    %1332 = vmatpush.msra.mxu0 %v244
    %1333 = vmatpush.msra.mxu0 %v232
    %1334 = vmatpush.msra.mxu0 %v220
    %1335 = vmatpush.msra.mxu0 %v208
    %1336 = vmatpush.msra.mxu0 %v196
    %1337 = vmatpush.msra.mxu0 %v184
    %1338 = vmatpush.msra.mxu0 %v172
    %1339 = vmatpush.msra.mxu0 %v160
    %1340 = vmatpush.msra.mxu0 %v148
    %1341 = vmatpush.msra.mxu0 %v136
    %1342 = vmatpush.msra.mxu0 %v124
    %1343 = vmatpush.msra.mxu0 %v112
    %1344 = vmatmul.f32.gmra.mxu0 %v97
    %v1345 = vpop.f32.mrf.mxu0
    %v1346 = vadd.f32 %v692, %v1345
    %1347 = vmatmul.f32.gmra.mxu0 %v100
    %v1348 = vpop.f32.mrf.mxu0
    %v1349 = vadd.f32 %v692, %v1348
    %1350 = vdwg.mxu0
    %1351 = vmatpush.msra.mxu0 %v484
    %1352 = vmatpush.msra.mxu0 %v472
    %1353 = vmatpush.msra.mxu0 %v460
    %1354 = vmatpush.msra.mxu0 %v448
    %1355 = vmatpush.msra.mxu0 %v436
    %1356 = vmatpush.msra.mxu0 %v424
    %1357 = vmatpush.msra.mxu0 %v412
    %1358 = vmatpush.msra.mxu0 %v400
    %1359 = vmatpush.msra.mxu0 %v388
    %1360 = vmatpush.msra.mxu0 %v376
    %1361 = vmatpush.msra.mxu0 %v364
    %1362 = vmatpush.msra.mxu0 %v352
    %1363 = vmatpush.msra.mxu0 %v340
    %1364 = vmatpush.msra.mxu0 %v328
    %1365 = vmatpush.msra.mxu0 %v316
    %1366 = vmatpush.msra.mxu0 %v304
    %1367 = vmatmul.f32.gmra.mxu0 %v98
    %v1368 = vpop.f32.mrf.mxu0
    %v1369 = vadd.f32 %v1346, %v1368
    %1370 = vmatmul.f32.gmra.mxu0 %v101
    %v1371 = vpop.f32.mrf.mxu0
    %v1372 = vadd.f32 %v1349, %v1371
    %1373 = vdwg.mxu0
    %1374 = vmatpush.msra.mxu0 %v676
    %1375 = vmatpush.msra.mxu0 %v664
    %1376 = vmatpush.msra.mxu0 %v652
    %1377 = vmatpush.msra.mxu0 %v640
    %1378 = vmatpush.msra.mxu0 %v628
    %1379 = vmatpush.msra.mxu0 %v616
    %1380 = vmatpush.msra.mxu0 %v604
    %1381 = vmatpush.msra.mxu0 %v592
    %1382 = vmatpush.msra.mxu0 %v580
    %1383 = vmatpush.msra.mxu0 %v568
    %1384 = vmatpush.msra.mxu0 %v556
    %1385 = vmatpush.msra.mxu0 %v544
    %1386 = vmatpush.msra.mxu0 %v532
    %1387 = vmatpush.msra.mxu0 %v520
    %1388 = vmatpush.msra.mxu0 %v508
    %1389 = vmatpush.msra.mxu0 %v496
    %1390 = vmatmul.f32.gmra.mxu0 %v99
    %v1391 = vpop.f32.mrf.mxu0
    %v1392 = vadd.f32 %v1369, %v1391
    %1393 = vmatmul.f32.gmra.mxu0 %v102
    %v1394 = vpop.f32.mrf.mxu0
    %v1395 = vadd.f32 %v1372, %v1394
    %1396 = vdwg.mxu0
    %1397 = vmatpush.msra.mxu0 %v293
    %1398 = vmatpush.msra.mxu0 %v281
    %1399 = vmatpush.msra.mxu0 %v269
    %1400 = vmatpush.msra.mxu0 %v257
    %1401 = vmatpush.msra.mxu0 %v245
    %1402 = vmatpush.msra.mxu0 %v233
    %1403 = vmatpush.msra.mxu0 %v221
    %1404 = vmatpush.msra.mxu0 %v209
    %1405 = vmatpush.msra.mxu0 %v197
    %1406 = vmatpush.msra.mxu0 %v185
    %1407 = vmatpush.msra.mxu0 %v173
    %1408 = vmatpush.msra.mxu0 %v161
    %1409 = vmatpush.msra.mxu0 %v149
    %1410 = vmatpush.msra.mxu0 %v137
    %1411 = vmatpush.msra.mxu0 %v125
    %1412 = vmatpush.msra.mxu0 %v113
    %1413 = vmatmul.f32.gmra.mxu0 %v97
    %v1414 = vpop.f32.mrf.mxu0
    %v1415 = vadd.f32 %v693, %v1414
    %1416 = vmatmul.f32.gmra.mxu0 %v100
    %v1417 = vpop.f32.mrf.mxu0
    %v1418 = vadd.f32 %v693, %v1417
    %1419 = vdwg.mxu0
    %1420 = vmatpush.msra.mxu0 %v485
    %1421 = vmatpush.msra.mxu0 %v473
    %1422 = vmatpush.msra.mxu0 %v461
    %1423 = vmatpush.msra.mxu0 %v449
    %1424 = vmatpush.msra.mxu0 %v437
    %1425 = vmatpush.msra.mxu0 %v425
    %1426 = vmatpush.msra.mxu0 %v413
    %1427 = vmatpush.msra.mxu0 %v401
    %1428 = vmatpush.msra.mxu0 %v389
    %1429 = vmatpush.msra.mxu0 %v377
    %1430 = vmatpush.msra.mxu0 %v365
    %1431 = vmatpush.msra.mxu0 %v353
    %1432 = vmatpush.msra.mxu0 %v341
    %1433 = vmatpush.msra.mxu0 %v329
    %1434 = vmatpush.msra.mxu0 %v317
    %1435 = vmatpush.msra.mxu0 %v305
    %1436 = vmatmul.f32.gmra.mxu0 %v98
    %v1437 = vpop.f32.mrf.mxu0
    %v1438 = vadd.f32 %v1415, %v1437
    %1439 = vmatmul.f32.gmra.mxu0 %v101
    %v1440 = vpop.f32.mrf.mxu0
    %v1441 = vadd.f32 %v1418, %v1440
    %1442 = vdwg.mxu0
    %1443 = vmatpush.msra.mxu0 %v677
    %1444 = vmatpush.msra.mxu0 %v665
    %1445 = vmatpush.msra.mxu0 %v653
    %1446 = vmatpush.msra.mxu0 %v641
    %1447 = vmatpush.msra.mxu0 %v629
    %1448 = vmatpush.msra.mxu0 %v617
    %1449 = vmatpush.msra.mxu0 %v605
    %1450 = vmatpush.msra.mxu0 %v593
    %1451 = vmatpush.msra.mxu0 %v581
    %1452 = vmatpush.msra.mxu0 %v569
    %1453 = vmatpush.msra.mxu0 %v557
    %1454 = vmatpush.msra.mxu0 %v545
    %1455 = vmatpush.msra.mxu0 %v533
    %1456 = vmatpush.msra.mxu0 %v521
    %1457 = vmatpush.msra.mxu0 %v509
    %1458 = vmatpush.msra.mxu0 %v497
    %1459 = vmatmul.f32.gmra.mxu0 %v99
    %v1460 = vpop.f32.mrf.mxu0
    %v1461 = vadd.f32 %v1438, %v1460
    %1462 = vmatmul.f32.gmra.mxu0 %v102
    %v1463 = vpop.f32.mrf.mxu0
    %v1464 = vadd.f32 %v1441, %v1463
    %1465 = vdwg.mxu0
    %1466 = vmatpush.msra.mxu0 %v294
    %1467 = vmatpush.msra.mxu0 %v282
    %1468 = vmatpush.msra.mxu0 %v270
    %1469 = vmatpush.msra.mxu0 %v258
    %1470 = vmatpush.msra.mxu0 %v246
    %1471 = vmatpush.msra.mxu0 %v234
    %1472 = vmatpush.msra.mxu0 %v222
    %1473 = vmatpush.msra.mxu0 %v210
    %1474 = vmatpush.msra.mxu0 %v198
    %1475 = vmatpush.msra.mxu0 %v186
    %1476 = vmatpush.msra.mxu0 %v174
    %1477 = vmatpush.msra.mxu0 %v162
    %1478 = vmatpush.msra.mxu0 %v150
    %1479 = vmatpush.msra.mxu0 %v138
    %1480 = vmatpush.msra.mxu0 %v126
    %1481 = vmatpush.msra.mxu0 %v114
    %1482 = vmatmul.f32.gmra.mxu0 %v97
    %v1483 = vpop.f32.mrf.mxu0
    %v1484 = vadd.f32 %v694, %v1483
    %1485 = vmatmul.f32.gmra.mxu0 %v100
    %v1486 = vpop.f32.mrf.mxu0
    %v1487 = vadd.f32 %v694, %v1486
    %1488 = vdwg.mxu0
    %1489 = vmatpush.msra.mxu0 %v486
    %1490 = vmatpush.msra.mxu0 %v474
    %1491 = vmatpush.msra.mxu0 %v462
    %1492 = vmatpush.msra.mxu0 %v450
    %1493 = vmatpush.msra.mxu0 %v438
    %1494 = vmatpush.msra.mxu0 %v426
    %1495 = vmatpush.msra.mxu0 %v414
    %1496 = vmatpush.msra.mxu0 %v402
    %1497 = vmatpush.msra.mxu0 %v390
    %1498 = vmatpush.msra.mxu0 %v378
    %1499 = vmatpush.msra.mxu0 %v366
    %1500 = vmatpush.msra.mxu0 %v354
    %1501 = vmatpush.msra.mxu0 %v342
    %1502 = vmatpush.msra.mxu0 %v330
    %1503 = vmatpush.msra.mxu0 %v318
    %1504 = vmatpush.msra.mxu0 %v306
    %1505 = vmatmul.f32.gmra.mxu0 %v98
    %v1506 = vpop.f32.mrf.mxu0
    %v1507 = vadd.f32 %v1484, %v1506
    %1508 = vmatmul.f32.gmra.mxu0 %v101
    %v1509 = vpop.f32.mrf.mxu0
    %v1510 = vadd.f32 %v1487, %v1509
    %1511 = vdwg.mxu0
    %1512 = vmatpush.msra.mxu0 %v678
    %1513 = vmatpush.msra.mxu0 %v666
    %1514 = vmatpush.msra.mxu0 %v654
    %1515 = vmatpush.msra.mxu0 %v642
    %1516 = vmatpush.msra.mxu0 %v630
    %1517 = vmatpush.msra.mxu0 %v618
    %1518 = vmatpush.msra.mxu0 %v606
    %1519 = vmatpush.msra.mxu0 %v594
    %1520 = vmatpush.msra.mxu0 %v582
    %1521 = vmatpush.msra.mxu0 %v570
    %1522 = vmatpush.msra.mxu0 %v558
    %1523 = vmatpush.msra.mxu0 %v546
    %1524 = vmatpush.msra.mxu0 %v534
    %1525 = vmatpush.msra.mxu0 %v522
    %1526 = vmatpush.msra.mxu0 %v510
    %1527 = vmatpush.msra.mxu0 %v498
    %1528 = vmatmul.f32.gmra.mxu0 %v99
    %v1529 = vpop.f32.mrf.mxu0
    %v1530 = vadd.f32 %v1507, %v1529
    %1531 = vmatmul.f32.gmra.mxu0 %v102
    %v1532 = vpop.f32.mrf.mxu0
    %v1533 = vadd.f32 %v1510, %v1532
    %1534 = vdwg.mxu0
    %v1535 = vmax.f32 %v771, 0.0
    %v1536 = vmax.f32 %v840, 0.0
    %v1537 = vmax.f32 %v909, 0.0
    %v1538 = vmax.f32 %v978, 0.0
    %v1539 = vmax.f32 %v1047, 0.0
    %v1540 = vmax.f32 %v1116, 0.0
    %v1541 = vmax.f32 %v1185, 0.0
    %v1542 = vmax.f32 %v1254, 0.0
    %v1543 = vmax.f32 %v1323, 0.0
    %v1544 = vmax.f32 %v1392, 0.0
    %v1545 = vmax.f32 %v1461, 0.0
    %v1546 = vmax.f32 %v1530, 0.0
    %v1547 = vmax.f32 %v774, 0.0
    %v1548 = vmax.f32 %v843, 0.0
    %v1549 = vmax.f32 %v912, 0.0
    %v1550 = vmax.f32 %v981, 0.0
    %v1551 = vmax.f32 %v1050, 0.0
    %v1552 = vmax.f32 %v1119, 0.0
    %v1553 = vmax.f32 %v1188, 0.0
    %v1554 = vmax.f32 %v1257, 0.0
    %v1555 = vmax.f32 %v1326, 0.0
    %v1556 = vmax.f32 %v1395, 0.0
    %v1557 = vmax.f32 %v1464, 0.0
    %v1558 = vmax.f32 %v1533, 0.0
    %v1559 = vld [vmem:[#allocation10] sm:$0xff]
    %v1560 = vld [vmem:[#allocation10 + $0x8] sm:$0xff]
    %v1561 = vld [vmem:[#allocation10 + $0x10] sm:$0xff]
    %v1562 = vld [vmem:[#allocation10 + $0x18] sm:$0xff]
    %v1563 = vld [vmem:[#allocation10 + $0x20] sm:$0xff]
    %v1564 = vld [vmem:[#allocation10 + $0x28] sm:$0xff]
    %v1565 = vld [vmem:[#allocation10 + $0x30] sm:$0xff]
    %v1566 = vld [vmem:[#allocation10 + $0x38] sm:$0xff]
    %v1567 = vld [vmem:[#allocation10 + $0x40] sm:$0xff]
    %v1568 = vld [vmem:[#allocation10 + $0x48] sm:$0xff]
    %v1569 = vld [vmem:[#allocation10 + $0x50] sm:$0xff]
    %v1570 = vld [vmem:[#allocation10 + $0x58] sm:$0xff]
    %v1571 = vld [vmem:[#allocation10 + $0x60] sm:$0xff]
    %v1572 = vld [vmem:[#allocation10 + $0x68] sm:$0xff]
    %v1573 = vld [vmem:[#allocation10 + $0x70] sm:$0xff]
    %v1574 = vld [vmem:[#allocation10 + $0x78] sm:$0xff]
    %v1575 = vld [vmem:[#allocation10 + $0x80] sm:$0xff]
    %v1576 = vld [vmem:[#allocation10 + $0x88] sm:$0xff]
    %v1577 = vld [vmem:[#allocation10 + $0x90] sm:$0xff]
    %v1578 = vld [vmem:[#allocation10 + $0x98] sm:$0xff]
    %v1579 = vld [vmem:[#allocation10 + $0xa0] sm:$0xff]
    %v1580 = vld [vmem:[#allocation10 + $0xa8] sm:$0xff]
    %v1581 = vld [vmem:[#allocation10 + $0xb0] sm:$0xff]
    %v1582 = vld [vmem:[#allocation10 + $0xb8] sm:$0xff]
    %v1583 = vld [vmem:[#allocation10 + $0xc0] sm:$0xff]
    %v1584 = vld [vmem:[#allocation10 + $0xc8] sm:$0xff]
    %v1585 = vld [vmem:[#allocation10 + $0xd0] sm:$0xff]
    %v1586 = vld [vmem:[#allocation10 + $0xd8] sm:$0xff]
    %v1587 = vld [vmem:[#allocation10 + $0xe0] sm:$0xff]
    %v1588 = vld [vmem:[#allocation10 + $0xe8] sm:$0xff]
    %v1589 = vld [vmem:[#allocation10 + $0xf0] sm:$0xff]
    %v1590 = vld [vmem:[#allocation10 + $0xf8] sm:$0xff]
    %v1591 = vld [vmem:[#allocation10 + $0x100] sm:$0xff]
    %v1592 = vld [vmem:[#allocation10 + $0x108] sm:$0xff]
    %v1593 = vld [vmem:[#allocation10 + $0x110] sm:$0xff]
    %v1594 = vld [vmem:[#allocation10 + $0x118] sm:$0xff]
    %v1595 = vld [vmem:[#allocation10 + $0x120] sm:$0xff]
    %v1596 = vld [vmem:[#allocation10 + $0x128] sm:$0xff]
    %v1597 = vld [vmem:[#allocation10 + $0x130] sm:$0xff]
    %v1598 = vld [vmem:[#allocation10 + $0x138] sm:$0xff]
    %v1599 = vld [vmem:[#allocation10 + $0x140] sm:$0xff]
    %v1600 = vld [vmem:[#allocation10 + $0x148] sm:$0xff]
    %v1601 = vld [vmem:[#allocation10 + $0x150] sm:$0xff]
    %v1602 = vld [vmem:[#allocation10 + $0x158] sm:$0xff]
    %v1603 = vld [vmem:[#allocation10 + $0x160] sm:$0xff]
    %v1604 = vld [vmem:[#allocation10 + $0x168] sm:$0xff]
    %v1605 = vld [vmem:[#allocation10 + $0x170] sm:$0xff]
    %v1606 = vld [vmem:[#allocation10 + $0x178] sm:$0xff]
    %v1607 = vld [vmem:[#allocation10 + $0x180] sm:$0xff]
    %v1608 = vld [vmem:[#allocation10 + $0x188] sm:$0xff]
    %v1609 = vld [vmem:[#allocation10 + $0x190] sm:$0xff]
    %v1610 = vld [vmem:[#allocation10 + $0x198] sm:$0xff]
    %v1611 = vld [vmem:[#allocation10 + $0x1a0] sm:$0xff]
    %v1612 = vld [vmem:[#allocation10 + $0x1a8] sm:$0xff]
    %v1613 = vld [vmem:[#allocation10 + $0x1b0] sm:$0xff]
    %v1614 = vld [vmem:[#allocation10 + $0x1b8] sm:$0xff]
    %v1615 = vld [vmem:[#allocation10 + $0x1c0] sm:$0xff]
    %v1616 = vld [vmem:[#allocation10 + $0x1c8] sm:$0xff]
    %v1617 = vld [vmem:[#allocation10 + $0x1d0] sm:$0xff]
    %v1618 = vld [vmem:[#allocation10 + $0x1d8] sm:$0xff]
    %v1619 = vld [vmem:[#allocation10 + $0x1e0] sm:$0xff]
    %v1620 = vld [vmem:[#allocation10 + $0x1e8] sm:$0xff]
    %v1621 = vld [vmem:[#allocation10 + $0x1f0] sm:$0xff]
    %v1622 = vld [vmem:[#allocation10 + $0x1f8] sm:$0xff]
    %v1623 = vld [vmem:[#allocation10 + $0x200] sm:$0xff]
    %v1624 = vld [vmem:[#allocation10 + $0x208] sm:$0xff]
    %v1625 = vld [vmem:[#allocation10 + $0x210] sm:$0xff]
    %v1626 = vld [vmem:[#allocation10 + $0x218] sm:$0xff]
    %v1627 = vld [vmem:[#allocation10 + $0x220] sm:$0xff]
    %v1628 = vld [vmem:[#allocation10 + $0x228] sm:$0xff]
    %v1629 = vld [vmem:[#allocation10 + $0x230] sm:$0xff]
    %v1630 = vld [vmem:[#allocation10 + $0x238] sm:$0xff]
    %v1631 = vld [vmem:[#allocation10 + $0x240] sm:$0xff]
    %v1632 = vld [vmem:[#allocation10 + $0x248] sm:$0xff]
    %v1633 = vld [vmem:[#allocation10 + $0x250] sm:$0xff]
    %v1634 = vld [vmem:[#allocation10 + $0x258] sm:$0xff]
    %v1635 = vld [vmem:[#allocation10 + $0x260] sm:$0xff]
    %v1636 = vld [vmem:[#allocation10 + $0x268] sm:$0xff]
    %v1637 = vld [vmem:[#allocation10 + $0x270] sm:$0xff]
    %v1638 = vld [vmem:[#allocation10 + $0x278] sm:$0xff]
    %v1639 = vld [vmem:[#allocation10 + $0x280] sm:$0xff]
    %v1640 = vld [vmem:[#allocation10 + $0x288] sm:$0xff]
    %v1641 = vld [vmem:[#allocation10 + $0x290] sm:$0xff]
    %v1642 = vld [vmem:[#allocation10 + $0x298] sm:$0xff]
    %v1643 = vld [vmem:[#allocation10 + $0x2a0] sm:$0xff]
    %v1644 = vld [vmem:[#allocation10 + $0x2a8] sm:$0xff]
    %v1645 = vld [vmem:[#allocation10 + $0x2b0] sm:$0xff]
    %v1646 = vld [vmem:[#allocation10 + $0x2b8] sm:$0xff]
    %v1647 = vld [vmem:[#allocation10 + $0x2c0] sm:$0xff]
    %v1648 = vld [vmem:[#allocation10 + $0x2c8] sm:$0xff]
    %v1649 = vld [vmem:[#allocation10 + $0x2d0] sm:$0xff]
    %v1650 = vld [vmem:[#allocation10 + $0x2d8] sm:$0xff]
    %v1651 = vld [vmem:[#allocation10 + $0x2e0] sm:$0xff]
    %v1652 = vld [vmem:[#allocation10 + $0x2e8] sm:$0xff]
    %v1653 = vld [vmem:[#allocation10 + $0x2f0] sm:$0xff]
    %v1654 = vld [vmem:[#allocation10 + $0x2f8] sm:$0xff]
    %v1655 = vld [vmem:[#allocation10 + $0x300] sm:$0xff]
    %v1656 = vld [vmem:[#allocation10 + $0x308] sm:$0xff]
    %v1657 = vld [vmem:[#allocation10 + $0x310] sm:$0xff]
    %v1658 = vld [vmem:[#allocation10 + $0x318] sm:$0xff]
    %v1659 = vld [vmem:[#allocation10 + $0x320] sm:$0xff]
    %v1660 = vld [vmem:[#allocation10 + $0x328] sm:$0xff]
    %v1661 = vld [vmem:[#allocation10 + $0x330] sm:$0xff]
    %v1662 = vld [vmem:[#allocation10 + $0x338] sm:$0xff]
    %v1663 = vld [vmem:[#allocation10 + $0x340] sm:$0xff]
    %v1664 = vld [vmem:[#allocation10 + $0x348] sm:$0xff]
    %v1665 = vld [vmem:[#allocation10 + $0x350] sm:$0xff]
    %v1666 = vld [vmem:[#allocation10 + $0x358] sm:$0xff]
    %v1667 = vld [vmem:[#allocation10 + $0x360] sm:$0xff]
    %v1668 = vld [vmem:[#allocation10 + $0x368] sm:$0xff]
    %v1669 = vld [vmem:[#allocation10 + $0x370] sm:$0xff]
    %v1670 = vld [vmem:[#allocation10 + $0x378] sm:$0xff]
    %v1671 = vld [vmem:[#allocation10 + $0x380] sm:$0xff]
    %v1672 = vld [vmem:[#allocation10 + $0x388] sm:$0xff]
    %v1673 = vld [vmem:[#allocation10 + $0x390] sm:$0xff]
    %v1674 = vld [vmem:[#allocation10 + $0x398] sm:$0xff]
    %v1675 = vld [vmem:[#allocation10 + $0x3a0] sm:$0xff]
    %v1676 = vld [vmem:[#allocation10 + $0x3a8] sm:$0xff]
    %v1677 = vld [vmem:[#allocation10 + $0x3b0] sm:$0xff]
    %v1678 = vld [vmem:[#allocation10 + $0x3b8] sm:$0xff]
    %v1679 = vld [vmem:[#allocation10 + $0x3c0] sm:$0xff]
    %v1680 = vld [vmem:[#allocation10 + $0x3c8] sm:$0xff]
    %v1681 = vld [vmem:[#allocation10 + $0x3d0] sm:$0xff]
    %v1682 = vld [vmem:[#allocation10 + $0x3d8] sm:$0xff]
    %v1683 = vld [vmem:[#allocation10 + $0x3e0] sm:$0xff]
    %v1684 = vld [vmem:[#allocation10 + $0x3e8] sm:$0xff]
    %v1685 = vld [vmem:[#allocation10 + $0x3f0] sm:$0xff]
    %v1686 = vld [vmem:[#allocation10 + $0x3f8] sm:$0xff]
    %v1687 = vld [vmem:[#allocation10 + $0x400] sm:$0xff]
    %v1688 = vld [vmem:[#allocation10 + $0x408] sm:$0xff]
    %v1689 = vld [vmem:[#allocation10 + $0x410] sm:$0xff]
    %v1690 = vld [vmem:[#allocation10 + $0x418] sm:$0xff]
    %v1691 = vld [vmem:[#allocation10 + $0x420] sm:$0xff]
    %v1692 = vld [vmem:[#allocation10 + $0x428] sm:$0xff]
    %v1693 = vld [vmem:[#allocation10 + $0x430] sm:$0xff]
    %v1694 = vld [vmem:[#allocation10 + $0x438] sm:$0xff]
    %v1695 = vld [vmem:[#allocation10 + $0x440] sm:$0xff]
    %v1696 = vld [vmem:[#allocation10 + $0x448] sm:$0xff]
    %v1697 = vld [vmem:[#allocation10 + $0x450] sm:$0xff]
    %v1698 = vld [vmem:[#allocation10 + $0x458] sm:$0xff]
    %v1699 = vld [vmem:[#allocation10 + $0x460] sm:$0xff]
    %v1700 = vld [vmem:[#allocation10 + $0x468] sm:$0xff]
    %v1701 = vld [vmem:[#allocation10 + $0x470] sm:$0xff]
    %v1702 = vld [vmem:[#allocation10 + $0x478] sm:$0xff]
    %v1703 = vld [vmem:[#allocation10 + $0x480] sm:$0xff]
    %v1704 = vld [vmem:[#allocation10 + $0x488] sm:$0xff]
    %v1705 = vld [vmem:[#allocation10 + $0x490] sm:$0xff]
    %v1706 = vld [vmem:[#allocation10 + $0x498] sm:$0xff]
    %v1707 = vld [vmem:[#allocation10 + $0x4a0] sm:$0xff]
    %v1708 = vld [vmem:[#allocation10 + $0x4a8] sm:$0xff]
    %v1709 = vld [vmem:[#allocation10 + $0x4b0] sm:$0xff]
    %v1710 = vld [vmem:[#allocation10 + $0x4b8] sm:$0xff]
    %v1711 = vld [vmem:[#allocation10 + $0x4c0] sm:$0xff]
    %v1712 = vld [vmem:[#allocation10 + $0x4c8] sm:$0xff]
    %v1713 = vld [vmem:[#allocation10 + $0x4d0] sm:$0xff]
    %v1714 = vld [vmem:[#allocation10 + $0x4d8] sm:$0xff]
    %v1715 = vld [vmem:[#allocation10 + $0x4e0] sm:$0xff]
    %v1716 = vld [vmem:[#allocation10 + $0x4e8] sm:$0xff]
    %v1717 = vld [vmem:[#allocation10 + $0x4f0] sm:$0xff]
    %v1718 = vld [vmem:[#allocation10 + $0x4f8] sm:$0xff]
    %v1719 = vld [vmem:[#allocation10 + $0x500] sm:$0xff]
    %v1720 = vld [vmem:[#allocation10 + $0x508] sm:$0xff]
    %v1721 = vld [vmem:[#allocation10 + $0x510] sm:$0xff]
    %v1722 = vld [vmem:[#allocation10 + $0x518] sm:$0xff]
    %v1723 = vld [vmem:[#allocation10 + $0x520] sm:$0xff]
    %v1724 = vld [vmem:[#allocation10 + $0x528] sm:$0xff]
    %v1725 = vld [vmem:[#allocation10 + $0x530] sm:$0xff]
    %v1726 = vld [vmem:[#allocation10 + $0x538] sm:$0xff]
    %v1727 = vld [vmem:[#allocation10 + $0x540] sm:$0xff]
    %v1728 = vld [vmem:[#allocation10 + $0x548] sm:$0xff]
    %v1729 = vld [vmem:[#allocation10 + $0x550] sm:$0xff]
    %v1730 = vld [vmem:[#allocation10 + $0x558] sm:$0xff]
    %v1731 = vld [vmem:[#allocation10 + $0x560] sm:$0xff]
    %v1732 = vld [vmem:[#allocation10 + $0x568] sm:$0xff]
    %v1733 = vld [vmem:[#allocation10 + $0x570] sm:$0xff]
    %v1734 = vld [vmem:[#allocation10 + $0x578] sm:$0xff]
    %v1735 = vld [vmem:[#allocation10 + $0x580] sm:$0xff]
    %v1736 = vld [vmem:[#allocation10 + $0x588] sm:$0xff]
    %v1737 = vld [vmem:[#allocation10 + $0x590] sm:$0xff]
    %v1738 = vld [vmem:[#allocation10 + $0x598] sm:$0xff]
    %v1739 = vld [vmem:[#allocation10 + $0x5a0] sm:$0xff]
    %v1740 = vld [vmem:[#allocation10 + $0x5a8] sm:$0xff]
    %v1741 = vld [vmem:[#allocation10 + $0x5b0] sm:$0xff]
    %v1742 = vld [vmem:[#allocation10 + $0x5b8] sm:$0xff]
    %v1743 = vld [vmem:[#allocation10 + $0x5c0] sm:$0xff]
    %v1744 = vld [vmem:[#allocation10 + $0x5c8] sm:$0xff]
    %v1745 = vld [vmem:[#allocation10 + $0x5d0] sm:$0xff]
    %v1746 = vld [vmem:[#allocation10 + $0x5d8] sm:$0xff]
    %v1747 = vld [vmem:[#allocation10 + $0x5e0] sm:$0xff]
    %v1748 = vld [vmem:[#allocation10 + $0x5e8] sm:$0xff]
    %v1749 = vld [vmem:[#allocation10 + $0x5f0] sm:$0xff]
    %v1750 = vld [vmem:[#allocation10 + $0x5f8] sm:$0xff]
    %v1751 = vld [vmem:[#allocation10 + $0x600] sm:$0xff]
    %v1752 = vld [vmem:[#allocation10 + $0x608] sm:$0xff]
    %v1753 = vld [vmem:[#allocation10 + $0x610] sm:$0xff]
    %v1754 = vld [vmem:[#allocation10 + $0x618] sm:$0xff]
    %v1755 = vld [vmem:[#allocation10 + $0x620] sm:$0xff]
    %v1756 = vld [vmem:[#allocation10 + $0x628] sm:$0xff]
    %v1757 = vld [vmem:[#allocation10 + $0x630] sm:$0xff]
    %v1758 = vld [vmem:[#allocation10 + $0x638] sm:$0xff]
    %v1759 = vld [vmem:[#allocation10 + $0x640] sm:$0xff]
    %v1760 = vld [vmem:[#allocation10 + $0x648] sm:$0xff]
    %v1761 = vld [vmem:[#allocation10 + $0x650] sm:$0xff]
    %v1762 = vld [vmem:[#allocation10 + $0x658] sm:$0xff]
    %v1763 = vld [vmem:[#allocation10 + $0x660] sm:$0xff]
    %v1764 = vld [vmem:[#allocation10 + $0x668] sm:$0xff]
    %v1765 = vld [vmem:[#allocation10 + $0x670] sm:$0xff]
    %v1766 = vld [vmem:[#allocation10 + $0x678] sm:$0xff]
    %v1767 = vld [vmem:[#allocation10 + $0x680] sm:$0xff]
    %v1768 = vld [vmem:[#allocation10 + $0x688] sm:$0xff]
    %v1769 = vld [vmem:[#allocation10 + $0x690] sm:$0xff]
    %v1770 = vld [vmem:[#allocation10 + $0x698] sm:$0xff]
    %v1771 = vld [vmem:[#allocation10 + $0x6a0] sm:$0xff]
    %v1772 = vld [vmem:[#allocation10 + $0x6a8] sm:$0xff]
    %v1773 = vld [vmem:[#allocation10 + $0x6b0] sm:$0xff]
    %v1774 = vld [vmem:[#allocation10 + $0x6b8] sm:$0xff]
    %v1775 = vld [vmem:[#allocation10 + $0x6c0] sm:$0xff]
    %v1776 = vld [vmem:[#allocation10 + $0x6c8] sm:$0xff]
    %v1777 = vld [vmem:[#allocation10 + $0x6d0] sm:$0xff]
    %v1778 = vld [vmem:[#allocation10 + $0x6d8] sm:$0xff]
    %v1779 = vld [vmem:[#allocation10 + $0x6e0] sm:$0xff]
    %v1780 = vld [vmem:[#allocation10 + $0x6e8] sm:$0xff]
    %v1781 = vld [vmem:[#allocation10 + $0x6f0] sm:$0xff]
    %v1782 = vld [vmem:[#allocation10 + $0x6f8] sm:$0xff]
    %v1783 = vld [vmem:[#allocation10 + $0x700] sm:$0xff]
    %v1784 = vld [vmem:[#allocation10 + $0x708] sm:$0xff]
    %v1785 = vld [vmem:[#allocation10 + $0x710] sm:$0xff]
    %v1786 = vld [vmem:[#allocation10 + $0x718] sm:$0xff]
    %v1787 = vld [vmem:[#allocation10 + $0x720] sm:$0xff]
    %v1788 = vld [vmem:[#allocation10 + $0x728] sm:$0xff]
    %v1789 = vld [vmem:[#allocation10 + $0x730] sm:$0xff]
    %v1790 = vld [vmem:[#allocation10 + $0x738] sm:$0xff]
    %v1791 = vld [vmem:[#allocation10 + $0x740] sm:$0xff]
    %v1792 = vld [vmem:[#allocation10 + $0x748] sm:$0xff]
    %v1793 = vld [vmem:[#allocation10 + $0x750] sm:$0xff]
    %v1794 = vld [vmem:[#allocation10 + $0x758] sm:$0xff]
    %v1795 = vld [vmem:[#allocation10 + $0x760] sm:$0xff]
    %v1796 = vld [vmem:[#allocation10 + $0x768] sm:$0xff]
    %v1797 = vld [vmem:[#allocation10 + $0x770] sm:$0xff]
    %v1798 = vld [vmem:[#allocation10 + $0x778] sm:$0xff]
    %v1799 = vld [vmem:[#allocation10 + $0x780] sm:$0xff]
    %v1800 = vld [vmem:[#allocation10 + $0x788] sm:$0xff]
    %v1801 = vld [vmem:[#allocation10 + $0x790] sm:$0xff]
    %v1802 = vld [vmem:[#allocation10 + $0x798] sm:$0xff]
    %v1803 = vld [vmem:[#allocation10 + $0x7a0] sm:$0xff]
    %v1804 = vld [vmem:[#allocation10 + $0x7a8] sm:$0xff]
    %v1805 = vld [vmem:[#allocation10 + $0x7b0] sm:$0xff]
    %v1806 = vld [vmem:[#allocation10 + $0x7b8] sm:$0xff]
    %v1807 = vld [vmem:[#allocation10 + $0x7c0] sm:$0xff]
    %v1808 = vld [vmem:[#allocation10 + $0x7c8] sm:$0xff]
    %v1809 = vld [vmem:[#allocation10 + $0x7d0] sm:$0xff]
    %v1810 = vld [vmem:[#allocation10 + $0x7d8] sm:$0xff]
    %v1811 = vld [vmem:[#allocation10 + $0x7e0] sm:$0xff]
    %v1812 = vld [vmem:[#allocation10 + $0x7e8] sm:$0xff]
    %v1813 = vld [vmem:[#allocation10 + $0x7f0] sm:$0xff]
    %v1814 = vld [vmem:[#allocation10 + $0x7f8] sm:$0xff]
    %v1815 = vld [vmem:[#allocation10 + $0x800] sm:$0xff]
    %v1816 = vld [vmem:[#allocation10 + $0x808] sm:$0xff]
    %v1817 = vld [vmem:[#allocation10 + $0x810] sm:$0xff]
    %v1818 = vld [vmem:[#allocation10 + $0x818] sm:$0xff]
    %v1819 = vld [vmem:[#allocation10 + $0x820] sm:$0xff]
    %v1820 = vld [vmem:[#allocation10 + $0x828] sm:$0xff]
    %v1821 = vld [vmem:[#allocation10 + $0x830] sm:$0xff]
    %v1822 = vld [vmem:[#allocation10 + $0x838] sm:$0xff]
    %v1823 = vld [vmem:[#allocation10 + $0x840] sm:$0xff]
    %v1824 = vld [vmem:[#allocation10 + $0x848] sm:$0xff]
    %v1825 = vld [vmem:[#allocation10 + $0x850] sm:$0xff]
    %v1826 = vld [vmem:[#allocation10 + $0x858] sm:$0xff]
    %v1827 = vld [vmem:[#allocation10 + $0x860] sm:$0xff]
    %v1828 = vld [vmem:[#allocation10 + $0x868] sm:$0xff]
    %v1829 = vld [vmem:[#allocation10 + $0x870] sm:$0xff]
    %v1830 = vld [vmem:[#allocation10 + $0x878] sm:$0xff]
    %v1831 = vld [vmem:[#allocation10 + $0x880] sm:$0xff]
    %v1832 = vld [vmem:[#allocation10 + $0x888] sm:$0xff]
    %v1833 = vld [vmem:[#allocation10 + $0x890] sm:$0xff]
    %v1834 = vld [vmem:[#allocation10 + $0x898] sm:$0xff]
    %v1835 = vld [vmem:[#allocation10 + $0x8a0] sm:$0xff]
    %v1836 = vld [vmem:[#allocation10 + $0x8a8] sm:$0xff]
    %v1837 = vld [vmem:[#allocation10 + $0x8b0] sm:$0xff]
    %v1838 = vld [vmem:[#allocation10 + $0x8b8] sm:$0xff]
    %v1839 = vld [vmem:[#allocation10 + $0x8c0] sm:$0xff]
    %v1840 = vld [vmem:[#allocation10 + $0x8c8] sm:$0xff]
    %v1841 = vld [vmem:[#allocation10 + $0x8d0] sm:$0xff]
    %v1842 = vld [vmem:[#allocation10 + $0x8d8] sm:$0xff]
    %v1843 = vld [vmem:[#allocation10 + $0x8e0] sm:$0xff]
    %v1844 = vld [vmem:[#allocation10 + $0x8e8] sm:$0xff]
    %v1845 = vld [vmem:[#allocation10 + $0x8f0] sm:$0xff]
    %v1846 = vld [vmem:[#allocation10 + $0x8f8] sm:$0xff]
    %v1847 = vld [vmem:[#allocation10 + $0x900] sm:$0xff]
    %v1848 = vld [vmem:[#allocation10 + $0x908] sm:$0xff]
    %v1849 = vld [vmem:[#allocation10 + $0x910] sm:$0xff]
    %v1850 = vld [vmem:[#allocation10 + $0x918] sm:$0xff]
    %v1851 = vld [vmem:[#allocation10 + $0x920] sm:$0xff]
    %v1852 = vld [vmem:[#allocation10 + $0x928] sm:$0xff]
    %v1853 = vld [vmem:[#allocation10 + $0x930] sm:$0xff]
    %v1854 = vld [vmem:[#allocation10 + $0x938] sm:$0xff]
    %v1855 = vld [vmem:[#allocation10 + $0x940] sm:$0xff]
    %v1856 = vld [vmem:[#allocation10 + $0x948] sm:$0xff]
    %v1857 = vld [vmem:[#allocation10 + $0x950] sm:$0xff]
    %v1858 = vld [vmem:[#allocation10 + $0x958] sm:$0xff]
    %v1859 = vld [vmem:[#allocation10 + $0x960] sm:$0xff]
    %v1860 = vld [vmem:[#allocation10 + $0x968] sm:$0xff]
    %v1861 = vld [vmem:[#allocation10 + $0x970] sm:$0xff]
    %v1862 = vld [vmem:[#allocation10 + $0x978] sm:$0xff]
    %v1863 = vld [vmem:[#allocation10 + $0x980] sm:$0xff]
    %v1864 = vld [vmem:[#allocation10 + $0x988] sm:$0xff]
    %v1865 = vld [vmem:[#allocation10 + $0x990] sm:$0xff]
    %v1866 = vld [vmem:[#allocation10 + $0x998] sm:$0xff]
    %v1867 = vld [vmem:[#allocation10 + $0x9a0] sm:$0xff]
    %v1868 = vld [vmem:[#allocation10 + $0x9a8] sm:$0xff]
    %v1869 = vld [vmem:[#allocation10 + $0x9b0] sm:$0xff]
    %v1870 = vld [vmem:[#allocation10 + $0x9b8] sm:$0xff]
    %v1871 = vld [vmem:[#allocation10 + $0x9c0] sm:$0xff]
    %v1872 = vld [vmem:[#allocation10 + $0x9c8] sm:$0xff]
    %v1873 = vld [vmem:[#allocation10 + $0x9d0] sm:$0xff]
    %v1874 = vld [vmem:[#allocation10 + $0x9d8] sm:$0xff]
    %v1875 = vld [vmem:[#allocation10 + $0x9e0] sm:$0xff]
    %v1876 = vld [vmem:[#allocation10 + $0x9e8] sm:$0xff]
    %v1877 = vld [vmem:[#allocation10 + $0x9f0] sm:$0xff]
    %v1878 = vld [vmem:[#allocation10 + $0x9f8] sm:$0xff]
    %v1879 = vld [vmem:[#allocation10 + $0xa00] sm:$0xff]
    %v1880 = vld [vmem:[#allocation10 + $0xa08] sm:$0xff]
    %v1881 = vld [vmem:[#allocation10 + $0xa10] sm:$0xff]
    %v1882 = vld [vmem:[#allocation10 + $0xa18] sm:$0xff]
    %v1883 = vld [vmem:[#allocation10 + $0xa20] sm:$0xff]
    %v1884 = vld [vmem:[#allocation10 + $0xa28] sm:$0xff]
    %v1885 = vld [vmem:[#allocation10 + $0xa30] sm:$0xff]
    %v1886 = vld [vmem:[#allocation10 + $0xa38] sm:$0xff]
    %v1887 = vld [vmem:[#allocation10 + $0xa40] sm:$0xff]
    %v1888 = vld [vmem:[#allocation10 + $0xa48] sm:$0xff]
    %v1889 = vld [vmem:[#allocation10 + $0xa50] sm:$0xff]
    %v1890 = vld [vmem:[#allocation10 + $0xa58] sm:$0xff]
    %v1891 = vld [vmem:[#allocation10 + $0xa60] sm:$0xff]
    %v1892 = vld [vmem:[#allocation10 + $0xa68] sm:$0xff]
    %v1893 = vld [vmem:[#allocation10 + $0xa70] sm:$0xff]
    %v1894 = vld [vmem:[#allocation10 + $0xa78] sm:$0xff]
    %v1895 = vld [vmem:[#allocation10 + $0xa80] sm:$0xff]
    %v1896 = vld [vmem:[#allocation10 + $0xa88] sm:$0xff]
    %v1897 = vld [vmem:[#allocation10 + $0xa90] sm:$0xff]
    %v1898 = vld [vmem:[#allocation10 + $0xa98] sm:$0xff]
    %v1899 = vld [vmem:[#allocation10 + $0xaa0] sm:$0xff]
    %v1900 = vld [vmem:[#allocation10 + $0xaa8] sm:$0xff]
    %v1901 = vld [vmem:[#allocation10 + $0xab0] sm:$0xff]
    %v1902 = vld [vmem:[#allocation10 + $0xab8] sm:$0xff]
    %v1903 = vld [vmem:[#allocation10 + $0xac0] sm:$0xff]
    %v1904 = vld [vmem:[#allocation10 + $0xac8] sm:$0xff]
    %v1905 = vld [vmem:[#allocation10 + $0xad0] sm:$0xff]
    %v1906 = vld [vmem:[#allocation10 + $0xad8] sm:$0xff]
    %v1907 = vld [vmem:[#allocation10 + $0xae0] sm:$0xff]
    %v1908 = vld [vmem:[#allocation10 + $0xae8] sm:$0xff]
    %v1909 = vld [vmem:[#allocation10 + $0xaf0] sm:$0xff]
    %v1910 = vld [vmem:[#allocation10 + $0xaf8] sm:$0xff]
    %v1911 = vld [vmem:[#allocation10 + $0xb00] sm:$0xff]
    %v1912 = vld [vmem:[#allocation10 + $0xb08] sm:$0xff]
    %v1913 = vld [vmem:[#allocation10 + $0xb10] sm:$0xff]
    %v1914 = vld [vmem:[#allocation10 + $0xb18] sm:$0xff]
    %v1915 = vld [vmem:[#allocation10 + $0xb20] sm:$0xff]
    %v1916 = vld [vmem:[#allocation10 + $0xb28] sm:$0xff]
    %v1917 = vld [vmem:[#allocation10 + $0xb30] sm:$0xff]
    %v1918 = vld [vmem:[#allocation10 + $0xb38] sm:$0xff]
    %v1919 = vld [vmem:[#allocation10 + $0xb40] sm:$0xff]
    %v1920 = vld [vmem:[#allocation10 + $0xb48] sm:$0xff]
    %v1921 = vld [vmem:[#allocation10 + $0xb50] sm:$0xff]
    %v1922 = vld [vmem:[#allocation10 + $0xb58] sm:$0xff]
    %v1923 = vld [vmem:[#allocation10 + $0xb60] sm:$0xff]
    %v1924 = vld [vmem:[#allocation10 + $0xb68] sm:$0xff]
    %v1925 = vld [vmem:[#allocation10 + $0xb70] sm:$0xff]
    %v1926 = vld [vmem:[#allocation10 + $0xb78] sm:$0xff]
    %v1927 = vld [vmem:[#allocation10 + $0xb80] sm:$0xff]
    %v1928 = vld [vmem:[#allocation10 + $0xb88] sm:$0xff]
    %v1929 = vld [vmem:[#allocation10 + $0xb90] sm:$0xff]
    %v1930 = vld [vmem:[#allocation10 + $0xb98] sm:$0xff]
    %v1931 = vld [vmem:[#allocation10 + $0xba0] sm:$0xff]
    %v1932 = vld [vmem:[#allocation10 + $0xba8] sm:$0xff]
    %v1933 = vld [vmem:[#allocation10 + $0xbb0] sm:$0xff]
    %v1934 = vld [vmem:[#allocation10 + $0xbb8] sm:$0xff]
    %v1935 = vld [vmem:[#allocation10 + $0xbc0] sm:$0xff]
    %v1936 = vld [vmem:[#allocation10 + $0xbc8] sm:$0xff]
    %v1937 = vld [vmem:[#allocation10 + $0xbd0] sm:$0xff]
    %v1938 = vld [vmem:[#allocation10 + $0xbd8] sm:$0xff]
    %v1939 = vld [vmem:[#allocation10 + $0xbe0] sm:$0xff]
    %v1940 = vld [vmem:[#allocation10 + $0xbe8] sm:$0xff]
    %v1941 = vld [vmem:[#allocation10 + $0xbf0] sm:$0xff]
    %v1942 = vld [vmem:[#allocation10 + $0xbf8] sm:$0xff]
    %v1943 = vld [vmem:[#allocation10 + $0xc00] sm:$0xff]
    %v1944 = vld [vmem:[#allocation10 + $0xc08] sm:$0xff]
    %v1945 = vld [vmem:[#allocation10 + $0xc10] sm:$0xff]
    %v1946 = vld [vmem:[#allocation10 + $0xc18] sm:$0xff]
    %v1947 = vld [vmem:[#allocation10 + $0xc20] sm:$0xff]
    %v1948 = vld [vmem:[#allocation10 + $0xc28] sm:$0xff]
    %v1949 = vld [vmem:[#allocation10 + $0xc30] sm:$0xff]
    %v1950 = vld [vmem:[#allocation10 + $0xc38] sm:$0xff]
    %v1951 = vld [vmem:[#allocation10 + $0xc40] sm:$0xff]
    %v1952 = vld [vmem:[#allocation10 + $0xc48] sm:$0xff]
    %v1953 = vld [vmem:[#allocation10 + $0xc50] sm:$0xff]
    %v1954 = vld [vmem:[#allocation10 + $0xc58] sm:$0xff]
    %v1955 = vld [vmem:[#allocation10 + $0xc60] sm:$0xff]
    %v1956 = vld [vmem:[#allocation10 + $0xc68] sm:$0xff]
    %v1957 = vld [vmem:[#allocation10 + $0xc70] sm:$0xff]
    %v1958 = vld [vmem:[#allocation10 + $0xc78] sm:$0xff]
    %v1959 = vld [vmem:[#allocation10 + $0xc80] sm:$0xff]
    %v1960 = vld [vmem:[#allocation10 + $0xc88] sm:$0xff]
    %v1961 = vld [vmem:[#allocation10 + $0xc90] sm:$0xff]
    %v1962 = vld [vmem:[#allocation10 + $0xc98] sm:$0xff]
    %v1963 = vld [vmem:[#allocation10 + $0xca0] sm:$0xff]
    %v1964 = vld [vmem:[#allocation10 + $0xca8] sm:$0xff]
    %v1965 = vld [vmem:[#allocation10 + $0xcb0] sm:$0xff]
    %v1966 = vld [vmem:[#allocation10 + $0xcb8] sm:$0xff]
    %v1967 = vld [vmem:[#allocation10 + $0xcc0] sm:$0xff]
    %v1968 = vld [vmem:[#allocation10 + $0xcc8] sm:$0xff]
    %v1969 = vld [vmem:[#allocation10 + $0xcd0] sm:$0xff]
    %v1970 = vld [vmem:[#allocation10 + $0xcd8] sm:$0xff]
    %v1971 = vld [vmem:[#allocation10 + $0xce0] sm:$0xff]
    %v1972 = vld [vmem:[#allocation10 + $0xce8] sm:$0xff]
    %v1973 = vld [vmem:[#allocation10 + $0xcf0] sm:$0xff]
    %v1974 = vld [vmem:[#allocation10 + $0xcf8] sm:$0xff]
    %v1975 = vld [vmem:[#allocation10 + $0xd00] sm:$0xff]
    %v1976 = vld [vmem:[#allocation10 + $0xd08] sm:$0xff]
    %v1977 = vld [vmem:[#allocation10 + $0xd10] sm:$0xff]
    %v1978 = vld [vmem:[#allocation10 + $0xd18] sm:$0xff]
    %v1979 = vld [vmem:[#allocation10 + $0xd20] sm:$0xff]
    %v1980 = vld [vmem:[#allocation10 + $0xd28] sm:$0xff]
    %v1981 = vld [vmem:[#allocation10 + $0xd30] sm:$0xff]
    %v1982 = vld [vmem:[#allocation10 + $0xd38] sm:$0xff]
    %v1983 = vld [vmem:[#allocation10 + $0xd40] sm:$0xff]
    %v1984 = vld [vmem:[#allocation10 + $0xd48] sm:$0xff]
    %v1985 = vld [vmem:[#allocation10 + $0xd50] sm:$0xff]
    %v1986 = vld [vmem:[#allocation10 + $0xd58] sm:$0xff]
    %v1987 = vld [vmem:[#allocation10 + $0xd60] sm:$0xff]
    %v1988 = vld [vmem:[#allocation10 + $0xd68] sm:$0xff]
    %v1989 = vld [vmem:[#allocation10 + $0xd70] sm:$0xff]
    %v1990 = vld [vmem:[#allocation10 + $0xd78] sm:$0xff]
    %v1991 = vld [vmem:[#allocation10 + $0xd80] sm:$0xff]
    %v1992 = vld [vmem:[#allocation10 + $0xd88] sm:$0xff]
    %v1993 = vld [vmem:[#allocation10 + $0xd90] sm:$0xff]
    %v1994 = vld [vmem:[#allocation10 + $0xd98] sm:$0xff]
    %v1995 = vld [vmem:[#allocation10 + $0xda0] sm:$0xff]
    %v1996 = vld [vmem:[#allocation10 + $0xda8] sm:$0xff]
    %v1997 = vld [vmem:[#allocation10 + $0xdb0] sm:$0xff]
    %v1998 = vld [vmem:[#allocation10 + $0xdb8] sm:$0xff]
    %v1999 = vld [vmem:[#allocation10 + $0xdc0] sm:$0xff]
    %v2000 = vld [vmem:[#allocation10 + $0xdc8] sm:$0xff]
    %v2001 = vld [vmem:[#allocation10 + $0xdd0] sm:$0xff]
    %v2002 = vld [vmem:[#allocation10 + $0xdd8] sm:$0xff]
    %v2003 = vld [vmem:[#allocation10 + $0xde0] sm:$0xff]
    %v2004 = vld [vmem:[#allocation10 + $0xde8] sm:$0xff]
    %v2005 = vld [vmem:[#allocation10 + $0xdf0] sm:$0xff]
    %v2006 = vld [vmem:[#allocation10 + $0xdf8] sm:$0xff]
    %v2007 = vld [vmem:[#allocation10 + $0xe00] sm:$0xff]
    %v2008 = vld [vmem:[#allocation10 + $0xe08] sm:$0xff]
    %v2009 = vld [vmem:[#allocation10 + $0xe10] sm:$0xff]
    %v2010 = vld [vmem:[#allocation10 + $0xe18] sm:$0xff]
    %v2011 = vld [vmem:[#allocation10 + $0xe20] sm:$0xff]
    %v2012 = vld [vmem:[#allocation10 + $0xe28] sm:$0xff]
    %v2013 = vld [vmem:[#allocation10 + $0xe30] sm:$0xff]
    %v2014 = vld [vmem:[#allocation10 + $0xe38] sm:$0xff]
    %v2015 = vld [vmem:[#allocation10 + $0xe40] sm:$0xff]
    %v2016 = vld [vmem:[#allocation10 + $0xe48] sm:$0xff]
    %v2017 = vld [vmem:[#allocation10 + $0xe50] sm:$0xff]
    %v2018 = vld [vmem:[#allocation10 + $0xe58] sm:$0xff]
    %v2019 = vld [vmem:[#allocation10 + $0xe60] sm:$0xff]
    %v2020 = vld [vmem:[#allocation10 + $0xe68] sm:$0xff]
    %v2021 = vld [vmem:[#allocation10 + $0xe70] sm:$0xff]
    %v2022 = vld [vmem:[#allocation10 + $0xe78] sm:$0xff]
    %v2023 = vld [vmem:[#allocation10 + $0xe80] sm:$0xff]
    %v2024 = vld [vmem:[#allocation10 + $0xe88] sm:$0xff]
    %v2025 = vld [vmem:[#allocation10 + $0xe90] sm:$0xff]
    %v2026 = vld [vmem:[#allocation10 + $0xe98] sm:$0xff]
    %v2027 = vld [vmem:[#allocation10 + $0xea0] sm:$0xff]
    %v2028 = vld [vmem:[#allocation10 + $0xea8] sm:$0xff]
    %v2029 = vld [vmem:[#allocation10 + $0xeb0] sm:$0xff]
    %v2030 = vld [vmem:[#allocation10 + $0xeb8] sm:$0xff]
    %v2031 = vld [vmem:[#allocation10 + $0xec0] sm:$0xff]
    %v2032 = vld [vmem:[#allocation10 + $0xec8] sm:$0xff]
    %v2033 = vld [vmem:[#allocation10 + $0xed0] sm:$0xff]
    %v2034 = vld [vmem:[#allocation10 + $0xed8] sm:$0xff]
    %v2035 = vld [vmem:[#allocation10 + $0xee0] sm:$0xff]
    %v2036 = vld [vmem:[#allocation10 + $0xee8] sm:$0xff]
    %v2037 = vld [vmem:[#allocation10 + $0xef0] sm:$0xff]
    %v2038 = vld [vmem:[#allocation10 + $0xef8] sm:$0xff]
    %v2039 = vld [vmem:[#allocation10 + $0xf00] sm:$0xff]
    %v2040 = vld [vmem:[#allocation10 + $0xf08] sm:$0xff]
    %v2041 = vld [vmem:[#allocation10 + $0xf10] sm:$0xff]
    %v2042 = vld [vmem:[#allocation10 + $0xf18] sm:$0xff]
    %v2043 = vld [vmem:[#allocation10 + $0xf20] sm:$0xff]
    %v2044 = vld [vmem:[#allocation10 + $0xf28] sm:$0xff]
    %v2045 = vld [vmem:[#allocation10 + $0xf30] sm:$0xff]
    %v2046 = vld [vmem:[#allocation10 + $0xf38] sm:$0xff]
    %v2047 = vld [vmem:[#allocation10 + $0xf40] sm:$0xff]
    %v2048 = vld [vmem:[#allocation10 + $0xf48] sm:$0xff]
    %v2049 = vld [vmem:[#allocation10 + $0xf50] sm:$0xff]
    %v2050 = vld [vmem:[#allocation10 + $0xf58] sm:$0xff]
    %v2051 = vld [vmem:[#allocation10 + $0xf60] sm:$0xff]
    %v2052 = vld [vmem:[#allocation10 + $0xf68] sm:$0xff]
    %v2053 = vld [vmem:[#allocation10 + $0xf70] sm:$0xff]
    %v2054 = vld [vmem:[#allocation10 + $0xf78] sm:$0xff]
    %v2055 = vld [vmem:[#allocation10 + $0xf80] sm:$0xff]
    %v2056 = vld [vmem:[#allocation10 + $0xf88] sm:$0xff]
    %v2057 = vld [vmem:[#allocation10 + $0xf90] sm:$0xff]
    %v2058 = vld [vmem:[#allocation10 + $0xf98] sm:$0xff]
    %v2059 = vld [vmem:[#allocation10 + $0xfa0] sm:$0xff]
    %v2060 = vld [vmem:[#allocation10 + $0xfa8] sm:$0xff]
    %v2061 = vld [vmem:[#allocation10 + $0xfb0] sm:$0xff]
    %v2062 = vld [vmem:[#allocation10 + $0xfb8] sm:$0xff]
    %v2063 = vld [vmem:[#allocation10 + $0xfc0] sm:$0xff]
    %v2064 = vld [vmem:[#allocation10 + $0xfc8] sm:$0xff]
    %v2065 = vld [vmem:[#allocation10 + $0xfd0] sm:$0xff]
    %v2066 = vld [vmem:[#allocation10 + $0xfd8] sm:$0xff]
    %v2067 = vld [vmem:[#allocation10 + $0xfe0] sm:$0xff]
    %v2068 = vld [vmem:[#allocation10 + $0xfe8] sm:$0xff]
    %v2069 = vld [vmem:[#allocation10 + $0xff0] sm:$0xff]
    %v2070 = vld [vmem:[#allocation10 + $0xff8] sm:$0xff]
    %v2071 = vld [vmem:[#allocation10 + $0x1000] sm:$0xff]
    %v2072 = vld [vmem:[#allocation10 + $0x1008] sm:$0xff]
    %v2073 = vld [vmem:[#allocation10 + $0x1010] sm:$0xff]
    %v2074 = vld [vmem:[#allocation10 + $0x1018] sm:$0xff]
    %v2075 = vld [vmem:[#allocation10 + $0x1020] sm:$0xff]
    %v2076 = vld [vmem:[#allocation10 + $0x1028] sm:$0xff]
    %v2077 = vld [vmem:[#allocation10 + $0x1030] sm:$0xff]
    %v2078 = vld [vmem:[#allocation10 + $0x1038] sm:$0xff]
    %v2079 = vld [vmem:[#allocation10 + $0x1040] sm:$0xff]
    %v2080 = vld [vmem:[#allocation10 + $0x1048] sm:$0xff]
    %v2081 = vld [vmem:[#allocation10 + $0x1050] sm:$0xff]
    %v2082 = vld [vmem:[#allocation10 + $0x1058] sm:$0xff]
    %v2083 = vld [vmem:[#allocation10 + $0x1060] sm:$0xff]
    %v2084 = vld [vmem:[#allocation10 + $0x1068] sm:$0xff]
    %v2085 = vld [vmem:[#allocation10 + $0x1070] sm:$0xff]
    %v2086 = vld [vmem:[#allocation10 + $0x1078] sm:$0xff]
    %v2087 = vld [vmem:[#allocation10 + $0x1080] sm:$0xff]
    %v2088 = vld [vmem:[#allocation10 + $0x1088] sm:$0xff]
    %v2089 = vld [vmem:[#allocation10 + $0x1090] sm:$0xff]
    %v2090 = vld [vmem:[#allocation10 + $0x1098] sm:$0xff]
    %v2091 = vld [vmem:[#allocation10 + $0x10a0] sm:$0xff]
    %v2092 = vld [vmem:[#allocation10 + $0x10a8] sm:$0xff]
    %v2093 = vld [vmem:[#allocation10 + $0x10b0] sm:$0xff]
    %v2094 = vld [vmem:[#allocation10 + $0x10b8] sm:$0xff]
    %v2095 = vld [vmem:[#allocation10 + $0x10c0] sm:$0xff]
    %v2096 = vld [vmem:[#allocation10 + $0x10c8] sm:$0xff]
    %v2097 = vld [vmem:[#allocation10 + $0x10d0] sm:$0xff]
    %v2098 = vld [vmem:[#allocation10 + $0x10d8] sm:$0xff]
    %v2099 = vld [vmem:[#allocation10 + $0x10e0] sm:$0xff]
    %v2100 = vld [vmem:[#allocation10 + $0x10e8] sm:$0xff]
    %v2101 = vld [vmem:[#allocation10 + $0x10f0] sm:$0xff]
    %v2102 = vld [vmem:[#allocation10 + $0x10f8] sm:$0xff]
    %v2103 = vld [vmem:[#allocation10 + $0x1100] sm:$0xff]
    %v2104 = vld [vmem:[#allocation10 + $0x1108] sm:$0xff]
    %v2105 = vld [vmem:[#allocation10 + $0x1110] sm:$0xff]
    %v2106 = vld [vmem:[#allocation10 + $0x1118] sm:$0xff]
    %v2107 = vld [vmem:[#allocation10 + $0x1120] sm:$0xff]
    %v2108 = vld [vmem:[#allocation10 + $0x1128] sm:$0xff]
    %v2109 = vld [vmem:[#allocation10 + $0x1130] sm:$0xff]
    %v2110 = vld [vmem:[#allocation10 + $0x1138] sm:$0xff]
    %v2111 = vld [vmem:[#allocation10 + $0x1140] sm:$0xff]
    %v2112 = vld [vmem:[#allocation10 + $0x1148] sm:$0xff]
    %v2113 = vld [vmem:[#allocation10 + $0x1150] sm:$0xff]
    %v2114 = vld [vmem:[#allocation10 + $0x1158] sm:$0xff]
    %v2115 = vld [vmem:[#allocation10 + $0x1160] sm:$0xff]
    %v2116 = vld [vmem:[#allocation10 + $0x1168] sm:$0xff]
    %v2117 = vld [vmem:[#allocation10 + $0x1170] sm:$0xff]
    %v2118 = vld [vmem:[#allocation10 + $0x1178] sm:$0xff]
    %v2119 = vld [vmem:[#allocation10 + $0x1180] sm:$0xff]
    %v2120 = vld [vmem:[#allocation10 + $0x1188] sm:$0xff]
    %v2121 = vld [vmem:[#allocation10 + $0x1190] sm:$0xff]
    %v2122 = vld [vmem:[#allocation10 + $0x1198] sm:$0xff]
    %v2123 = vld [vmem:[#allocation10 + $0x11a0] sm:$0xff]
    %v2124 = vld [vmem:[#allocation10 + $0x11a8] sm:$0xff]
    %v2125 = vld [vmem:[#allocation10 + $0x11b0] sm:$0xff]
    %v2126 = vld [vmem:[#allocation10 + $0x11b8] sm:$0xff]
    %v2127 = vld [vmem:[#allocation10 + $0x11c0] sm:$0xff]
    %v2128 = vld [vmem:[#allocation10 + $0x11c8] sm:$0xff]
    %v2129 = vld [vmem:[#allocation10 + $0x11d0] sm:$0xff]
    %v2130 = vld [vmem:[#allocation10 + $0x11d8] sm:$0xff]
    %v2131 = vld [vmem:[#allocation10 + $0x11e0] sm:$0xff]
    %v2132 = vld [vmem:[#allocation10 + $0x11e8] sm:$0xff]
    %v2133 = vld [vmem:[#allocation10 + $0x11f0] sm:$0xff]
    %v2134 = vld [vmem:[#allocation10 + $0x11f8] sm:$0xff]
    %v2135 = vld [vmem:[#allocation12] sm:$0x7]
    %v2137 = vperm.slane %v2135, 0
    %v2138 = vperm.slane %v2135, 1
    %v2139 = vperm.slane %v2135, 2
    %2143 = vmatpush.msra.mxu0 %v1604
    %2144 = vmatpush.msra.mxu0 %v1601
    %2145 = vmatpush.msra.mxu0 %v1598
    %2146 = vmatpush.msra.mxu0 %v1595
    %2147 = vmatpush.msra.mxu0 %v1592
    %2148 = vmatpush.msra.mxu0 %v1589
    %2149 = vmatpush.msra.mxu0 %v1586
    %2150 = vmatpush.msra.mxu0 %v1583
    %2151 = vmatpush.msra.mxu0 %v1580
    %2152 = vmatpush.msra.mxu0 %v1577
    %2153 = vmatpush.msra.mxu0 %v1574
    %2154 = vmatpush.msra.mxu0 %v1571
    %2155 = vmatpush.msra.mxu0 %v1568
    %2156 = vmatpush.msra.mxu0 %v1565
    %2157 = vmatpush.msra.mxu0 %v1562
    %2158 = vmatpush.msra.mxu0 %v1559
    %2159 = vmatmul.f32.gmra.mxu0 %v1535
    %v2160 = vpop.f32.mrf.mxu0
    %v2161 = vadd.f32 %v2137, %v2160
    %2162 = vmatmul.f32.gmra.mxu0 %v1547
    %v2163 = vpop.f32.mrf.mxu0
    %v2164 = vadd.f32 %v2137, %v2163
    %2165 = vdwg.mxu0
    %2166 = vmatpush.msra.mxu0 %v1652
    %2167 = vmatpush.msra.mxu0 %v1649
    %2168 = vmatpush.msra.mxu0 %v1646
    %2169 = vmatpush.msra.mxu0 %v1643
    %2170 = vmatpush.msra.mxu0 %v1640
    %2171 = vmatpush.msra.mxu0 %v1637
    %2172 = vmatpush.msra.mxu0 %v1634
    %2173 = vmatpush.msra.mxu0 %v1631
    %2174 = vmatpush.msra.mxu0 %v1628
    %2175 = vmatpush.msra.mxu0 %v1625
    %2176 = vmatpush.msra.mxu0 %v1622
    %2177 = vmatpush.msra.mxu0 %v1619
    %2178 = vmatpush.msra.mxu0 %v1616
    %2179 = vmatpush.msra.mxu0 %v1613
    %2180 = vmatpush.msra.mxu0 %v1610
    %2181 = vmatpush.msra.mxu0 %v1607
    %2182 = vmatmul.f32.gmra.mxu0 %v1536
    %v2183 = vpop.f32.mrf.mxu0
    %v2184 = vadd.f32 %v2161, %v2183
    %2185 = vmatmul.f32.gmra.mxu0 %v1548
    %v2186 = vpop.f32.mrf.mxu0
    %v2187 = vadd.f32 %v2164, %v2186
    %2188 = vdwg.mxu0
    %2189 = vmatpush.msra.mxu0 %v1700
    %2190 = vmatpush.msra.mxu0 %v1697
    %2191 = vmatpush.msra.mxu0 %v1694
    %2192 = vmatpush.msra.mxu0 %v1691
    %2193 = vmatpush.msra.mxu0 %v1688
    %2194 = vmatpush.msra.mxu0 %v1685
    %2195 = vmatpush.msra.mxu0 %v1682
    %2196 = vmatpush.msra.mxu0 %v1679
    %2197 = vmatpush.msra.mxu0 %v1676
    %2198 = vmatpush.msra.mxu0 %v1673
    %2199 = vmatpush.msra.mxu0 %v1670
    %2200 = vmatpush.msra.mxu0 %v1667
    %2201 = vmatpush.msra.mxu0 %v1664
    %2202 = vmatpush.msra.mxu0 %v1661
    %2203 = vmatpush.msra.mxu0 %v1658
    %2204 = vmatpush.msra.mxu0 %v1655
    %2205 = vmatmul.f32.gmra.mxu0 %v1537
    %v2206 = vpop.f32.mrf.mxu0
    %v2207 = vadd.f32 %v2184, %v2206
    %2208 = vmatmul.f32.gmra.mxu0 %v1549
    %v2209 = vpop.f32.mrf.mxu0
    %v2210 = vadd.f32 %v2187, %v2209
    %2211 = vdwg.mxu0
    %2212 = vmatpush.msra.mxu0 %v1748
    %2213 = vmatpush.msra.mxu0 %v1745
    %2214 = vmatpush.msra.mxu0 %v1742
    %2215 = vmatpush.msra.mxu0 %v1739
    %2216 = vmatpush.msra.mxu0 %v1736
    %2217 = vmatpush.msra.mxu0 %v1733
    %2218 = vmatpush.msra.mxu0 %v1730
    %2219 = vmatpush.msra.mxu0 %v1727
    %2220 = vmatpush.msra.mxu0 %v1724
    %2221 = vmatpush.msra.mxu0 %v1721
    %2222 = vmatpush.msra.mxu0 %v1718
    %2223 = vmatpush.msra.mxu0 %v1715
    %2224 = vmatpush.msra.mxu0 %v1712
    %2225 = vmatpush.msra.mxu0 %v1709
    %2226 = vmatpush.msra.mxu0 %v1706
    %2227 = vmatpush.msra.mxu0 %v1703
    %2228 = vmatmul.f32.gmra.mxu0 %v1538
    %v2229 = vpop.f32.mrf.mxu0
    %v2230 = vadd.f32 %v2207, %v2229
    %2231 = vmatmul.f32.gmra.mxu0 %v1550
    %v2232 = vpop.f32.mrf.mxu0
    %v2233 = vadd.f32 %v2210, %v2232
    %2234 = vdwg.mxu0
    %2235 = vmatpush.msra.mxu0 %v1796
    %2236 = vmatpush.msra.mxu0 %v1793
    %2237 = vmatpush.msra.mxu0 %v1790
    %2238 = vmatpush.msra.mxu0 %v1787
    %2239 = vmatpush.msra.mxu0 %v1784
    %2240 = vmatpush.msra.mxu0 %v1781
    %2241 = vmatpush.msra.mxu0 %v1778
    %2242 = vmatpush.msra.mxu0 %v1775
    %2243 = vmatpush.msra.mxu0 %v1772
    %2244 = vmatpush.msra.mxu0 %v1769
    %2245 = vmatpush.msra.mxu0 %v1766
    %2246 = vmatpush.msra.mxu0 %v1763
    %2247 = vmatpush.msra.mxu0 %v1760
    %2248 = vmatpush.msra.mxu0 %v1757
    %2249 = vmatpush.msra.mxu0 %v1754
    %2250 = vmatpush.msra.mxu0 %v1751
    %2251 = vmatmul.f32.gmra.mxu0 %v1539
    %v2252 = vpop.f32.mrf.mxu0
    %v2253 = vadd.f32 %v2230, %v2252
    %2254 = vmatmul.f32.gmra.mxu0 %v1551
    %v2255 = vpop.f32.mrf.mxu0
    %v2256 = vadd.f32 %v2233, %v2255
    %2257 = vdwg.mxu0
    %2258 = vmatpush.msra.mxu0 %v1844
    %2259 = vmatpush.msra.mxu0 %v1841
    %2260 = vmatpush.msra.mxu0 %v1838
    %2261 = vmatpush.msra.mxu0 %v1835
    %2262 = vmatpush.msra.mxu0 %v1832
    %2263 = vmatpush.msra.mxu0 %v1829
    %2264 = vmatpush.msra.mxu0 %v1826
    %2265 = vmatpush.msra.mxu0 %v1823
    %2266 = vmatpush.msra.mxu0 %v1820
    %2267 = vmatpush.msra.mxu0 %v1817
    %2268 = vmatpush.msra.mxu0 %v1814
    %2269 = vmatpush.msra.mxu0 %v1811
    %2270 = vmatpush.msra.mxu0 %v1808
    %2271 = vmatpush.msra.mxu0 %v1805
    %2272 = vmatpush.msra.mxu0 %v1802
    %2273 = vmatpush.msra.mxu0 %v1799
    %2274 = vmatmul.f32.gmra.mxu0 %v1540
    %v2275 = vpop.f32.mrf.mxu0
    %v2276 = vadd.f32 %v2253, %v2275
    %2277 = vmatmul.f32.gmra.mxu0 %v1552
    %v2278 = vpop.f32.mrf.mxu0
    %v2279 = vadd.f32 %v2256, %v2278
    %2280 = vdwg.mxu0
    %2281 = vmatpush.msra.mxu0 %v1892
    %2282 = vmatpush.msra.mxu0 %v1889
    %2283 = vmatpush.msra.mxu0 %v1886
    %2284 = vmatpush.msra.mxu0 %v1883
    %2285 = vmatpush.msra.mxu0 %v1880
    %2286 = vmatpush.msra.mxu0 %v1877
    %2287 = vmatpush.msra.mxu0 %v1874
    %2288 = vmatpush.msra.mxu0 %v1871
    %2289 = vmatpush.msra.mxu0 %v1868
    %2290 = vmatpush.msra.mxu0 %v1865
    %2291 = vmatpush.msra.mxu0 %v1862
    %2292 = vmatpush.msra.mxu0 %v1859
    %2293 = vmatpush.msra.mxu0 %v1856
    %2294 = vmatpush.msra.mxu0 %v1853
    %2295 = vmatpush.msra.mxu0 %v1850
    %2296 = vmatpush.msra.mxu0 %v1847
    %2297 = vmatmul.f32.gmra.mxu0 %v1541
    %v2298 = vpop.f32.mrf.mxu0
    %v2299 = vadd.f32 %v2276, %v2298
    %2300 = vmatmul.f32.gmra.mxu0 %v1553
    %v2301 = vpop.f32.mrf.mxu0
    %v2302 = vadd.f32 %v2279, %v2301
    %2303 = vdwg.mxu0
    %2304 = vmatpush.msra.mxu0 %v1940
    %2305 = vmatpush.msra.mxu0 %v1937
    %2306 = vmatpush.msra.mxu0 %v1934
    %2307 = vmatpush.msra.mxu0 %v1931
    %2308 = vmatpush.msra.mxu0 %v1928
    %2309 = vmatpush.msra.mxu0 %v1925
    %2310 = vmatpush.msra.mxu0 %v1922
    %2311 = vmatpush.msra.mxu0 %v1919
    %2312 = vmatpush.msra.mxu0 %v1916
    %2313 = vmatpush.msra.mxu0 %v1913
    %2314 = vmatpush.msra.mxu0 %v1910
    %2315 = vmatpush.msra.mxu0 %v1907
    %2316 = vmatpush.msra.mxu0 %v1904
    %2317 = vmatpush.msra.mxu0 %v1901
    %2318 = vmatpush.msra.mxu0 %v1898
    %2319 = vmatpush.msra.mxu0 %v1895
    %2320 = vmatmul.f32.gmra.mxu0 %v1542
    %v2321 = vpop.f32.mrf.mxu0
    %v2322 = vadd.f32 %v2299, %v2321
    %2323 = vmatmul.f32.gmra.mxu0 %v1554
    %v2324 = vpop.f32.mrf.mxu0
    %v2325 = vadd.f32 %v2302, %v2324
    %2326 = vdwg.mxu0
    %2327 = vmatpush.msra.mxu0 %v1988
    %2328 = vmatpush.msra.mxu0 %v1985
    %2329 = vmatpush.msra.mxu0 %v1982
    %2330 = vmatpush.msra.mxu0 %v1979
    %2331 = vmatpush.msra.mxu0 %v1976
    %2332 = vmatpush.msra.mxu0 %v1973
    %2333 = vmatpush.msra.mxu0 %v1970
    %2334 = vmatpush.msra.mxu0 %v1967
    %2335 = vmatpush.msra.mxu0 %v1964
    %2336 = vmatpush.msra.mxu0 %v1961
    %2337 = vmatpush.msra.mxu0 %v1958
    %2338 = vmatpush.msra.mxu0 %v1955
    %2339 = vmatpush.msra.mxu0 %v1952
    %2340 = vmatpush.msra.mxu0 %v1949
    %2341 = vmatpush.msra.mxu0 %v1946
    %2342 = vmatpush.msra.mxu0 %v1943
    %2343 = vmatmul.f32.gmra.mxu0 %v1543
    %v2344 = vpop.f32.mrf.mxu0
    %v2345 = vadd.f32 %v2322, %v2344
    %2346 = vmatmul.f32.gmra.mxu0 %v1555
    %v2347 = vpop.f32.mrf.mxu0
    %v2348 = vadd.f32 %v2325, %v2347
    %2349 = vdwg.mxu0
    %2350 = vmatpush.msra.mxu0 %v2036
    %2351 = vmatpush.msra.mxu0 %v2033
    %2352 = vmatpush.msra.mxu0 %v2030
    %2353 = vmatpush.msra.mxu0 %v2027
    %2354 = vmatpush.msra.mxu0 %v2024
    %2355 = vmatpush.msra.mxu0 %v2021
    %2356 = vmatpush.msra.mxu0 %v2018
    %2357 = vmatpush.msra.mxu0 %v2015
    %2358 = vmatpush.msra.mxu0 %v2012
    %2359 = vmatpush.msra.mxu0 %v2009
    %2360 = vmatpush.msra.mxu0 %v2006
    %2361 = vmatpush.msra.mxu0 %v2003
    %2362 = vmatpush.msra.mxu0 %v2000
    %2363 = vmatpush.msra.mxu0 %v1997
    %2364 = vmatpush.msra.mxu0 %v1994
    %2365 = vmatpush.msra.mxu0 %v1991
    %2366 = vmatmul.f32.gmra.mxu0 %v1544
    %v2367 = vpop.f32.mrf.mxu0
    %v2368 = vadd.f32 %v2345, %v2367
    %2369 = vmatmul.f32.gmra.mxu0 %v1556
    %v2370 = vpop.f32.mrf.mxu0
    %v2371 = vadd.f32 %v2348, %v2370
    %2372 = vdwg.mxu0
    %2373 = vmatpush.msra.mxu0 %v2084
    %2374 = vmatpush.msra.mxu0 %v2081
    %2375 = vmatpush.msra.mxu0 %v2078
    %2376 = vmatpush.msra.mxu0 %v2075
    %2377 = vmatpush.msra.mxu0 %v2072
    %2378 = vmatpush.msra.mxu0 %v2069
    %2379 = vmatpush.msra.mxu0 %v2066
    %2380 = vmatpush.msra.mxu0 %v2063
    %2381 = vmatpush.msra.mxu0 %v2060
    %2382 = vmatpush.msra.mxu0 %v2057
    %2383 = vmatpush.msra.mxu0 %v2054
    %2384 = vmatpush.msra.mxu0 %v2051
    %2385 = vmatpush.msra.mxu0 %v2048
    %2386 = vmatpush.msra.mxu0 %v2045
    %2387 = vmatpush.msra.mxu0 %v2042
    %2388 = vmatpush.msra.mxu0 %v2039
    %2389 = vmatmul.f32.gmra.mxu0 %v1545
    %v2390 = vpop.f32.mrf.mxu0
    %v2391 = vadd.f32 %v2368, %v2390
    %2392 = vmatmul.f32.gmra.mxu0 %v1557
    %v2393 = vpop.f32.mrf.mxu0
    %v2394 = vadd.f32 %v2371, %v2393
    %2395 = vdwg.mxu0
    %2396 = vmatpush.msra.mxu0 %v2132
    %2397 = vmatpush.msra.mxu0 %v2129
    %2398 = vmatpush.msra.mxu0 %v2126
    %2399 = vmatpush.msra.mxu0 %v2123
    %2400 = vmatpush.msra.mxu0 %v2120
    %2401 = vmatpush.msra.mxu0 %v2117
    %2402 = vmatpush.msra.mxu0 %v2114
    %2403 = vmatpush.msra.mxu0 %v2111
    %2404 = vmatpush.msra.mxu0 %v2108
    %2405 = vmatpush.msra.mxu0 %v2105
    %2406 = vmatpush.msra.mxu0 %v2102
    %2407 = vmatpush.msra.mxu0 %v2099
    %2408 = vmatpush.msra.mxu0 %v2096
    %2409 = vmatpush.msra.mxu0 %v2093
    %2410 = vmatpush.msra.mxu0 %v2090
    %2411 = vmatpush.msra.mxu0 %v2087
    %2412 = vmatmul.f32.gmra.mxu0 %v1546
    %v2413 = vpop.f32.mrf.mxu0
    %v2414 = vadd.f32 %v2391, %v2413
    %2415 = vmatmul.f32.gmra.mxu0 %v1558
    %v2416 = vpop.f32.mrf.mxu0
    %v2417 = vadd.f32 %v2394, %v2416
    %2418 = vdwg.mxu0
    %2419 = vmatpush.msra.mxu0 %v1605
    %2420 = vmatpush.msra.mxu0 %v1602
    %2421 = vmatpush.msra.mxu0 %v1599
    %2422 = vmatpush.msra.mxu0 %v1596
    %2423 = vmatpush.msra.mxu0 %v1593
    %2424 = vmatpush.msra.mxu0 %v1590
    %2425 = vmatpush.msra.mxu0 %v1587
    %2426 = vmatpush.msra.mxu0 %v1584
    %2427 = vmatpush.msra.mxu0 %v1581
    %2428 = vmatpush.msra.mxu0 %v1578
    %2429 = vmatpush.msra.mxu0 %v1575
    %2430 = vmatpush.msra.mxu0 %v1572
    %2431 = vmatpush.msra.mxu0 %v1569
    %2432 = vmatpush.msra.mxu0 %v1566
    %2433 = vmatpush.msra.mxu0 %v1563
    %2434 = vmatpush.msra.mxu0 %v1560
    %2435 = vmatmul.f32.gmra.mxu0 %v1535
    %v2436 = vpop.f32.mrf.mxu0
    %v2437 = vadd.f32 %v2138, %v2436
    %2438 = vmatmul.f32.gmra.mxu0 %v1547
    %v2439 = vpop.f32.mrf.mxu0
    %v2440 = vadd.f32 %v2138, %v2439
    %2441 = vdwg.mxu0
    %2442 = vmatpush.msra.mxu0 %v1653
    %2443 = vmatpush.msra.mxu0 %v1650
    %2444 = vmatpush.msra.mxu0 %v1647
    %2445 = vmatpush.msra.mxu0 %v1644
    %2446 = vmatpush.msra.mxu0 %v1641
    %2447 = vmatpush.msra.mxu0 %v1638
    %2448 = vmatpush.msra.mxu0 %v1635
    %2449 = vmatpush.msra.mxu0 %v1632
    %2450 = vmatpush.msra.mxu0 %v1629
    %2451 = vmatpush.msra.mxu0 %v1626
    %2452 = vmatpush.msra.mxu0 %v1623
    %2453 = vmatpush.msra.mxu0 %v1620
    %2454 = vmatpush.msra.mxu0 %v1617
    %2455 = vmatpush.msra.mxu0 %v1614
    %2456 = vmatpush.msra.mxu0 %v1611
    %2457 = vmatpush.msra.mxu0 %v1608
    %2458 = vmatmul.f32.gmra.mxu0 %v1536
    %v2459 = vpop.f32.mrf.mxu0
    %v2460 = vadd.f32 %v2437, %v2459
    %2461 = vmatmul.f32.gmra.mxu0 %v1548
    %v2462 = vpop.f32.mrf.mxu0
    %v2463 = vadd.f32 %v2440, %v2462
    %2464 = vdwg.mxu0
    %2465 = vmatpush.msra.mxu0 %v1701
    %2466 = vmatpush.msra.mxu0 %v1698
    %2467 = vmatpush.msra.mxu0 %v1695
    %2468 = vmatpush.msra.mxu0 %v1692
    %2469 = vmatpush.msra.mxu0 %v1689
    %2470 = vmatpush.msra.mxu0 %v1686
    %2471 = vmatpush.msra.mxu0 %v1683
    %2472 = vmatpush.msra.mxu0 %v1680
    %2473 = vmatpush.msra.mxu0 %v1677
    %2474 = vmatpush.msra.mxu0 %v1674
    %2475 = vmatpush.msra.mxu0 %v1671
    %2476 = vmatpush.msra.mxu0 %v1668
    %2477 = vmatpush.msra.mxu0 %v1665
    %2478 = vmatpush.msra.mxu0 %v1662
    %2479 = vmatpush.msra.mxu0 %v1659
    %2480 = vmatpush.msra.mxu0 %v1656
    %2481 = vmatmul.f32.gmra.mxu0 %v1537
    %v2482 = vpop.f32.mrf.mxu0
    %v2483 = vadd.f32 %v2460, %v2482
    %2484 = vmatmul.f32.gmra.mxu0 %v1549
    %v2485 = vpop.f32.mrf.mxu0
    %v2486 = vadd.f32 %v2463, %v2485
    %2487 = vdwg.mxu0
    %2488 = vmatpush.msra.mxu0 %v1749
    %2489 = vmatpush.msra.mxu0 %v1746
    %2490 = vmatpush.msra.mxu0 %v1743
    %2491 = vmatpush.msra.mxu0 %v1740
    %2492 = vmatpush.msra.mxu0 %v1737
    %2493 = vmatpush.msra.mxu0 %v1734
    %2494 = vmatpush.msra.mxu0 %v1731
    %2495 = vmatpush.msra.mxu0 %v1728
    %2496 = vmatpush.msra.mxu0 %v1725
    %2497 = vmatpush.msra.mxu0 %v1722
    %2498 = vmatpush.msra.mxu0 %v1719
    %2499 = vmatpush.msra.mxu0 %v1716
    %2500 = vmatpush.msra.mxu0 %v1713
    %2501 = vmatpush.msra.mxu0 %v1710
    %2502 = vmatpush.msra.mxu0 %v1707
    %2503 = vmatpush.msra.mxu0 %v1704
    %2504 = vmatmul.f32.gmra.mxu0 %v1538
    %v2505 = vpop.f32.mrf.mxu0
    %v2506 = vadd.f32 %v2483, %v2505
    %2507 = vmatmul.f32.gmra.mxu0 %v1550
    %v2508 = vpop.f32.mrf.mxu0
    %v2509 = vadd.f32 %v2486, %v2508
    %2510 = vdwg.mxu0
    %2511 = vmatpush.msra.mxu0 %v1797
    %2512 = vmatpush.msra.mxu0 %v1794
    %2513 = vmatpush.msra.mxu0 %v1791
    %2514 = vmatpush.msra.mxu0 %v1788
    %2515 = vmatpush.msra.mxu0 %v1785
    %2516 = vmatpush.msra.mxu0 %v1782
    %2517 = vmatpush.msra.mxu0 %v1779
    %2518 = vmatpush.msra.mxu0 %v1776
    %2519 = vmatpush.msra.mxu0 %v1773
    %2520 = vmatpush.msra.mxu0 %v1770
    %2521 = vmatpush.msra.mxu0 %v1767
    %2522 = vmatpush.msra.mxu0 %v1764
    %2523 = vmatpush.msra.mxu0 %v1761
    %2524 = vmatpush.msra.mxu0 %v1758
    %2525 = vmatpush.msra.mxu0 %v1755
    %2526 = vmatpush.msra.mxu0 %v1752
    %2527 = vmatmul.f32.gmra.mxu0 %v1539
    %v2528 = vpop.f32.mrf.mxu0
    %v2529 = vadd.f32 %v2506, %v2528
    %2530 = vmatmul.f32.gmra.mxu0 %v1551
    %v2531 = vpop.f32.mrf.mxu0
    %v2532 = vadd.f32 %v2509, %v2531
    %2533 = vdwg.mxu0
    %2534 = vmatpush.msra.mxu0 %v1845
    %2535 = vmatpush.msra.mxu0 %v1842
    %2536 = vmatpush.msra.mxu0 %v1839
    %2537 = vmatpush.msra.mxu0 %v1836
    %2538 = vmatpush.msra.mxu0 %v1833
    %2539 = vmatpush.msra.mxu0 %v1830
    %2540 = vmatpush.msra.mxu0 %v1827
    %2541 = vmatpush.msra.mxu0 %v1824
    %2542 = vmatpush.msra.mxu0 %v1821
    %2543 = vmatpush.msra.mxu0 %v1818
    %2544 = vmatpush.msra.mxu0 %v1815
    %2545 = vmatpush.msra.mxu0 %v1812
    %2546 = vmatpush.msra.mxu0 %v1809
    %2547 = vmatpush.msra.mxu0 %v1806
    %2548 = vmatpush.msra.mxu0 %v1803
    %2549 = vmatpush.msra.mxu0 %v1800
    %2550 = vmatmul.f32.gmra.mxu0 %v1540
    %v2551 = vpop.f32.mrf.mxu0
    %v2552 = vadd.f32 %v2529, %v2551
    %2553 = vmatmul.f32.gmra.mxu0 %v1552
    %v2554 = vpop.f32.mrf.mxu0
    %v2555 = vadd.f32 %v2532, %v2554
    %2556 = vdwg.mxu0
    %2557 = vmatpush.msra.mxu0 %v1893
    %2558 = vmatpush.msra.mxu0 %v1890
    %2559 = vmatpush.msra.mxu0 %v1887
    %2560 = vmatpush.msra.mxu0 %v1884
    %2561 = vmatpush.msra.mxu0 %v1881
    %2562 = vmatpush.msra.mxu0 %v1878
    %2563 = vmatpush.msra.mxu0 %v1875
    %2564 = vmatpush.msra.mxu0 %v1872
    %2565 = vmatpush.msra.mxu0 %v1869
    %2566 = vmatpush.msra.mxu0 %v1866
    %2567 = vmatpush.msra.mxu0 %v1863
    %2568 = vmatpush.msra.mxu0 %v1860
    %2569 = vmatpush.msra.mxu0 %v1857
    %2570 = vmatpush.msra.mxu0 %v1854
    %2571 = vmatpush.msra.mxu0 %v1851
    %2572 = vmatpush.msra.mxu0 %v1848
    %2573 = vmatmul.f32.gmra.mxu0 %v1541
    %v2574 = vpop.f32.mrf.mxu0
    %v2575 = vadd.f32 %v2552, %v2574
    %2576 = vmatmul.f32.gmra.mxu0 %v1553
    %v2577 = vpop.f32.mrf.mxu0
    %v2578 = vadd.f32 %v2555, %v2577
    %2579 = vdwg.mxu0
    %2580 = vmatpush.msra.mxu0 %v1941
    %2581 = vmatpush.msra.mxu0 %v1938
    %2582 = vmatpush.msra.mxu0 %v1935
    %2583 = vmatpush.msra.mxu0 %v1932
    %2584 = vmatpush.msra.mxu0 %v1929
    %2585 = vmatpush.msra.mxu0 %v1926
    %2586 = vmatpush.msra.mxu0 %v1923
    %2587 = vmatpush.msra.mxu0 %v1920
    %2588 = vmatpush.msra.mxu0 %v1917
    %2589 = vmatpush.msra.mxu0 %v1914
    %2590 = vmatpush.msra.mxu0 %v1911
    %2591 = vmatpush.msra.mxu0 %v1908
    %2592 = vmatpush.msra.mxu0 %v1905
    %2593 = vmatpush.msra.mxu0 %v1902
    %2594 = vmatpush.msra.mxu0 %v1899
    %2595 = vmatpush.msra.mxu0 %v1896
    %2596 = vmatmul.f32.gmra.mxu0 %v1542
    %v2597 = vpop.f32.mrf.mxu0
    %v2598 = vadd.f32 %v2575, %v2597
    %2599 = vmatmul.f32.gmra.mxu0 %v1554
    %v2600 = vpop.f32.mrf.mxu0
    %v2601 = vadd.f32 %v2578, %v2600
    %2602 = vdwg.mxu0
    %2603 = vmatpush.msra.mxu0 %v1989
    %2604 = vmatpush.msra.mxu0 %v1986
    %2605 = vmatpush.msra.mxu0 %v1983
    %2606 = vmatpush.msra.mxu0 %v1980
    %2607 = vmatpush.msra.mxu0 %v1977
    %2608 = vmatpush.msra.mxu0 %v1974
    %2609 = vmatpush.msra.mxu0 %v1971
    %2610 = vmatpush.msra.mxu0 %v1968
    %2611 = vmatpush.msra.mxu0 %v1965
    %2612 = vmatpush.msra.mxu0 %v1962
    %2613 = vmatpush.msra.mxu0 %v1959
    %2614 = vmatpush.msra.mxu0 %v1956
    %2615 = vmatpush.msra.mxu0 %v1953
    %2616 = vmatpush.msra.mxu0 %v1950
    %2617 = vmatpush.msra.mxu0 %v1947
    %2618 = vmatpush.msra.mxu0 %v1944
    %2619 = vmatmul.f32.gmra.mxu0 %v1543
    %v2620 = vpop.f32.mrf.mxu0
    %v2621 = vadd.f32 %v2598, %v2620
    %2622 = vmatmul.f32.gmra.mxu0 %v1555
    %v2623 = vpop.f32.mrf.mxu0
    %v2624 = vadd.f32 %v2601, %v2623
    %2625 = vdwg.mxu0
    %2626 = vmatpush.msra.mxu0 %v2037
    %2627 = vmatpush.msra.mxu0 %v2034
    %2628 = vmatpush.msra.mxu0 %v2031
    %2629 = vmatpush.msra.mxu0 %v2028
    %2630 = vmatpush.msra.mxu0 %v2025
    %2631 = vmatpush.msra.mxu0 %v2022
    %2632 = vmatpush.msra.mxu0 %v2019
    %2633 = vmatpush.msra.mxu0 %v2016
    %2634 = vmatpush.msra.mxu0 %v2013
    %2635 = vmatpush.msra.mxu0 %v2010
    %2636 = vmatpush.msra.mxu0 %v2007
    %2637 = vmatpush.msra.mxu0 %v2004
    %2638 = vmatpush.msra.mxu0 %v2001
    %2639 = vmatpush.msra.mxu0 %v1998
    %2640 = vmatpush.msra.mxu0 %v1995
    %2641 = vmatpush.msra.mxu0 %v1992
    %2642 = vmatmul.f32.gmra.mxu0 %v1544
    %v2643 = vpop.f32.mrf.mxu0
    %v2644 = vadd.f32 %v2621, %v2643
    %2645 = vmatmul.f32.gmra.mxu0 %v1556
    %v2646 = vpop.f32.mrf.mxu0
    %v2647 = vadd.f32 %v2624, %v2646
    %2648 = vdwg.mxu0
    %2649 = vmatpush.msra.mxu0 %v2085
    %2650 = vmatpush.msra.mxu0 %v2082
    %2651 = vmatpush.msra.mxu0 %v2079
    %2652 = vmatpush.msra.mxu0 %v2076
    %2653 = vmatpush.msra.mxu0 %v2073
    %2654 = vmatpush.msra.mxu0 %v2070
    %2655 = vmatpush.msra.mxu0 %v2067
    %2656 = vmatpush.msra.mxu0 %v2064
    %2657 = vmatpush.msra.mxu0 %v2061
    %2658 = vmatpush.msra.mxu0 %v2058
    %2659 = vmatpush.msra.mxu0 %v2055
    %2660 = vmatpush.msra.mxu0 %v2052
    %2661 = vmatpush.msra.mxu0 %v2049
    %2662 = vmatpush.msra.mxu0 %v2046
    %2663 = vmatpush.msra.mxu0 %v2043
    %2664 = vmatpush.msra.mxu0 %v2040
    %2665 = vmatmul.f32.gmra.mxu0 %v1545
    %v2666 = vpop.f32.mrf.mxu0
    %v2667 = vadd.f32 %v2644, %v2666
    %2668 = vmatmul.f32.gmra.mxu0 %v1557
    %v2669 = vpop.f32.mrf.mxu0
    %v2670 = vadd.f32 %v2647, %v2669
    %2671 = vdwg.mxu0
    %2672 = vmatpush.msra.mxu0 %v2133
    %2673 = vmatpush.msra.mxu0 %v2130
    %2674 = vmatpush.msra.mxu0 %v2127
    %2675 = vmatpush.msra.mxu0 %v2124
    %2676 = vmatpush.msra.mxu0 %v2121
    %2677 = vmatpush.msra.mxu0 %v2118
    %2678 = vmatpush.msra.mxu0 %v2115
    %2679 = vmatpush.msra.mxu0 %v2112
    %2680 = vmatpush.msra.mxu0 %v2109
    %2681 = vmatpush.msra.mxu0 %v2106
    %2682 = vmatpush.msra.mxu0 %v2103
    %2683 = vmatpush.msra.mxu0 %v2100
    %2684 = vmatpush.msra.mxu0 %v2097
    %2685 = vmatpush.msra.mxu0 %v2094
    %2686 = vmatpush.msra.mxu0 %v2091
    %2687 = vmatpush.msra.mxu0 %v2088
    %2688 = vmatmul.f32.gmra.mxu0 %v1546
    %v2689 = vpop.f32.mrf.mxu0
    %v2690 = vadd.f32 %v2667, %v2689
    %2691 = vmatmul.f32.gmra.mxu0 %v1558
    %v2692 = vpop.f32.mrf.mxu0
    %v2693 = vadd.f32 %v2670, %v2692
    %2694 = vdwg.mxu0
    %2695 = vmatpush.msra.mxu0 %v1606
    %2696 = vmatpush.msra.mxu0 %v1603
    %2697 = vmatpush.msra.mxu0 %v1600
    %2698 = vmatpush.msra.mxu0 %v1597
    %2699 = vmatpush.msra.mxu0 %v1594
    %2700 = vmatpush.msra.mxu0 %v1591
    %2701 = vmatpush.msra.mxu0 %v1588
    %2702 = vmatpush.msra.mxu0 %v1585
    %2703 = vmatpush.msra.mxu0 %v1582
    %2704 = vmatpush.msra.mxu0 %v1579
    %2705 = vmatpush.msra.mxu0 %v1576
    %2706 = vmatpush.msra.mxu0 %v1573
    %2707 = vmatpush.msra.mxu0 %v1570
    %2708 = vmatpush.msra.mxu0 %v1567
    %2709 = vmatpush.msra.mxu0 %v1564
    %2710 = vmatpush.msra.mxu0 %v1561
    %2711 = vmatmul.f32.gmra.mxu0 %v1535
    %v2712 = vpop.f32.mrf.mxu0
    %v2713 = vadd.f32 %v2139, %v2712
    %2714 = vmatmul.f32.gmra.mxu0 %v1547
    %v2715 = vpop.f32.mrf.mxu0
    %v2716 = vadd.f32 %v2139, %v2715
    %2717 = vdwg.mxu0
    %2718 = vmatpush.msra.mxu0 %v1654
    %2719 = vmatpush.msra.mxu0 %v1651
    %2720 = vmatpush.msra.mxu0 %v1648
    %2721 = vmatpush.msra.mxu0 %v1645
    %2722 = vmatpush.msra.mxu0 %v1642
    %2723 = vmatpush.msra.mxu0 %v1639
    %2724 = vmatpush.msra.mxu0 %v1636
    %2725 = vmatpush.msra.mxu0 %v1633
    %2726 = vmatpush.msra.mxu0 %v1630
    %2727 = vmatpush.msra.mxu0 %v1627
    %2728 = vmatpush.msra.mxu0 %v1624
    %2729 = vmatpush.msra.mxu0 %v1621
    %2730 = vmatpush.msra.mxu0 %v1618
    %2731 = vmatpush.msra.mxu0 %v1615
    %2732 = vmatpush.msra.mxu0 %v1612
    %2733 = vmatpush.msra.mxu0 %v1609
    %2734 = vmatmul.f32.gmra.mxu0 %v1536
    %v2735 = vpop.f32.mrf.mxu0
    %v2736 = vadd.f32 %v2713, %v2735
    %2737 = vmatmul.f32.gmra.mxu0 %v1548
    %v2738 = vpop.f32.mrf.mxu0
    %v2739 = vadd.f32 %v2716, %v2738
    %2740 = vdwg.mxu0
    %2741 = vmatpush.msra.mxu0 %v1702
    %2742 = vmatpush.msra.mxu0 %v1699
    %2743 = vmatpush.msra.mxu0 %v1696
    %2744 = vmatpush.msra.mxu0 %v1693
    %2745 = vmatpush.msra.mxu0 %v1690
    %2746 = vmatpush.msra.mxu0 %v1687
    %2747 = vmatpush.msra.mxu0 %v1684
    %2748 = vmatpush.msra.mxu0 %v1681
    %2749 = vmatpush.msra.mxu0 %v1678
    %2750 = vmatpush.msra.mxu0 %v1675
    %2751 = vmatpush.msra.mxu0 %v1672
    %2752 = vmatpush.msra.mxu0 %v1669
    %2753 = vmatpush.msra.mxu0 %v1666
    %2754 = vmatpush.msra.mxu0 %v1663
    %2755 = vmatpush.msra.mxu0 %v1660
    %2756 = vmatpush.msra.mxu0 %v1657
    %2757 = vmatmul.f32.gmra.mxu0 %v1537
    %v2758 = vpop.f32.mrf.mxu0
    %v2759 = vadd.f32 %v2736, %v2758
    %2760 = vmatmul.f32.gmra.mxu0 %v1549
    %v2761 = vpop.f32.mrf.mxu0
    %v2762 = vadd.f32 %v2739, %v2761
    %2763 = vdwg.mxu0
    %2764 = vmatpush.msra.mxu0 %v1750
    %2765 = vmatpush.msra.mxu0 %v1747
    %2766 = vmatpush.msra.mxu0 %v1744
    %2767 = vmatpush.msra.mxu0 %v1741
    %2768 = vmatpush.msra.mxu0 %v1738
    %2769 = vmatpush.msra.mxu0 %v1735
    %2770 = vmatpush.msra.mxu0 %v1732
    %2771 = vmatpush.msra.mxu0 %v1729
    %2772 = vmatpush.msra.mxu0 %v1726
    %2773 = vmatpush.msra.mxu0 %v1723
    %2774 = vmatpush.msra.mxu0 %v1720
    %2775 = vmatpush.msra.mxu0 %v1717
    %2776 = vmatpush.msra.mxu0 %v1714
    %2777 = vmatpush.msra.mxu0 %v1711
    %2778 = vmatpush.msra.mxu0 %v1708
    %2779 = vmatpush.msra.mxu0 %v1705
    %2780 = vmatmul.f32.gmra.mxu0 %v1538
    %v2781 = vpop.f32.mrf.mxu0
    %v2782 = vadd.f32 %v2759, %v2781
    %2783 = vmatmul.f32.gmra.mxu0 %v1550
    %v2784 = vpop.f32.mrf.mxu0
    %v2785 = vadd.f32 %v2762, %v2784
    %2786 = vdwg.mxu0
    %2787 = vmatpush.msra.mxu0 %v1798
    %2788 = vmatpush.msra.mxu0 %v1795
    %2789 = vmatpush.msra.mxu0 %v1792
    %2790 = vmatpush.msra.mxu0 %v1789
    %2791 = vmatpush.msra.mxu0 %v1786
    %2792 = vmatpush.msra.mxu0 %v1783
    %2793 = vmatpush.msra.mxu0 %v1780
    %2794 = vmatpush.msra.mxu0 %v1777
    %2795 = vmatpush.msra.mxu0 %v1774
    %2796 = vmatpush.msra.mxu0 %v1771
    %2797 = vmatpush.msra.mxu0 %v1768
    %2798 = vmatpush.msra.mxu0 %v1765
    %2799 = vmatpush.msra.mxu0 %v1762
    %2800 = vmatpush.msra.mxu0 %v1759
    %2801 = vmatpush.msra.mxu0 %v1756
    %2802 = vmatpush.msra.mxu0 %v1753
    %2803 = vmatmul.f32.gmra.mxu0 %v1539
    %v2804 = vpop.f32.mrf.mxu0
    %v2805 = vadd.f32 %v2782, %v2804
    %2806 = vmatmul.f32.gmra.mxu0 %v1551
    %v2807 = vpop.f32.mrf.mxu0
    %v2808 = vadd.f32 %v2785, %v2807
    %2809 = vdwg.mxu0
    %2810 = vmatpush.msra.mxu0 %v1846
    %2811 = vmatpush.msra.mxu0 %v1843
    %2812 = vmatpush.msra.mxu0 %v1840
    %2813 = vmatpush.msra.mxu0 %v1837
    %2814 = vmatpush.msra.mxu0 %v1834
    %2815 = vmatpush.msra.mxu0 %v1831
    %2816 = vmatpush.msra.mxu0 %v1828
    %2817 = vmatpush.msra.mxu0 %v1825
    %2818 = vmatpush.msra.mxu0 %v1822
    %2819 = vmatpush.msra.mxu0 %v1819
    %2820 = vmatpush.msra.mxu0 %v1816
    %2821 = vmatpush.msra.mxu0 %v1813
    %2822 = vmatpush.msra.mxu0 %v1810
    %2823 = vmatpush.msra.mxu0 %v1807
    %2824 = vmatpush.msra.mxu0 %v1804
    %2825 = vmatpush.msra.mxu0 %v1801
    %2826 = vmatmul.f32.gmra.mxu0 %v1540
    %v2827 = vpop.f32.mrf.mxu0
    %v2828 = vadd.f32 %v2805, %v2827
    %2829 = vmatmul.f32.gmra.mxu0 %v1552
    %v2830 = vpop.f32.mrf.mxu0
    %v2831 = vadd.f32 %v2808, %v2830
    %2832 = vdwg.mxu0
    %2833 = vmatpush.msra.mxu0 %v1894
    %2834 = vmatpush.msra.mxu0 %v1891
    %2835 = vmatpush.msra.mxu0 %v1888
    %2836 = vmatpush.msra.mxu0 %v1885
    %2837 = vmatpush.msra.mxu0 %v1882
    %2838 = vmatpush.msra.mxu0 %v1879
    %2839 = vmatpush.msra.mxu0 %v1876
    %2840 = vmatpush.msra.mxu0 %v1873
    %2841 = vmatpush.msra.mxu0 %v1870
    %2842 = vmatpush.msra.mxu0 %v1867
    %2843 = vmatpush.msra.mxu0 %v1864
    %2844 = vmatpush.msra.mxu0 %v1861
    %2845 = vmatpush.msra.mxu0 %v1858
    %2846 = vmatpush.msra.mxu0 %v1855
    %2847 = vmatpush.msra.mxu0 %v1852
    %2848 = vmatpush.msra.mxu0 %v1849
    %2849 = vmatmul.f32.gmra.mxu0 %v1541
    %v2850 = vpop.f32.mrf.mxu0
    %v2851 = vadd.f32 %v2828, %v2850
    %2852 = vmatmul.f32.gmra.mxu0 %v1553
    %v2853 = vpop.f32.mrf.mxu0
    %v2854 = vadd.f32 %v2831, %v2853
    %2855 = vdwg.mxu0
    %2856 = vmatpush.msra.mxu0 %v1942
    %2857 = vmatpush.msra.mxu0 %v1939
    %2858 = vmatpush.msra.mxu0 %v1936
    %2859 = vmatpush.msra.mxu0 %v1933
    %2860 = vmatpush.msra.mxu0 %v1930
    %2861 = vmatpush.msra.mxu0 %v1927
    %2862 = vmatpush.msra.mxu0 %v1924
    %2863 = vmatpush.msra.mxu0 %v1921
    %2864 = vmatpush.msra.mxu0 %v1918
    %2865 = vmatpush.msra.mxu0 %v1915
    %2866 = vmatpush.msra.mxu0 %v1912
    %2867 = vmatpush.msra.mxu0 %v1909
    %2868 = vmatpush.msra.mxu0 %v1906
    %2869 = vmatpush.msra.mxu0 %v1903
    %2870 = vmatpush.msra.mxu0 %v1900
    %2871 = vmatpush.msra.mxu0 %v1897
    %2872 = vmatmul.f32.gmra.mxu0 %v1542
    %v2873 = vpop.f32.mrf.mxu0
    %v2874 = vadd.f32 %v2851, %v2873
    %2875 = vmatmul.f32.gmra.mxu0 %v1554
    %v2876 = vpop.f32.mrf.mxu0
    %v2877 = vadd.f32 %v2854, %v2876
    %2878 = vdwg.mxu0
    %2879 = vmatpush.msra.mxu0 %v1990
    %2880 = vmatpush.msra.mxu0 %v1987
    %2881 = vmatpush.msra.mxu0 %v1984
    %2882 = vmatpush.msra.mxu0 %v1981
    %2883 = vmatpush.msra.mxu0 %v1978
    %2884 = vmatpush.msra.mxu0 %v1975
    %2885 = vmatpush.msra.mxu0 %v1972
    %2886 = vmatpush.msra.mxu0 %v1969
    %2887 = vmatpush.msra.mxu0 %v1966
    %2888 = vmatpush.msra.mxu0 %v1963
    %2889 = vmatpush.msra.mxu0 %v1960
    %2890 = vmatpush.msra.mxu0 %v1957
    %2891 = vmatpush.msra.mxu0 %v1954
    %2892 = vmatpush.msra.mxu0 %v1951
    %2893 = vmatpush.msra.mxu0 %v1948
    %2894 = vmatpush.msra.mxu0 %v1945
    %2895 = vmatmul.f32.gmra.mxu0 %v1543
    %v2896 = vpop.f32.mrf.mxu0
    %v2897 = vadd.f32 %v2874, %v2896
    %2898 = vmatmul.f32.gmra.mxu0 %v1555
    %v2899 = vpop.f32.mrf.mxu0
    %v2900 = vadd.f32 %v2877, %v2899
    %2901 = vdwg.mxu0
    %2902 = vmatpush.msra.mxu0 %v2038
    %2903 = vmatpush.msra.mxu0 %v2035
    %2904 = vmatpush.msra.mxu0 %v2032
    %2905 = vmatpush.msra.mxu0 %v2029
    %2906 = vmatpush.msra.mxu0 %v2026
    %2907 = vmatpush.msra.mxu0 %v2023
    %2908 = vmatpush.msra.mxu0 %v2020
    %2909 = vmatpush.msra.mxu0 %v2017
    %2910 = vmatpush.msra.mxu0 %v2014
    %2911 = vmatpush.msra.mxu0 %v2011
    %2912 = vmatpush.msra.mxu0 %v2008
    %2913 = vmatpush.msra.mxu0 %v2005
    %2914 = vmatpush.msra.mxu0 %v2002
    %2915 = vmatpush.msra.mxu0 %v1999
    %2916 = vmatpush.msra.mxu0 %v1996
    %2917 = vmatpush.msra.mxu0 %v1993
    %2918 = vmatmul.f32.gmra.mxu0 %v1544
    %v2919 = vpop.f32.mrf.mxu0
    %v2920 = vadd.f32 %v2897, %v2919
    %2921 = vmatmul.f32.gmra.mxu0 %v1556
    %v2922 = vpop.f32.mrf.mxu0
    %v2923 = vadd.f32 %v2900, %v2922
    %2924 = vdwg.mxu0
    %2925 = vmatpush.msra.mxu0 %v2086
    %2926 = vmatpush.msra.mxu0 %v2083
    %2927 = vmatpush.msra.mxu0 %v2080
    %2928 = vmatpush.msra.mxu0 %v2077
    %2929 = vmatpush.msra.mxu0 %v2074
    %2930 = vmatpush.msra.mxu0 %v2071
    %2931 = vmatpush.msra.mxu0 %v2068
    %2932 = vmatpush.msra.mxu0 %v2065
    %2933 = vmatpush.msra.mxu0 %v2062
    %2934 = vmatpush.msra.mxu0 %v2059
    %2935 = vmatpush.msra.mxu0 %v2056
    %2936 = vmatpush.msra.mxu0 %v2053
    %2937 = vmatpush.msra.mxu0 %v2050
    %2938 = vmatpush.msra.mxu0 %v2047
    %2939 = vmatpush.msra.mxu0 %v2044
    %2940 = vmatpush.msra.mxu0 %v2041
    %2941 = vmatmul.f32.gmra.mxu0 %v1545
    %v2942 = vpop.f32.mrf.mxu0
    %v2943 = vadd.f32 %v2920, %v2942
    %2944 = vmatmul.f32.gmra.mxu0 %v1557
    %v2945 = vpop.f32.mrf.mxu0
    %v2946 = vadd.f32 %v2923, %v2945
    %2947 = vdwg.mxu0
    %2948 = vmatpush.msra.mxu0 %v2134
    %2949 = vmatpush.msra.mxu0 %v2131
    %2950 = vmatpush.msra.mxu0 %v2128
    %2951 = vmatpush.msra.mxu0 %v2125
    %2952 = vmatpush.msra.mxu0 %v2122
    %2953 = vmatpush.msra.mxu0 %v2119
    %2954 = vmatpush.msra.mxu0 %v2116
    %2955 = vmatpush.msra.mxu0 %v2113
    %2956 = vmatpush.msra.mxu0 %v2110
    %2957 = vmatpush.msra.mxu0 %v2107
    %2958 = vmatpush.msra.mxu0 %v2104
    %2959 = vmatpush.msra.mxu0 %v2101
    %2960 = vmatpush.msra.mxu0 %v2098
    %2961 = vmatpush.msra.mxu0 %v2095
    %2962 = vmatpush.msra.mxu0 %v2092
    %2963 = vmatpush.msra.mxu0 %v2089
    %2964 = vmatmul.f32.gmra.mxu0 %v1546
    %v2965 = vpop.f32.mrf.mxu0
    %v2966 = vadd.f32 %v2943, %v2965
    %2967 = vmatmul.f32.gmra.mxu0 %v1558
    %v2968 = vpop.f32.mrf.mxu0
    %v2969 = vadd.f32 %v2946, %v2968
    %2970 = vdwg.mxu0
    %2971 = vst [vmem:[#allocation13] sm:$0xff] %v2414
    %2972 = vst [vmem:[#allocation13 + $0x8] sm:$0xff] %v2690
    %2973 = vst [vmem:[#allocation13 + $0x10] sm:$0xff] %v2966
    %2974 = vst [vmem:[#allocation13 + $0x18] sm:$0xff] %v2417
    %2975 = vst [vmem:[#allocation13 + $0x20] sm:$0xff] %v2693
    %2976 = vst [vmem:[#allocation13 + $0x28] sm:$0xff] %v2969
    // Predicated region
    $region42: #{tpu_custom_call.1} parent=1 // pred_check
      _
    $region43: #{tpu_custom_call.1} parent=1 // pred_check_branch
      %2978 = sbr.rel (0) target = $region45
    $region44: #{tpu_custom_call.1} parent=1 // pred_region
      %2980 = vsyncadd [#allocation6], 0
      %s2981 = sshll.u32 [#allocation13], 4
      %s2982 = int_to_ptr.vmem [resolvable:$true] %s2981
      %s2983 = sshll.u32 %s6, 4
      %s2984 = int_to_ptr.hbm [resolvable:$true] %s2983
      %2989 = dma.vmem_to_hbm [thread:$0]  %s2982, 768, %s2984, [#allocation6], 384, 384, 24
    $region45: #{tpu_custom_call.1} parent=1 // pred_fallthru
      _
    // Predicated region
    $region46: #{tpu_custom_call.1} parent=1 // pred_check
      _
    $region47: #{tpu_custom_call.1} parent=1 // pred_check_branch
      %2991 = sbr.rel (0) target = $region49
    $region48: #{tpu_custom_call.1} parent=1 // pred_region
      %2993 = dma.done [#allocation6], 768
    $region49: #{tpu_custom_call.1} parent=1 // pred_fallthru
      _
    %2994 = vsyncpa [#allocation5], 1
    %2995 = vsyncpa [#allocation8], 1
    %2996 = vsyncpa [#allocation11], 1
    %2997 = vsyncpa [#allocation6], 1

</llo_original>
